<compile_context>
chip_gen: v6e
topology: v6e:2x2x1
jax: 0.10.0
libtpu: 0.0.40
codegen_flags: <defaults>
</compile_context>

<pallas_src>
import math
import sys
from functools import partial

import jax
import jax.numpy as jnp
import numpy as np
from jax import lax
from jax.experimental import pallas as pl
from jax.experimental.pallas import tpu as pltpu

EPS = sys.float_info.epsilon      # matches torch's sys.float_info.epsilon in feature_norm
_EPS2 = EPS * EPS                 # goes inside the rsqrt; guards exactly-zero (pad) columns
_DOT_PREC = lax.Precision.HIGHEST


def _extraction_kernel(ext_ref, wbd_ref, bias_ref, negmask_ref,
                       nt_ref, smp_ref, stack_ref, kv_ref,
                       *, k, wp, h, w, num_label):
    # ext_ref:     (Bb, C, Me)       zero-padded value, flat-extended lane axis
    # wbd_ref:     (L+C, 2*kk*C)     block-diagonal [[Wsem*s, 0], [0, Wval*s]]
    # bias_ref:    (C, 1)            value_conv bias
    # negmask_ref: (1, Mp)           0 at real pixels, -1e30 at padding positions
    # nt_ref:      (Bb, C, L)        neural_textures
    # smp_ref:     (Bb, L, h*w)      interior extraction_softmax (lane-dense)
    # stack_ref:   (2*kk*C, Bb*Mp)   VMEM scratch: [normed taps ; raw taps]
    # kv_ref:      (L+C, Bb*Mp)      VMEM scratch: fused matmul output
    bb_blk, c, _ = ext_ref.shape
    mp = negmask_ref.shape[1]
    kk = k * k
    p = k // 2
    L = num_label
    s0 = p * wp + p                    # flat offset of interior pixel (0, 0) in the padded grid

    neg = negmask_ref[...]             # (1, Mp)
    bias = bias_ref[...]               # (C, 1)

    # ---- Stage feature-normed + raw tap windows for the whole batch block ----
    # stack layout: rows [t*C,(t+1)*C)        -> normed tap t  (key path)
    #               rows [(kk+t)*C,(kk+t+1)*C) -> raw tap t     (value path)
    #               cols [bb*Mp,(bb+1)*Mp)     -> batch element bb
    # Static Python loops keep every slice offset a compile-time constant (better
    # codegen than dynamic pl.ds starts); big intermediates are flushed to the
    # VMEM scratch each iteration, so vreg liveness stays bounded (bb_blk <= 8).
    for bb in range(bb_blk):
        raw = ext_ref[bb]                                            # (C, Me)
        # feature_norm once per batch element, shared by all kk taps.
        mean = jnp.mean(raw, axis=0, keepdims=True)
        cent = raw - mean
        # rsqrt runs on the otherwise-idle EUP; eps^2 keeps exactly-zero
        # (padding) columns finite: 0 * rsqrt(0 + eps^2) == 0.
        inv_n = lax.rsqrt(jnp.sum(cent * cent, axis=0, keepdims=True) + _EPS2)
        normed = cent * inv_n                                        # (C, Me)
        for t in range(kk):
            dy, dx = divmod(t, k)
            off = dy * wp + dx
            stack_ref[pl.ds(t * c, c), pl.ds(bb * mp, mp)] = normed[:, off:off + mp]
            stack_ref[pl.ds((kk + t) * c, c), pl.ds(bb * mp, mp)] = raw[:, off:off + mp]

    # ---- One fused block-diagonal MXU matmul for the whole block ----
    # (L+C, 2*kk*C) x (2*kk*C, Bb*Mp): key rows [0, L), value rows [L, L+C).
    kv_ref[...] = jnp.dot(wbd_ref[...], stack_ref[...],
                          preferred_element_type=jnp.float32, precision=_DOT_PREC)

    # ---- Per-batch-element masked softmax, neural textures, interior extraction ----
    for bb in range(bb_blk):
        col = bb * mp
        key = kv_ref[0:L, col:col + mp] + neg                        # (L, Mp)
        val = kv_ref[L:L + c, col:col + mp]                          # (C, Mp)
        # Masked softmax over the padded spatial (lane) axis; padded columns hit
        # the -1e30 additive mask and underflow to exactly 0 after exp.
        e = jnp.exp(key - jnp.max(key, axis=-1, keepdims=True))
        sm = e * pl.reciprocal(jnp.sum(e, axis=-1, keepdims=True))   # exact recip (keep!)
        # neural_textures[v, l] = sum_m (val[v,m] + bias[v]) * sm[l,m]
        #                       = dot(val, sm^T)[v,l] + bias[v]
        # (softmax rows sum to 1 +/- a few ulp, so bias error is ~|bias|*1e-7)
        nt = lax.dot_general(val, sm, (((1,), (1,)), ((), ())),
                             preferred_element_type=jnp.float32,
                             precision=_DOT_PREC)                    # (C, L)
        # TODO(synk): if L/C grow, emit nt in a lane-dense (bb, C*L) layout.
        nt_ref[bb] = nt + bias
        # Lane-dense interior softmax: copy the h interior rows (w wide each) so
        # the stored block is (L, h*w) and the wrapper needs no extra HBM pass.
        for y in range(h):
            src = s0 + y * wp
            smp_ref[bb, :, y * w:(y + 1) * w] = sm[:, src:src + w]


def _vmem_params():
    """(per-block VMEM budget, compiler vmem_limit_bytes) — generation aware."""
    try:
        cap = int(pltpu.get_tpu_info().vmem_capacity_bytes)
    except Exception:
        cap = None
    if cap is None:                       # unknown part: stay safe even for 64 MiB v7x
        return 12 << 20, 40 << 20
    if cap <= (64 << 20):                 # v7x-class: 64 MiB per TensorCore
        return 16 << 20, min(48 << 20, (cap * 3) // 4)
    return 32 << 20, min(96 << 20, (cap * 3) // 4)   # v5e / v6e: 128 MiB physical


def _pick_batch_block(b, per_bb_bytes, fixed_bytes, budget):
    """Largest divisor of b (capped at 8) whose block fits the VMEM budget while
    keeping >= 2 grid steps whenever b >= 2 (so both v7x TensorCores get work)."""
    best = 1
    for cand in range(1, min(b, 8) + 1):
        if b % cand:
            continue
        if b >= 2 and b // cand < 2:
            continue
        if fixed_bytes + cand * per_bb_bytes > budget:
            continue
        best = cand
    return best


@partial(jax.jit, static_argnames=("match_kernel",))
def _extraction_forward(value, w_sem, w_val, b_val, *, match_kernel):
    b, c, h, w = value.shape
    num_label = w_sem.shape[0]
    k = match_kernel
    p = k // 2
    kk = k * k
    hp, wp = h + 2 * p, w + 2 * p
    mp = hp * wp
    m = h * w
    s = p * wp + p                      # max |tap shift| on the flat padded axis
    me = mp + 2 * s
    scale = 1.0 / math.sqrt(c * k * k)  # EqualConv2d scale (same for both convs)

    # Zero-pad spatially, flatten HxW onto the lane axis, extend by `s` zeros per
    # side so every conv tap is a contiguous length-mp window at offset dy*wp+dx.
    # TODO(synk): this pad could be fused into the pallas_call / DMA-extended
    # in-kernel to avoid one extra ~1.16x-input HBM round trip.
    padded = jnp.pad(value.astype(jnp.float32), ((0, 0), (0, 0), (p, p), (p, p)))
    ext = jnp.pad(padded.reshape(b, c, mp), ((0, 0), (0, 0), (s, s)))   # (b, c, me)

    # Block-diagonal fused weights (in a real module this is hoisted to init time).
    wsem_flat = jnp.transpose(w_sem.astype(jnp.float32), (0, 2, 3, 1)).reshape(num_label, kk * c)
    wval_flat = jnp.transpose(w_val.astype(jnp.float32), (0, 2, 3, 1)).reshape(c, kk * c)
    top = jnp.concatenate([wsem_flat, jnp.zeros((num_label, kk * c), jnp.float32)], axis=1)
    bot = jnp.concatenate([jnp.zeros((c, kk * c), jnp.float32), wval_flat], axis=1)
    w_bd = jnp.concatenate([top, bot], axis=0) * scale                  # (L+C, 2*kk*C)
    bias_r = b_val.reshape(c, 1).astype(jnp.float32)

    # Additive softmax mask over the padded grid (0 = real pixel, -1e30 = pad).
    ii = np.arange(mp)
    yy, xx = ii // wp, ii % wp
    interior = (yy >= p) & (yy < p + h) & (xx >= p) & (xx < p + w)
    neg_mask = jnp.asarray(np.where(interior, 0.0, -1e30), jnp.float32).reshape(1, mp)

    budget, vmem_limit = _vmem_params()
    per_bb = 4 * (2 * c * me                  # ext block (double buffered)
                  + 2 * c * num_label         # nt block  (double buffered)
                  + 2 * num_label * m         # smp block (double buffered)
                  + 2 * kk * c * mp           # stack scratch
                  + (num_label + c) * mp)     # kv scratch
    fixed = 4 * 2 * ((num_label + c) * 2 * kk * c + c + mp)
    bb_blk = _pick_batch_block(b, per_bb, fixed, budget)

    kernel = partial(_extraction_kernel, k=k, wp=wp, h=h, w=w, num_label=num_label)
    nt, sm = pl.pallas_call(
        kernel,
        out_shape=(jax.ShapeDtypeStruct((b, c, num_label), jnp.float32),
                   jax.ShapeDtypeStruct((b, num_label, m), jnp.float32)),
        grid=(b // bb_blk,),
        in_specs=[
            pl.BlockSpec((bb_blk, c, me), lambda i: (i, 0, 0)),
            pl.BlockSpec((num_label + c, 2 * kk * c), lambda i: (0, 0)),
            pl.BlockSpec((c, 1), lambda i: (0, 0)),
            pl.BlockSpec((1, mp), lambda i: (0, 0)),
        ],
        out_specs=(
            pl.BlockSpec((bb_blk, c, num_label), lambda i: (i, 0, 0)),
            pl.BlockSpec((bb_blk, num_label, m), lambda i: (i, 0, 0)),
        ),
        scratch_shapes=[
            pltpu.VMEM((2 * kk * c, bb_blk * mp), jnp.float32),
            pltpu.VMEM((num_label + c, bb_blk * mp), jnp.float32),
        ],
        compiler_params=pltpu.CompilerParams(
            dimension_semantics=("parallel",),
            vmem_limit_bytes=int(vmem_limit)),
    )(ext, w_bd, bias_r, neg_mask)

    return nt, sm


def extraction_operation(value, w_sem, w_val, b_val, match_kernel, recoder=None):
    """value: (b, c, h, w) float32 NCHW. Returns (neural_textures, extraction_softmax)."""
    nt, sm = _extraction_forward(value, w_sem, w_val, b_val, match_kernel=match_kernel)
    # recoder side-effect (list insert) is plain Python, kept outside jit.
    if recoder is not None:
        recoder['extraction_softmax'].insert(0, sm)
        recoder['neural_textures'].insert(0, nt)
    return nt, sm


def _reference(value, w_sem, w_val, b_val, k):
    """Pure-JAX reference mirroring the PyTorch forward (for validation)."""
    b, c, h, w = value.shape
    p = k // 2
    scale = 1.0 / math.sqrt(c * k * k)
    mean = value.mean(axis=1, keepdims=True)
    cent = value - mean
    nrm = jnp.sqrt((cent * cent).sum(axis=1, keepdims=True)) + EPS
    normed = cent / nrm
    dn = ('NCHW', 'OIHW', 'NCHW')
    key = lax.conv_general_dilated(normed, w_sem * scale, (1, 1), [(p, p), (p, p)],
                                   dimension_numbers=dn, precision=lax.Precision.HIGHEST)
    L = w_sem.shape[0]
    sm = jax.nn.softmax(key.reshape(b, L, h * w), axis=-1)
    vals = lax.conv_general_dilated(value, w_val * scale, (1, 1), [(p, p), (p, p)],
                                    dimension_numbers=dn, precision=lax.Precision.HIGHEST)
    vals = (vals + b_val[None, :, None, None]).reshape(b, c, h * w)
    nt = jnp.einsum('bkm,bvm->bvk', sm, vals, precision=lax.Precision.HIGHEST)
    return nt, sm


if __name__ == "__main__":
    B, C, H, W = 2, 8, 16, 16
    NUM_LABEL = 8
    MATCH_KERNEL = 3

    root = jax.random.PRNGKey(0)
    k1, k2, k3 = jax.random.split(root, 3)
    value = jax.random.normal(k1, (B, C, H, W), jnp.float32)
    # EqualConv2d params: weight ~ randn; value_conv has bias (zeros at init),
    # semantic_extraction_filter has bias=False.
    w_sem = jax.random.normal(k2, (NUM_LABEL, C, MATCH_KERNEL, MATCH_KERNEL), jnp.float32)
    w_val = jax.random.normal(k3, (C, C, MATCH_KERNEL, MATCH_KERNEL), jnp.float32)
    b_val = jnp.zeros((C,), jnp.float32)

    recoder = {'extraction_softmax': [], 'neural_textures': []}
    nt, sm = extraction_operation(value, w_sem, w_val, b_val, MATCH_KERNEL, recoder)
    jax.block_until_ready((nt, sm))

    assert nt.shape == (B, C, NUM_LABEL)
    assert sm.shape == (B, NUM_LABEL, H * W)

    nt_ref, sm_ref = _reference(value, w_sem, w_val, b_val, MATCH_KERNEL)
    np.testing.assert_allclose(np.asarray(sm), np.asarray(sm_ref), rtol=1e-4, atol=1e-5)
    np.testing.assert_allclose(np.asarray(nt), np.asarray(nt_ref), rtol=1e-4, atol=1e-4)

    print("KERNEL_OK")
</pallas_src>

<mosaic_0001>
module attributes {stable_mosaic.version = 11 : i64} {
  func.func @_extraction_kernel(%arg0: i32, %arg1: memref<1x8x362xf32, #tpu.memory_space<vmem>>, %arg2: memref<16x144xf32, #tpu.memory_space<vmem>>, %arg3: memref<8x1xf32, #tpu.memory_space<vmem>>, %arg4: memref<1x324xf32, #tpu.memory_space<vmem>>, %arg5: memref<1x8x8xf32, #tpu.memory_space<vmem>>, %arg6: memref<1x8x256xf32, #tpu.memory_space<vmem>>, %arg7: memref<144x324xf32, #tpu.memory_space<vmem>>, %arg8: memref<16x324xf32, #tpu.memory_space<vmem>>) attributes {dimension_semantics = [#tpu.dimension_semantics<parallel>], iteration_bounds = array<i64: 2>, scalar_prefetch = 0 : i64, scratch_operands = 2 : i64, tpu.core_type = #tpu.core_type<tc>, window_params = [{transform_indices = @transform_0, window_bounds = array<i64: 1, 8, 362>}, {pipeline_mode = #tpu.pipeline_mode<synchronous>, transform_indices = @transform_1, window_bounds = array<i64: 16, 144>}, {pipeline_mode = #tpu.pipeline_mode<synchronous>, transform_indices = @transform_2, window_bounds = array<i64: 8, 1>}, {pipeline_mode = #tpu.pipeline_mode<synchronous>, transform_indices = @transform_3, window_bounds = array<i64: 1, 324>}, {transform_indices = @transform_4, window_bounds = array<i64: 1, 8, 8>}, {transform_indices = @transform_5, window_bounds = array<i64: 1, 8, 256>}]} {
    %c0 = arith.constant 0 : index
    %c0_0 = arith.constant 0 : index
    %0 = vector.load %arg4[%c0, %c0_0] : memref<1x324xf32, #tpu.memory_space<vmem>>, vector<1x324xf32>
    %c0_1 = arith.constant 0 : index
    %c0_2 = arith.constant 0 : index
    %1 = vector.load %arg3[%c0_1, %c0_2] : memref<8x1xf32, #tpu.memory_space<vmem>>, vector<8x1xf32>
    %c0_3 = arith.constant 0 : index
    %c0_4 = arith.constant 0 : index
    %c0_5 = arith.constant 0 : index
    %2 = vector.load %arg1[%c0_3, %c0_4, %c0_5] : memref<1x8x362xf32, #tpu.memory_space<vmem>>, vector<1x8x362xf32>
    %3 = vector.shape_cast %2 : vector<1x8x362xf32> to vector<8x362xf32>
    %cst = arith.constant dense<0.000000e+00> : vector<362xf32>
    %4 = vector.multi_reduction <add>, %3, %cst [0] : vector<8x362xf32> to vector<362xf32>
    %5 = vector.shape_cast %4 : vector<362xf32> to vector<1x362xf32>
    %cst_6 = arith.constant 8.000000e+00 : f32
    %6 = vector.broadcast %cst_6 : f32 to vector<1x362xf32>
    %7 = arith.divf %5, %6 : vector<1x362xf32>
    %8 = vector.broadcast %7 : vector<1x362xf32> to vector<8x362xf32>
    %9 = arith.subf %3, %8 : vector<8x362xf32>
    %10 = arith.mulf %9, %9 : vector<8x362xf32>
    %cst_7 = arith.constant dense<0.000000e+00> : vector<362xf32>
    %11 = vector.multi_reduction <add>, %10, %cst_7 [0] : vector<8x362xf32> to vector<362xf32>
    %12 = vector.shape_cast %11 : vector<362xf32> to vector<1x362xf32>
    %cst_8 = arith.constant 4.93038066E-32 : f32
    %13 = vector.broadcast %cst_8 : f32 to vector<1x362xf32>
    %14 = arith.addf %12, %13 : vector<1x362xf32>
    %15 = math.rsqrt %14 : vector<1x362xf32>
    %16 = vector.broadcast %15 : vector<1x362xf32> to vector<8x362xf32>
    %17 = arith.mulf %9, %16 : vector<8x362xf32>
    %18 = vector.extract_strided_slice %17 {offsets = [0, 0], sizes = [8, 324], strides = [1, 1]} : vector<8x362xf32> to vector<8x324xf32>
    %c0_9 = arith.constant 0 : index
    %c0_10 = arith.constant 0 : index
    %19 = vector.load %arg7[%c0_9, %c0_10] : memref<144x324xf32, #tpu.memory_space<vmem>>, vector<8x324xf32>
    tpu.vector_store %arg7[%c0_9, %c0_10], %18 {strides = array<i32>} : memref<144x324xf32, #tpu.memory_space<vmem>>, vector<8x324xf32>,
    %20 = vector.extract_strided_slice %3 {offsets = [0, 0], sizes = [8, 324], strides = [1, 1]} : vector<8x362xf32> to vector<8x324xf32>
    %c72 = arith.constant 72 : index
    %c0_11 = arith.constant 0 : index
    %21 = vector.load %arg7[%c72, %c0_11] : memref<144x324xf32, #tpu.memory_space<vmem>>, vector<8x324xf32>
    tpu.vector_store %arg7[%c72, %c0_11], %20 {strides = array<i32>} : memref<144x324xf32, #tpu.memory_space<vmem>>, vector<8x324xf32>,
    %22 = vector.extract_strided_slice %17 {offsets = [0, 1], sizes = [8, 324], strides = [1, 1]} : vector<8x362xf32> to vector<8x324xf32>
    %c8 = arith.constant 8 : index
    %c0_12 = arith.constant 0 : index
    %23 = vector.load %arg7[%c8, %c0_12] : memref<144x324xf32, #tpu.memory_space<vmem>>, vector<8x324xf32>
    tpu.vector_store %arg7[%c8, %c0_12], %22 {strides = array<i32>} : memref<144x324xf32, #tpu.memory_space<vmem>>, vector<8x324xf32>,
    %24 = vector.extract_strided_slice %3 {offsets = [0, 1], sizes = [8, 324], strides = [1, 1]} : vector<8x362xf32> to vector<8x324xf32>
    %c80 = arith.constant 80 : index
    %c0_13 = arith.constant 0 : index
    %25 = vector.load %arg7[%c80, %c0_13] : memref<144x324xf32, #tpu.memory_space<vmem>>, vector<8x324xf32>
    tpu.vector_store %arg7[%c80, %c0_13], %24 {strides = array<i32>} : memref<144x324xf32, #tpu.memory_space<vmem>>, vector<8x324xf32>,
    %26 = vector.extract_strided_slice %17 {offsets = [0, 2], sizes = [8, 324], strides = [1, 1]} : vector<8x362xf32> to vector<8x324xf32>
    %c16 = arith.constant 16 : index
    %c0_14 = arith.constant 0 : index
    %27 = vector.load %arg7[%c16, %c0_14] : memref<144x324xf32, #tpu.memory_space<vmem>>, vector<8x324xf32>
    tpu.vector_store %arg7[%c16, %c0_14], %26 {strides = array<i32>} : memref<144x324xf32, #tpu.memory_space<vmem>>, vector<8x324xf32>,
    %28 = vector.extract_strided_slice %3 {offsets = [0, 2], sizes = [8, 324], strides = [1, 1]} : vector<8x362xf32> to vector<8x324xf32>
    %c88 = arith.constant 88 : index
    %c0_15 = arith.constant 0 : index
    %29 = vector.load %arg7[%c88, %c0_15] : memref<144x324xf32, #tpu.memory_space<vmem>>, vector<8x324xf32>
    tpu.vector_store %arg7[%c88, %c0_15], %28 {strides = array<i32>} : memref<144x324xf32, #tpu.memory_space<vmem>>, vector<8x324xf32>,
    %30 = vector.extract_strided_slice %17 {offsets = [0, 18], sizes = [8, 324], strides = [1, 1]} : vector<8x362xf32> to vector<8x324xf32>
    %c24 = arith.constant 24 : index
    %c0_16 = arith.constant 0 : index
    %31 = vector.load %arg7[%c24, %c0_16] : memref<144x324xf32, #tpu.memory_space<vmem>>, vector<8x324xf32>
    tpu.vector_store %arg7[%c24, %c0_16], %30 {strides = array<i32>} : memref<144x324xf32, #tpu.memory_space<vmem>>, vector<8x324xf32>,
    %32 = vector.extract_strided_slice %3 {offsets = [0, 18], sizes = [8, 324], strides = [1, 1]} : vector<8x362xf32> to vector<8x324xf32>
    %c96 = arith.constant 96 : index
    %c0_17 = arith.constant 0 : index
    %33 = vector.load %arg7[%c96, %c0_17] : memref<144x324xf32, #tpu.memory_space<vmem>>, vector<8x324xf32>
    tpu.vector_store %arg7[%c96, %c0_17], %32 {strides = array<i32>} : memref<144x324xf32, #tpu.memory_space<vmem>>, vector<8x324xf32>,
    %34 = vector.extract_strided_slice %17 {offsets = [0, 19], sizes = [8, 324], strides = [1, 1]} : vector<8x362xf32> to vector<8x324xf32>
    %c32 = arith.constant 32 : index
    %c0_18 = arith.constant 0 : index
    %35 = vector.load %arg7[%c32, %c0_18] : memref<144x324xf32, #tpu.memory_space<vmem>>, vector<8x324xf32>
    tpu.vector_store %arg7[%c32, %c0_18], %34 {strides = array<i32>} : memref<144x324xf32, #tpu.memory_space<vmem>>, vector<8x324xf32>,
    %36 = vector.extract_strided_slice %3 {offsets = [0, 19], sizes = [8, 324], strides = [1, 1]} : vector<8x362xf32> to vector<8x324xf32>
    %c104 = arith.constant 104 : index
    %c0_19 = arith.constant 0 : index
    %37 = vector.load %arg7[%c104, %c0_19] : memref<144x324xf32, #tpu.memory_space<vmem>>, vector<8x324xf32>
    tpu.vector_store %arg7[%c104, %c0_19], %36 {strides = array<i32>} : memref<144x324xf32, #tpu.memory_space<vmem>>, vector<8x324xf32>,
    %38 = vector.extract_strided_slice %17 {offsets = [0, 20], sizes = [8, 324], strides = [1, 1]} : vector<8x362xf32> to vector<8x324xf32>
    %c40 = arith.constant 40 : index
    %c0_20 = arith.constant 0 : index
    %39 = vector.load %arg7[%c40, %c0_20] : memref<144x324xf32, #tpu.memory_space<vmem>>, vector<8x324xf32>
    tpu.vector_store %arg7[%c40, %c0_20], %38 {strides = array<i32>} : memref<144x324xf32, #tpu.memory_space<vmem>>, vector<8x324xf32>,
    %40 = vector.extract_strided_slice %3 {offsets = [0, 20], sizes = [8, 324], strides = [1, 1]} : vector<8x362xf32> to vector<8x324xf32>
    %c112 = arith.constant 112 : index
    %c0_21 = arith.constant 0 : index
    %41 = vector.load %arg7[%c112, %c0_21] : memref<144x324xf32, #tpu.memory_space<vmem>>, vector<8x324xf32>
    tpu.vector_store %arg7[%c112, %c0_21], %40 {strides = array<i32>} : memref<144x324xf32, #tpu.memory_space<vmem>>, vector<8x324xf32>,
    %42 = vector.extract_strided_slice %17 {offsets = [0, 36], sizes = [8, 324], strides = [1, 1]} : vector<8x362xf32> to vector<8x324xf32>
    %c48 = arith.constant 48 : index
    %c0_22 = arith.constant 0 : index
    %43 = vector.load %arg7[%c48, %c0_22] : memref<144x324xf32, #tpu.memory_space<vmem>>, vector<8x324xf32>
    tpu.vector_store %arg7[%c48, %c0_22], %42 {strides = array<i32>} : memref<144x324xf32, #tpu.memory_space<vmem>>, vector<8x324xf32>,
    %44 = vector.extract_strided_slice %3 {offsets = [0, 36], sizes = [8, 324], strides = [1, 1]} : vector<8x362xf32> to vector<8x324xf32>
    %c120 = arith.constant 120 : index
    %c0_23 = arith.constant 0 : index
    %45 = vector.load %arg7[%c120, %c0_23] : memref<144x324xf32, #tpu.memory_space<vmem>>, vector<8x324xf32>
    tpu.vector_store %arg7[%c120, %c0_23], %44 {strides = array<i32>} : memref<144x324xf32, #tpu.memory_space<vmem>>, vector<8x324xf32>,
    %46 = vector.extract_strided_slice %17 {offsets = [0, 37], sizes = [8, 324], strides = [1, 1]} : vector<8x362xf32> to vector<8x324xf32>
    %c56 = arith.constant 56 : index
    %c0_24 = arith.constant 0 : index
    %47 = vector.load %arg7[%c56, %c0_24] : memref<144x324xf32, #tpu.memory_space<vmem>>, vector<8x324xf32>
    tpu.vector_store %arg7[%c56, %c0_24], %46 {strides = array<i32>} : memref<144x324xf32, #tpu.memory_space<vmem>>, vector<8x324xf32>,
    %48 = vector.extract_strided_slice %3 {offsets = [0, 37], sizes = [8, 324], strides = [1, 1]} : vector<8x362xf32> to vector<8x324xf32>
    %c128 = arith.constant 128 : index
    %c0_25 = arith.constant 0 : index
    %49 = vector.load %arg7[%c128, %c0_25] : memref<144x324xf32, #tpu.memory_space<vmem>>, vector<8x324xf32>
    tpu.vector_store %arg7[%c128, %c0_25], %48 {strides = array<i32>} : memref<144x324xf32, #tpu.memory_space<vmem>>, vector<8x324xf32>,
    %50 = vector.extract_strided_slice %17 {offsets = [0, 38], sizes = [8, 324], strides = [1, 1]} : vector<8x362xf32> to vector<8x324xf32>
    %c64 = arith.constant 64 : index
    %c0_26 = arith.constant 0 : index
    %51 = vector.load %arg7[%c64, %c0_26] : memref<144x324xf32, #tpu.memory_space<vmem>>, vector<8x324xf32>
    tpu.vector_store %arg7[%c64, %c0_26], %50 {strides = array<i32>} : memref<144x324xf32, #tpu.memory_space<vmem>>, vector<8x324xf32>,
    %52 = vector.extract_strided_slice %3 {offsets = [0, 38], sizes = [8, 324], strides = [1, 1]} : vector<8x362xf32> to vector<8x324xf32>
    %c136 = arith.constant 136 : index
    %c0_27 = arith.constant 0 : index
    %53 = vector.load %arg7[%c136, %c0_27] : memref<144x324xf32, #tpu.memory_space<vmem>>, vector<8x324xf32>
    tpu.vector_store %arg7[%c136, %c0_27], %52 {strides = array<i32>} : memref<144x324xf32, #tpu.memory_space<vmem>>, vector<8x324xf32>,
    %c0_28 = arith.constant 0 : index
    %c0_29 = arith.constant 0 : index
    %54 = vector.load %arg2[%c0_28, %c0_29] : memref<16x144xf32, #tpu.memory_space<vmem>>, vector<16x144xf32>
    %c0_30 = arith.constant 0 : index
    %c0_31 = arith.constant 0 : index
    %55 = vector.load %arg7[%c0_30, %c0_31] : memref<144x324xf32, #tpu.memory_space<vmem>>, vector<144x324xf32>
    %cst_32 = arith.constant dense<0.000000e+00> : vector<16x324xf32>
    %56 = tpu.matmul %54, %55, %cst_32 {dimension_numbers = #tpu.dot_dimension_numbers<[1], [0], [0], [1], [0, 0, 1, 1], [], []>, precision = #tpu.contract_precision<fp32>} : vector<16x144xf32>, vector<144x324xf32>, vector<16x324xf32> -> vector<16x324xf32>
    %c0_33 = arith.constant 0 : index
    %c0_34 = arith.constant 0 : index
    %57 = vector.load %arg8[%c0_33, %c0_34] : memref<16x324xf32, #tpu.memory_space<vmem>>, vector<16x324xf32>
    tpu.vector_store %arg8[%c0_33, %c0_34], %56 {strides = array<i32>} : memref<16x324xf32, #tpu.memory_space<vmem>>, vector<16x324xf32>,
    %c0_35 = arith.constant 0 : index
    %c0_36 = arith.constant 0 : index
    %58 = vector.load %arg8[%c0_35, %c0_36] : memref<16x324xf32, #tpu.memory_space<vmem>>, vector<8x324xf32>
    %59 = vector.broadcast %0 : vector<1x324xf32> to vector<8x324xf32>
    %60 = arith.addf %58, %59 : vector<8x324xf32>
    %c8_37 = arith.constant 8 : index
    %c0_38 = arith.constant 0 : index
    %61 = vector.load %arg8[%c8_37, %c0_38] : memref<16x324xf32, #tpu.memory_space<vmem>>, vector<8x324xf32>
    %cst_39 = arith.constant dense<0xFF800000> : vector<8xf32>
    %62 = vector.multi_reduction <maximumf>, %60, %cst_39 [1] : vector<8x324xf32> to vector<8xf32>
    %63 = vector.shape_cast %62 : vector<8xf32> to vector<8x1xf32>
    %64 = vector.broadcast %63 : vector<8x1xf32> to vector<8x324xf32>
    %65 = arith.subf %60, %64 : vector<8x324xf32>
    %66 = math.exp %65 : vector<8x324xf32>
    %cst_40 = arith.constant dense<0.000000e+00> : vector<8xf32>
    %67 = vector.multi_reduction <add>, %66, %cst_40 [1] : vector<8x324xf32> to vector<8xf32>
    %68 = vector.shape_cast %67 : vector<8xf32> to vector<8x1xf32>
    %69 = tpu.reciprocal %68 : vector<8x1xf32> -> vector<8x1xf32>
    %70 = vector.broadcast %69 : vector<8x1xf32> to vector<8x324xf32>
    %71 = arith.mulf %66, %70 : vector<8x324xf32>
    %cst_41 = arith.constant dense<0.000000e+00> : vector<8x8xf32>
    %72 = tpu.matmul %61, %71, %cst_41 {dimension_numbers = #tpu.dot_dimension_numbers<[1], [1], [0], [0], [0, 0, 1, 0], [], []>, precision = #tpu.contract_precision<fp32>} : vector<8x324xf32>, vector<8x324xf32>, vector<8x8xf32> -> vector<8x8xf32>
    %73 = vector.broadcast %1 : vector<8x1xf32> to vector<8x8xf32>
    %74 = arith.addf %72, %73 : vector<8x8xf32>
    %c0_42 = arith.constant 0 : index
    %c0_43 = arith.constant 0 : index
    %c0_44 = arith.constant 0 : index
    %75 = vector.load %arg5[%c0_42, %c0_43, %c0_44] : memref<1x8x8xf32, #tpu.memory_space<vmem>>, vector<1x8x8xf32>
    %76 = vector.shape_cast %75 : vector<1x8x8xf32> to vector<8x8xf32>
    %77 = vector.shape_cast %74 : vector<8x8xf32> to vector<1x8x8xf32>
    tpu.vector_store %arg5[%c0_42, %c0_43, %c0_44], %77 {strides = array<i32>} : memref<1x8x8xf32, #tpu.memory_space<vmem>>, vector<1x8x8xf32>,
    %78 = vector.extract_strided_slice %71 {offsets = [0, 19], sizes = [8, 16], strides = [1, 1]} : vector<8x324xf32> to vector<8x16xf32>
    %c0_45 = arith.constant 0 : index
    %c0_46 = arith.constant 0 : index
    %c0_47 = arith.constant 0 : index
    %79 = vector.load %arg6[%c0_45, %c0_46, %c0_47] : memref<1x8x256xf32, #tpu.memory_space<vmem>>, vector<1x8x16xf32>
    %80 = vector.shape_cast %79 : vector<1x8x16xf32> to vector<8x16xf32>
    %81 = vector.shape_cast %78 : vector<8x16xf32> to vector<1x8x16xf32>
    tpu.vector_store %arg6[%c0_45, %c0_46, %c0_47], %81 {strides = array<i32>} : memref<1x8x256xf32, #tpu.memory_space<vmem>>, vector<1x8x16xf32>,
    %82 = vector.extract_strided_slice %71 {offsets = [0, 37], sizes = [8, 16], strides = [1, 1]} : vector<8x324xf32> to vector<8x16xf32>
    %c0_48 = arith.constant 0 : index
    %c0_49 = arith.constant 0 : index
    %c16_50 = arith.constant 16 : index
    %83 = vector.load %arg6[%c0_48, %c0_49, %c16_50] : memref<1x8x256xf32, #tpu.memory_space<vmem>>, vector<1x8x16xf32>
    %84 = vector.shape_cast %83 : vector<1x8x16xf32> to vector<8x16xf32>
    %85 = vector.shape_cast %82 : vector<8x16xf32> to vector<1x8x16xf32>
    tpu.vector_store %arg6[%c0_48, %c0_49, %c16_50], %85 {strides = array<i32>} : memref<1x8x256xf32, #tpu.memory_space<vmem>>, vector<1x8x16xf32>,
    %86 = vector.extract_strided_slice %71 {offsets = [0, 55], sizes = [8, 16], strides = [1, 1]} : vector<8x324xf32> to vector<8x16xf32>
    %c0_51 = arith.constant 0 : index
    %c0_52 = arith.constant 0 : index
    %c32_53 = arith.constant 32 : index
    %87 = vector.load %arg6[%c0_51, %c0_52, %c32_53] : memref<1x8x256xf32, #tpu.memory_space<vmem>>, vector<1x8x16xf32>
    %88 = vector.shape_cast %87 : vector<1x8x16xf32> to vector<8x16xf32>
    %89 = vector.shape_cast %86 : vector<8x16xf32> to vector<1x8x16xf32>
    tpu.vector_store %arg6[%c0_51, %c0_52, %c32_53], %89 {strides = array<i32>} : memref<1x8x256xf32, #tpu.memory_space<vmem>>, vector<1x8x16xf32>,
    %90 = vector.extract_strided_slice %71 {offsets = [0, 73], sizes = [8, 16], strides = [1, 1]} : vector<8x324xf32> to vector<8x16xf32>
    %c0_54 = arith.constant 0 : index
    %c0_55 = arith.constant 0 : index
    %c48_56 = arith.constant 48 : index
    %91 = vector.load %arg6[%c0_54, %c0_55, %c48_56] : memref<1x8x256xf32, #tpu.memory_space<vmem>>, vector<1x8x16xf32>
    %92 = vector.shape_cast %91 : vector<1x8x16xf32> to vector<8x16xf32>
    %93 = vector.shape_cast %90 : vector<8x16xf32> to vector<1x8x16xf32>
    tpu.vector_store %arg6[%c0_54, %c0_55, %c48_56], %93 {strides = array<i32>} : memref<1x8x256xf32, #tpu.memory_space<vmem>>, vector<1x8x16xf32>,
    %94 = vector.extract_strided_slice %71 {offsets = [0, 91], sizes = [8, 16], strides = [1, 1]} : vector<8x324xf32> to vector<8x16xf32>
    %c0_57 = arith.constant 0 : index
    %c0_58 = arith.constant 0 : index
    %c64_59 = arith.constant 64 : index
    %95 = vector.load %arg6[%c0_57, %c0_58, %c64_59] : memref<1x8x256xf32, #tpu.memory_space<vmem>>, vector<1x8x16xf32>
    %96 = vector.shape_cast %95 : vector<1x8x16xf32> to vector<8x16xf32>
    %97 = vector.shape_cast %94 : vector<8x16xf32> to vector<1x8x16xf32>
    tpu.vector_store %arg6[%c0_57, %c0_58, %c64_59], %97 {strides = array<i32>} : memref<1x8x256xf32, #tpu.memory_space<vmem>>, vector<1x8x16xf32>,
    %98 = vector.extract_strided_slice %71 {offsets = [0, 109], sizes = [8, 16], strides = [1, 1]} : vector<8x324xf32> to vector<8x16xf32>
    %c0_60 = arith.constant 0 : index
    %c0_61 = arith.constant 0 : index
    %c80_62 = arith.constant 80 : index
    %99 = vector.load %arg6[%c0_60, %c0_61, %c80_62] : memref<1x8x256xf32, #tpu.memory_space<vmem>>, vector<1x8x16xf32>
    %100 = vector.shape_cast %99 : vector<1x8x16xf32> to vector<8x16xf32>
    %101 = vector.shape_cast %98 : vector<8x16xf32> to vector<1x8x16xf32>
    tpu.vector_store %arg6[%c0_60, %c0_61, %c80_62], %101 {strides = array<i32>} : memref<1x8x256xf32, #tpu.memory_space<vmem>>, vector<1x8x16xf32>,
    %102 = vector.extract_strided_slice %71 {offsets = [0, 127], sizes = [8, 16], strides = [1, 1]} : vector<8x324xf32> to vector<8x16xf32>
    %c0_63 = arith.constant 0 : index
    %c0_64 = arith.constant 0 : index
    %c96_65 = arith.constant 96 : index
    %103 = vector.load %arg6[%c0_63, %c0_64, %c96_65] : memref<1x8x256xf32, #tpu.memory_space<vmem>>, vector<1x8x16xf32>
    %104 = vector.shape_cast %103 : vector<1x8x16xf32> to vector<8x16xf32>
    %105 = vector.shape_cast %102 : vector<8x16xf32> to vector<1x8x16xf32>
    tpu.vector_store %arg6[%c0_63, %c0_64, %c96_65], %105 {strides = array<i32>} : memref<1x8x256xf32, #tpu.memory_space<vmem>>, vector<1x8x16xf32>,
    %106 = vector.extract_strided_slice %71 {offsets = [0, 145], sizes = [8, 16], strides = [1, 1]} : vector<8x324xf32> to vector<8x16xf32>
    %c0_66 = arith.constant 0 : index
    %c0_67 = arith.constant 0 : index
    %c112_68 = arith.constant 112 : index
    %107 = vector.load %arg6[%c0_66, %c0_67, %c112_68] : memref<1x8x256xf32, #tpu.memory_space<vmem>>, vector<1x8x16xf32>
    %108 = vector.shape_cast %107 : vector<1x8x16xf32> to vector<8x16xf32>
    %109 = vector.shape_cast %106 : vector<8x16xf32> to vector<1x8x16xf32>
    tpu.vector_store %arg6[%c0_66, %c0_67, %c112_68], %109 {strides = array<i32>} : memref<1x8x256xf32, #tpu.memory_space<vmem>>, vector<1x8x16xf32>,
    %110 = vector.extract_strided_slice %71 {offsets = [0, 163], sizes = [8, 16], strides = [1, 1]} : vector<8x324xf32> to vector<8x16xf32>
    %c0_69 = arith.constant 0 : index
    %c0_70 = arith.constant 0 : index
    %c128_71 = arith.constant 128 : index
    %111 = vector.load %arg6[%c0_69, %c0_70, %c128_71] : memref<1x8x256xf32, #tpu.memory_space<vmem>>, vector<1x8x16xf32>
    %112 = vector.shape_cast %111 : vector<1x8x16xf32> to vector<8x16xf32>
    %113 = vector.shape_cast %110 : vector<8x16xf32> to vector<1x8x16xf32>
    tpu.vector_store %arg6[%c0_69, %c0_70, %c128_71], %113 {strides = array<i32>} : memref<1x8x256xf32, #tpu.memory_space<vmem>>, vector<1x8x16xf32>,
    %114 = vector.extract_strided_slice %71 {offsets = [0, 181], sizes = [8, 16], strides = [1, 1]} : vector<8x324xf32> to vector<8x16xf32>
    %c0_72 = arith.constant 0 : index
    %c0_73 = arith.constant 0 : index
    %c144 = arith.constant 144 : index
    %115 = vector.load %arg6[%c0_72, %c0_73, %c144] : memref<1x8x256xf32, #tpu.memory_space<vmem>>, vector<1x8x16xf32>
    %116 = vector.shape_cast %115 : vector<1x8x16xf32> to vector<8x16xf32>
    %117 = vector.shape_cast %114 : vector<8x16xf32> to vector<1x8x16xf32>
    tpu.vector_store %arg6[%c0_72, %c0_73, %c144], %117 {strides = array<i32>} : memref<1x8x256xf32, #tpu.memory_space<vmem>>, vector<1x8x16xf32>,
    %118 = vector.extract_strided_slice %71 {offsets = [0, 199], sizes = [8, 16], strides = [1, 1]} : vector<8x324xf32> to vector<8x16xf32>
    %c0_74 = arith.constant 0 : index
    %c0_75 = arith.constant 0 : index
    %c160 = arith.constant 160 : index
    %119 = vector.load %arg6[%c0_74, %c0_75, %c160] : memref<1x8x256xf32, #tpu.memory_space<vmem>>, vector<1x8x16xf32>
    %120 = vector.shape_cast %119 : vector<1x8x16xf32> to vector<8x16xf32>
    %121 = vector.shape_cast %118 : vector<8x16xf32> to vector<1x8x16xf32>
    tpu.vector_store %arg6[%c0_74, %c0_75, %c160], %121 {strides = array<i32>} : memref<1x8x256xf32, #tpu.memory_space<vmem>>, vector<1x8x16xf32>,
    %122 = vector.extract_strided_slice %71 {offsets = [0, 217], sizes = [8, 16], strides = [1, 1]} : vector<8x324xf32> to vector<8x16xf32>
    %c0_76 = arith.constant 0 : index
    %c0_77 = arith.constant 0 : index
    %c176 = arith.constant 176 : index
    %123 = vector.load %arg6[%c0_76, %c0_77, %c176] : memref<1x8x256xf32, #tpu.memory_space<vmem>>, vector<1x8x16xf32>
    %124 = vector.shape_cast %123 : vector<1x8x16xf32> to vector<8x16xf32>
    %125 = vector.shape_cast %122 : vector<8x16xf32> to vector<1x8x16xf32>
    tpu.vector_store %arg6[%c0_76, %c0_77, %c176], %125 {strides = array<i32>} : memref<1x8x256xf32, #tpu.memory_space<vmem>>, vector<1x8x16xf32>,
    %126 = vector.extract_strided_slice %71 {offsets = [0, 235], sizes = [8, 16], strides = [1, 1]} : vector<8x324xf32> to vector<8x16xf32>
    %c0_78 = arith.constant 0 : index
    %c0_79 = arith.constant 0 : index
    %c192 = arith.constant 192 : index
    %127 = vector.load %arg6[%c0_78, %c0_79, %c192] : memref<1x8x256xf32, #tpu.memory_space<vmem>>, vector<1x8x16xf32>
    %128 = vector.shape_cast %127 : vector<1x8x16xf32> to vector<8x16xf32>
    %129 = vector.shape_cast %126 : vector<8x16xf32> to vector<1x8x16xf32>
    tpu.vector_store %arg6[%c0_78, %c0_79, %c192], %129 {strides = array<i32>} : memref<1x8x256xf32, #tpu.memory_space<vmem>>, vector<1x8x16xf32>,
    %130 = vector.extract_strided_slice %71 {offsets = [0, 253], sizes = [8, 16], strides = [1, 1]} : vector<8x324xf32> to vector<8x16xf32>
    %c0_80 = arith.constant 0 : index
    %c0_81 = arith.constant 0 : index
    %c208 = arith.constant 208 : index
    %131 = vector.load %arg6[%c0_80, %c0_81, %c208] : memref<1x8x256xf32, #tpu.memory_space<vmem>>, vector<1x8x16xf32>
    %132 = vector.shape_cast %131 : vector<1x8x16xf32> to vector<8x16xf32>
    %133 = vector.shape_cast %130 : vector<8x16xf32> to vector<1x8x16xf32>
    tpu.vector_store %arg6[%c0_80, %c0_81, %c208], %133 {strides = array<i32>} : memref<1x8x256xf32, #tpu.memory_space<vmem>>, vector<1x8x16xf32>,
    %134 = vector.extract_strided_slice %71 {offsets = [0, 271], sizes = [8, 16], strides = [1, 1]} : vector<8x324xf32> to vector<8x16xf32>
    %c0_82 = arith.constant 0 : index
    %c0_83 = arith.constant 0 : index
    %c224 = arith.constant 224 : index
    %135 = vector.load %arg6[%c0_82, %c0_83, %c224] : memref<1x8x256xf32, #tpu.memory_space<vmem>>, vector<1x8x16xf32>
    %136 = vector.shape_cast %135 : vector<1x8x16xf32> to vector<8x16xf32>
    %137 = vector.shape_cast %134 : vector<8x16xf32> to vector<1x8x16xf32>
    tpu.vector_store %arg6[%c0_82, %c0_83, %c224], %137 {strides = array<i32>} : memref<1x8x256xf32, #tpu.memory_space<vmem>>, vector<1x8x16xf32>,
    %138 = vector.extract_strided_slice %71 {offsets = [0, 289], sizes = [8, 16], strides = [1, 1]} : vector<8x324xf32> to vector<8x16xf32>
    %c0_84 = arith.constant 0 : index
    %c0_85 = arith.constant 0 : index
    %c240 = arith.constant 240 : index
    %139 = vector.load %arg6[%c0_84, %c0_85, %c240] : memref<1x8x256xf32, #tpu.memory_space<vmem>>, vector<1x8x16xf32>
    %140 = vector.shape_cast %139 : vector<1x8x16xf32> to vector<8x16xf32>
    %141 = vector.shape_cast %138 : vector<8x16xf32> to vector<1x8x16xf32>
    tpu.vector_store %arg6[%c0_84, %c0_85, %c240], %141 {strides = array<i32>} : memref<1x8x256xf32, #tpu.memory_space<vmem>>, vector<1x8x16xf32>,
    return
  }
  func.func @transform_0(%arg0: i32) -> (i32, i32, i32) {
    %c0_i32 = arith.constant 0 : i32
    %c0_i32_0 = arith.constant 0 : i32
    %c0_i32_1 = arith.constant 0 : i32
    return %arg0, %c0_i32, %c0_i32_0 : i32, i32, i32
  }
  func.func @transform_1(%arg0: i32) -> (i32, i32) {
    %c0_i32 = arith.constant 0 : i32
    %c0_i32_0 = arith.constant 0 : i32
    %c0_i32_1 = arith.constant 0 : i32
    return %c0_i32, %c0_i32_0 : i32, i32
  }
  func.func @transform_2(%arg0: i32) -> (i32, i32) {
    %c0_i32 = arith.constant 0 : i32
    %c0_i32_0 = arith.constant 0 : i32
    %c0_i32_1 = arith.constant 0 : i32
    return %c0_i32, %c0_i32_0 : i32, i32
  }
  func.func @transform_3(%arg0: i32) -> (i32, i32) {
    %c0_i32 = arith.constant 0 : i32
    %c0_i32_0 = arith.constant 0 : i32
    %c0_i32_1 = arith.constant 0 : i32
    return %c0_i32, %c0_i32_0 : i32, i32
  }
  func.func @transform_4(%arg0: i32) -> (i32, i32, i32) {
    %c0_i32 = arith.constant 0 : i32
    %c0_i32_0 = arith.constant 0 : i32
    %c0_i32_1 = arith.constant 0 : i32
    return %arg0, %c0_i32, %c0_i32_0 : i32, i32, i32
  }
  func.func @transform_5(%arg0: i32) -> (i32, i32, i32) {
    %c0_i32 = arith.constant 0 : i32
    %c0_i32_0 = arith.constant 0 : i32
    %c0_i32_1 = arith.constant 0 : i32
    return %arg0, %c0_i32, %c0_i32_0 : i32, i32, i32
  }
}

</mosaic_0001>

<llo_original>
// kernel: _extraction_forward.1
$region0: #{_extraction_forward.1}
  #allocation0 [shape = 'u32[]', space=smem, size = 0x4, offset = 0x4, fixed_abs, tag = 'smem constant byte address 0x4 - core index']
  #allocation1 [shape = 'u32[144,128]{1,0:T(1,128)}', space=vmem, size = 0x12000, scoped, tag = 'internal scratch']
  #allocation2 [shape = 'f32[144,324]{1,0:T(8,128)}', space=vmem, size = 0x36000, scoped, tag = 'scratch operand']
  #allocation3 [shape = 'f32[16,324]{1,0:T(8,128)}', space=vmem, size = 0x6000, scoped, tag = 'scratch operand']
  %s0 = inlined_call_operand.vmem [shape: f32[2,8,362], index: 0, kind: input, shape index: {}]
  %s1 = inlined_call_operand.vmem [shape: f32[16,144], index: 1, kind: input, shape index: {}]
  %s2 = inlined_call_operand.vmem [shape: f32[8,1], index: 2, kind: input, shape index: {}]
  %s3 = inlined_call_operand.vmem [shape: f32[1,324], index: 3, kind: input, shape index: {}]
  %s4 = inlined_call_operand.hbm [shape: f32[2,8,8], index: 4, kind: output, shape index: {0}]
  %s5 = inlined_call_operand.hbm [shape: f32[2,8,256], index: 5, kind: output, shape index: {1}]
  %6 = xla_tuple %s4, %s5
  %s7 = sld [smem:[#allocation0]]
  $region57: #{_extraction_forward.1} parent=0
    _
  %s9 = ssub.s32 1, %s7
  %s10 = scalar_select 0, %s9, %s7
  $region1: #{_extraction_forward.1} parent=0
    #allocation4 [shape = 'u8[8192]{0}', space=vmem, size = 0x2000, scoped, tag = 'output window, operand 0']
    #allocation5 [shape = 's32[2]{0}', space=sflag, size = 0x8, scoped, tag = 'scoped memory for _extraction_forward.1']
    #allocation6 [shape = 'u8[16384]{0}', space=vmem, size = 0x4000, scoped, tag = 'output window, operand 1']
    #allocation7 [shape = 's32[2]{0}', space=sflag, size = 0x8, scoped, tag = 'scoped memory for _extraction_forward.1']
    %11 = vsyncpa [#allocation5], 0
    %s12 = scalar_lea.sflag [#allocation5], 1
    %13 = vsyncpa %s12, 0
    %14 = vsyncpa [#allocation7], 0
    %s15 = scalar_lea.sflag [#allocation7], 1
    %16 = vsyncpa %s15, 0
    loop: start=0, step=1, limit=4
    $region2: #{_extraction_forward.1} parent=1 // loop_pre_header
      _
    $region3: #{_extraction_forward.1} parent=1 // loop_header
      %s18 = sphi 0, %s22
      %p19 = scmp.ge.s32.totalorder %s18, 4
      %s28 = sphi 0, %s30
      %s31 = sphi 0, %s28
      %s32 = sphi 0, %s31
      %s48 = sphi 0, %s32
      %s52 = sphi 0, %s52
      %s54 = sphi 0, %s52
      %s55 = sphi 0, %s54
      %s69 = sphi 0, %s55
      %s73 = sphi 0, %s73
      %s75 = sphi 0, %s73
      %s76 = sphi 0, %s75
      %s90 = sphi 0, %s76
      %s94 = sphi 0, %s94
      %s96 = sphi 0, %s94
      %s97 = sphi 0, %s96
      %s111 = sphi 0, %s97
      %s117 = sphi 0, %s119
      %s120 = sphi 0, %s117
      %s121 = sphi 0, %s120
      %s137 = sphi 0, %s121
      %s143 = sphi 0, %s145
      %s146 = sphi 0, %s143
      %s147 = sphi 0, %s146
      %s163 = sphi 0, %s147
    $region4: #{_extraction_forward.1} parent=1 // loop_header_branch
      %21 = sbr.rel (%p19) target = $region8
    $region5: #{_extraction_forward.1} parent=1 // loop_body
      %s23 = ssub.s32 %s18, 1
      %s24 = ssub.s32 %s18, 2
      %s25 = sadd.s32 %s18, 1
      %s26 = ssub.s32 %s18, %s25
      %p27 = scmp.eq.s32.totalorder %s26, 0
      %s29 = sadd.s32 %s28, 1
      %s30 = scalar_select %p27, %s28, %s29
      %p33 = pneg %p27
      %p34 = scmp.eq.s32.totalorder %s18, 1
      %p35 = por %p33, %p34
      %p36 = scmp.ne.s32.totalorder %s28, %s31
      %p37 = scmp.eq.s32.totalorder %s18, 0
      %p38 = por %p36, %p37
      %p39 = scmp.ne.s32.totalorder %s28, %s31
      %p40 = scmp.eq.s32.totalorder %s23, 1
      %p41 = por %p39, %p40
      %p42 = scmp.ne.s32.totalorder %s31, %s32
      %p43 = scmp.eq.s32.totalorder %s23, 0
      %p44 = por %p42, %p43
      %p45 = scmp.ne.s32.totalorder %s31, %s32
      %p46 = scmp.eq.s32.totalorder %s24, 1
      %p47 = por %p45, %p46
      %p49 = scmp.ne.s32.totalorder %s32, %s48
      %p50 = scmp.eq.s32.totalorder %s24, 0
      %p51 = por %p49, %p50
      %s53 = sadd.s32 %s52, 1
      %p56 = scmp.eq.s32.totalorder %s18, 1
      %p57 = scmp.ne.s32.totalorder %s52, %s54
      %p58 = scmp.eq.s32.totalorder %s18, 0
      %p59 = por %p57, %p58
      %p60 = scmp.ne.s32.totalorder %s52, %s54
      %p61 = scmp.eq.s32.totalorder %s23, 1
      %p62 = por %p60, %p61
      %p63 = scmp.ne.s32.totalorder %s54, %s55
      %p64 = scmp.eq.s32.totalorder %s23, 0
      %p65 = por %p63, %p64
      %p66 = scmp.ne.s32.totalorder %s54, %s55
      %p67 = scmp.eq.s32.totalorder %s24, 1
      %p68 = por %p66, %p67
      %p70 = scmp.ne.s32.totalorder %s55, %s69
      %p71 = scmp.eq.s32.totalorder %s24, 0
      %p72 = por %p70, %p71
      %s74 = sadd.s32 %s73, 1
      %p77 = scmp.eq.s32.totalorder %s18, 1
      %p78 = scmp.ne.s32.totalorder %s73, %s75
      %p79 = scmp.eq.s32.totalorder %s18, 0
      %p80 = por %p78, %p79
      %p81 = scmp.ne.s32.totalorder %s73, %s75
      %p82 = scmp.eq.s32.totalorder %s23, 1
      %p83 = por %p81, %p82
      %p84 = scmp.ne.s32.totalorder %s75, %s76
      %p85 = scmp.eq.s32.totalorder %s23, 0
      %p86 = por %p84, %p85
      %p87 = scmp.ne.s32.totalorder %s75, %s76
      %p88 = scmp.eq.s32.totalorder %s24, 1
      %p89 = por %p87, %p88
      %p91 = scmp.ne.s32.totalorder %s76, %s90
      %p92 = scmp.eq.s32.totalorder %s24, 0
      %p93 = por %p91, %p92
      %s95 = sadd.s32 %s94, 1
      %p98 = scmp.eq.s32.totalorder %s18, 1
      %p99 = scmp.ne.s32.totalorder %s94, %s96
      %p100 = scmp.eq.s32.totalorder %s18, 0
      %p101 = por %p99, %p100
      %p102 = scmp.ne.s32.totalorder %s94, %s96
      %p103 = scmp.eq.s32.totalorder %s23, 1
      %p104 = por %p102, %p103
      %p105 = scmp.ne.s32.totalorder %s96, %s97
      %p106 = scmp.eq.s32.totalorder %s23, 0
      %p107 = por %p105, %p106
      %p108 = scmp.ne.s32.totalorder %s96, %s97
      %p109 = scmp.eq.s32.totalorder %s24, 1
      %p110 = por %p108, %p109
      %p112 = scmp.ne.s32.totalorder %s97, %s111
      %p113 = scmp.eq.s32.totalorder %s24, 0
      %p114 = por %p112, %p113
      %s115 = ssub.s32 %s18, %s25
      %p116 = scmp.eq.s32.totalorder %s115, 0
      %s118 = sadd.s32 %s117, 1
      %s119 = scalar_select %p116, %s117, %s118
      %p122 = pneg %p116
      %p123 = scmp.eq.s32.totalorder %s18, 1
      %p124 = por %p122, %p123
      %p125 = scmp.ne.s32.totalorder %s117, %s120
      %p126 = scmp.eq.s32.totalorder %s18, 0
      %p127 = por %p125, %p126
      %p128 = scmp.ne.s32.totalorder %s117, %s120
      %p129 = scmp.eq.s32.totalorder %s23, 1
      %p130 = por %p128, %p129
      %p131 = scmp.ne.s32.totalorder %s120, %s121
      %p132 = scmp.eq.s32.totalorder %s23, 0
      %p133 = por %p131, %p132
      %p134 = scmp.ne.s32.totalorder %s120, %s121
      %p135 = scmp.eq.s32.totalorder %s24, 1
      %p136 = por %p134, %p135
      %p138 = scmp.ne.s32.totalorder %s121, %s137
      %p139 = scmp.eq.s32.totalorder %s24, 0
      %p140 = por %p138, %p139
      %s141 = ssub.s32 %s18, %s25
      %p142 = scmp.eq.s32.totalorder %s141, 0
      %s144 = sadd.s32 %s143, 1
      %s145 = scalar_select %p142, %s143, %s144
      %p148 = pneg %p142
      %p149 = scmp.eq.s32.totalorder %s18, 1
      %p150 = por %p148, %p149
      %p151 = scmp.ne.s32.totalorder %s143, %s146
      %p152 = scmp.eq.s32.totalorder %s18, 0
      %p153 = por %p151, %p152
      %p154 = scmp.ne.s32.totalorder %s143, %s146
      %p155 = scmp.eq.s32.totalorder %s23, 1
      %p156 = por %p154, %p155
      %p157 = scmp.ne.s32.totalorder %s146, %s147
      %p158 = scmp.eq.s32.totalorder %s23, 0
      %p159 = por %p157, %p158
      %p160 = scmp.ne.s32.totalorder %s146, %s147
      %p161 = scmp.eq.s32.totalorder %s24, 1
      %p162 = por %p160, %p161
      %p164 = scmp.ne.s32.totalorder %s147, %s163
      %p165 = scmp.eq.s32.totalorder %s24, 0
      %p166 = por %p164, %p165
      %p167 = scmp.le.s32.totalorder 1, %s18
      %p168 = scmp.lt.s32.totalorder %s18, 3
      %p169 = pnand %p167, %p168
      %p170 = pneg %p169
      // Predicated region
      $region9: #{_extraction_forward.1} parent=5 // pred_check
        _
      $region10: #{_extraction_forward.1} parent=5 // pred_check_branch
        %172 = sbr.rel (%p169) target = $region12
      $region11: #{_extraction_forward.1} parent=5 // pred_region
        %s173 = ssub.s32 %s18, 1
        // Predicated region
        $region13: #{_extraction_forward.1} parent=11 // pred_check
          %p174 = pneg %p65
        $region14: #{_extraction_forward.1} parent=11 // pred_check_branch
          %176 = sbr.rel (%p174) target = $region16
        $region15: #{_extraction_forward.1} parent=11 // pred_region
          _
        $region16: #{_extraction_forward.1} parent=11 // pred_fallthru
          _
        // Predicated region
        $region17: #{_extraction_forward.1} parent=11 // pred_check
          %p177 = pneg %p86
        $region18: #{_extraction_forward.1} parent=11 // pred_check_branch
          %179 = sbr.rel (%p177) target = $region20
        $region19: #{_extraction_forward.1} parent=11 // pred_region
          _
        $region20: #{_extraction_forward.1} parent=11 // pred_fallthru
          _
        // Predicated region
        $region21: #{_extraction_forward.1} parent=11 // pred_check
          %p180 = pneg %p107
        $region22: #{_extraction_forward.1} parent=11 // pred_check_branch
          %182 = sbr.rel (%p180) target = $region24
        $region23: #{_extraction_forward.1} parent=11 // pred_region
          _
        $region24: #{_extraction_forward.1} parent=11 // pred_fallthru
          _
      $region12: #{_extraction_forward.1} parent=5 // pred_fallthru
        _
      %p183 = scmp.lt.s32.totalorder %s18, 2
      // Predicated region
      $region25: #{_extraction_forward.1} parent=5 // pred_check
        %p184 = pneg %p183
      $region26: #{_extraction_forward.1} parent=5 // pred_check_branch
        %186 = sbr.rel (%p184) target = $region28
      $region27: #{_extraction_forward.1} parent=5 // pred_region
        // Predicated region
        $region29: #{_extraction_forward.1} parent=27 // pred_check
          %p187 = pneg %p38
        $region30: #{_extraction_forward.1} parent=27 // pred_check_branch
          %189 = sbr.rel (%p187) target = $region32
        $region31: #{_extraction_forward.1} parent=27 // pred_region
          %p190 = scmp.lt.s32.totalorder %s18, 1
          %s191 = scalar_select %p190, %s18, 1
          %s192 = smul.addr %s191, 3
          %s193 = smul.addr %s192, 8
          %s194 = scalar_lea.vmem %s0, %s193
        $region32: #{_extraction_forward.1} parent=27 // pred_fallthru
          _
      $region28: #{_extraction_forward.1} parent=5 // pred_fallthru
        _
      %p195 = scmp.le.s32.totalorder 1, %s18
      %p196 = scmp.lt.s32.totalorder %s18, 3
      %p197 = pnand %p195, %p196
      %p198 = pneg %p197
      // Predicated region
      $region33: #{_extraction_forward.1} parent=5 // pred_check
        _
      $region34: #{_extraction_forward.1} parent=5 // pred_check_branch
        %200 = sbr.rel (%p197) target = $region36
      $region35: #{_extraction_forward.1} parent=5 // pred_region
        %s201 = ssub.s32 %s18, 1
        %p202 = scmp.lt.s32.totalorder %s23, 1
        %s203 = scalar_select %p202, %s23, 1
        %s204 = smul.addr %s203, 3
        %s205 = smul.addr %s204, 8
        %s206 = scalar_lea.vmem %s0, %s205
        %p207 = pneg %p44
        %p208 = pneg %p41
        %p209 = pneg %p65
        %p210 = pneg %p62
        %p211 = pneg %p86
        %p212 = pneg %p83
        %p213 = pneg %p107
        %p214 = pneg %p104
        %p215 = pneg %p133
        %p216 = pneg %p130
        %s217 = sand.u32 %s120, 1
        %s218 = scalar_lea.sflag [#allocation5], %s217
        %s219 = sand.u32 %s120, 1
        %s220 = smul.addr %s219, 8
        %s221 = scalar_lea.vmem [#allocation4], %s220
        %p222 = pneg %p159
        %p223 = pneg %p156
        %s224 = sand.u32 %s146, 1
        %s225 = scalar_lea.sflag [#allocation7], %s224
        %s226 = sand.u32 %s146, 1
        %s227 = smul.addr %s226, 16
        %s228 = scalar_lea.vmem [#allocation6], %s227
        %p229 = scmp.lt.s32.totalorder %s23, 1
        %s230 = scalar_select %p229, %s23, 1
        %s231 = smul.addr %s230, 3
        %s232 = smul.addr %s231, 8
        %s233 = scalar_lea.vmem %s0, %s232
        %v234 = vld [vmem:[%s3] sm:$0x7]
        %v235 = vld [vmem:[%s2] sm:$0xff]
        %v236 = vld [vmem:[%s233] sm:$0xff]
        %v237 = vld [vmem:[%s233 + $0x8] sm:$0xff]
        %v238 = vld [vmem:[%s233 + $0x10] sm:$0xff]
        %v239 = vrot.slane %v236, 4
        %v240 = vadd.f32 %v236, %v239
        %v241 = vrot.slane %v240, 2
        %v242 = vadd.f32 %v240, %v241
        %v243 = vrot.slane %v242, 1
        %v244 = vadd.f32 %v242, %v243
        %v245 = vrot.slane %v237, 4
        %v246 = vadd.f32 %v237, %v245
        %v247 = vrot.slane %v246, 2
        %v248 = vadd.f32 %v246, %v247
        %v249 = vrot.slane %v248, 1
        %v250 = vadd.f32 %v248, %v249
        %vm251 = vcmask 867328
        %v252 = vsel %vm251, %v238, 0.0
        %v253 = vrot.slane %v252, 4
        %v254 = vadd.f32 %v252, %v253
        %v255 = vrot.slane %v254, 2
        %v256 = vadd.f32 %v254, %v255
        %v257 = vrot.slane %v256, 1
        %v258 = vadd.f32 %v256, %v257
        %v259 = vrcp.pop 8.0
        %v260 = vmul.f32 %v244, %v259
        %v261 = vmul.f32 %v250, %v259
        %v262 = vmul.f32 %v258, %v259
        %v263 = vsub.f32 %v236, %v260
        %v264 = vsub.f32 %v237, %v261
        %v265 = vsub.f32 %v238, %v262
        %v266 = vmul.f32 %v263, %v263
        %v267 = vmul.f32 %v264, %v264
        %v268 = vmul.f32 %v265, %v265
        %v269 = vrot.slane %v266, 4
        %v270 = vadd.f32 %v266, %v269
        %v271 = vrot.slane %v270, 2
        %v272 = vadd.f32 %v270, %v271
        %v273 = vrot.slane %v272, 1
        %v274 = vadd.f32 %v272, %v273
        %v275 = vrot.slane %v267, 4
        %v276 = vadd.f32 %v267, %v275
        %v277 = vrot.slane %v276, 2
        %v278 = vadd.f32 %v276, %v277
        %v279 = vrot.slane %v278, 1
        %v280 = vadd.f32 %v278, %v279
        %v281 = vsel %vm251, %v268, 0.0
        %v282 = vrot.slane %v281, 4
        %v283 = vadd.f32 %v281, %v282
        %v284 = vrot.slane %v283, 2
        %v285 = vadd.f32 %v283, %v284
        %v286 = vrot.slane %v285, 1
        %v287 = vadd.f32 %v285, %v286
        %v288 = vadd.f32 %v274, 4.9303807e-32
        %v289 = vadd.f32 %v280, 4.9303807e-32
        %v290 = vadd.f32 %v287, 4.9303807e-32
        %v291 = vrsqrt.pop %v288
        %v292 = vrsqrt.pop %v289
        %v293 = vrsqrt.pop %v290
        %v294 = vmul.f32 %v263, %v291
        %v295 = vmul.f32 %v264, %v292
        %v296 = vmul.f32 %v265, %v293
        %297 = vst [vmem:[#allocation2] sm:$0xff] %v294
        %298 = vst [vmem:[#allocation2 + $0x8] sm:$0xff] %v295
        %vm299 = vcmask 556032
        %300 = vst.msk [vmem:[#allocation2 + $0x10] sm:$0xff] %vm299, %v296
        %301 = vst [vmem:[#allocation2 + $0xd8] sm:$0xff] %v236
        %302 = vst [vmem:[#allocation2 + $0xe0] sm:$0xff] %v237
        %303 = vst.msk [vmem:[#allocation2 + $0xe8] sm:$0xff] %vm299, %v238
        %307 = vrot.lane.b32.xlu0 %v294, 127
        %v308 = vpop.permute.xlu0 %307
        %309 = vrot.lane.b32.xlu0 %v295, 127
        %v310 = vpop.permute.xlu0 %309
        %311 = vrot.lane.b32.xlu0 %v296, 127
        %v312 = vpop.permute.xlu0 %311
        %vm313 = vcmask 1039360
        %v314 = vsel %vm313, %v308, %v310
        %v315 = vsel %vm313, %v310, %v312
        %319 = vst [vmem:[#allocation2 + $0x18] sm:$0xff] %v314
        %320 = vst [vmem:[#allocation2 + $0x20] sm:$0xff] %v315
        %321 = vst.msk [vmem:[#allocation2 + $0x28] sm:$0xff] %vm299, %v312
        %325 = vrot.lane.b32.xlu0 %v236, 127
        %v326 = vpop.permute.xlu0 %325
        %327 = vrot.lane.b32.xlu0 %v237, 127
        %v328 = vpop.permute.xlu0 %327
        %329 = vrot.lane.b32.xlu0 %v238, 127
        %v330 = vpop.permute.xlu0 %329
        %v331 = vsel %vm313, %v326, %v328
        %v332 = vsel %vm313, %v328, %v330
        %336 = vst [vmem:[#allocation2 + $0xf0] sm:$0xff] %v331
        %337 = vst [vmem:[#allocation2 + $0xf8] sm:$0xff] %v332
        %338 = vst.msk [vmem:[#allocation2 + $0x100] sm:$0xff] %vm299, %v330
        %339 = vrot.lane.b32.xlu0 %v294, 126
        %v340 = vpop.permute.xlu0 %339
        %341 = vrot.lane.b32.xlu0 %v295, 126
        %v342 = vpop.permute.xlu0 %341
        %343 = vrot.lane.b32.xlu0 %v296, 126
        %v344 = vpop.permute.xlu0 %343
        %vm345 = vcmask 1031168
        %v346 = vsel %vm345, %v340, %v342
        %v347 = vsel %vm345, %v342, %v344
        %351 = vst [vmem:[#allocation2 + $0x30] sm:$0xff] %v346
        %352 = vst [vmem:[#allocation2 + $0x38] sm:$0xff] %v347
        %353 = vst.msk [vmem:[#allocation2 + $0x40] sm:$0xff] %vm299, %v344
        %354 = vrot.lane.b32.xlu0 %v236, 126
        %v355 = vpop.permute.xlu0 %354
        %356 = vrot.lane.b32.xlu0 %v237, 126
        %v357 = vpop.permute.xlu0 %356
        %358 = vrot.lane.b32.xlu0 %v238, 126
        %v359 = vpop.permute.xlu0 %358
        %v360 = vsel %vm345, %v355, %v357
        %v361 = vsel %vm345, %v357, %v359
        %365 = vst [vmem:[#allocation2 + $0x108] sm:$0xff] %v360
        %366 = vst [vmem:[#allocation2 + $0x110] sm:$0xff] %v361
        %367 = vst.msk [vmem:[#allocation2 + $0x118] sm:$0xff] %vm299, %v359
        %368 = vrot.lane.b32.xlu0 %v294, 110
        %v369 = vpop.permute.xlu0 %368
        %370 = vrot.lane.b32.xlu0 %v295, 110
        %v371 = vpop.permute.xlu0 %370
        %372 = vrot.lane.b32.xlu0 %v296, 110
        %v373 = vpop.permute.xlu0 %372
        %vm374 = vcmask 900096
        %v375 = vsel %vm374, %v369, %v371
        %v376 = vsel %vm374, %v371, %v373
        %380 = vst [vmem:[#allocation2 + $0x48] sm:$0xff] %v375
        %381 = vst [vmem:[#allocation2 + $0x50] sm:$0xff] %v376
        %382 = vst.msk [vmem:[#allocation2 + $0x58] sm:$0xff] %vm299, %v373
        %383 = vrot.lane.b32.xlu0 %v236, 110
        %v384 = vpop.permute.xlu0 %383
        %385 = vrot.lane.b32.xlu0 %v237, 110
        %v386 = vpop.permute.xlu0 %385
        %387 = vrot.lane.b32.xlu0 %v238, 110
        %v388 = vpop.permute.xlu0 %387
        %v389 = vsel %vm374, %v384, %v386
        %v390 = vsel %vm374, %v386, %v388
        %394 = vst [vmem:[#allocation2 + $0x120] sm:$0xff] %v389
        %395 = vst [vmem:[#allocation2 + $0x128] sm:$0xff] %v390
        %396 = vst.msk [vmem:[#allocation2 + $0x130] sm:$0xff] %vm299, %v388
        %397 = vrot.lane.b32.xlu0 %v294, 109
        %v398 = vpop.permute.xlu0 %397
        %399 = vrot.lane.b32.xlu0 %v295, 109
        %v400 = vpop.permute.xlu0 %399
        %401 = vrot.lane.b32.xlu0 %v296, 109
        %v402 = vpop.permute.xlu0 %401
        %vm403 = vcmask 891904
        %v404 = vsel %vm403, %v398, %v400
        %v405 = vsel %vm403, %v400, %v402
        %409 = vst [vmem:[#allocation2 + $0x60] sm:$0xff] %v404
        %410 = vst [vmem:[#allocation2 + $0x68] sm:$0xff] %v405
        %411 = vst.msk [vmem:[#allocation2 + $0x70] sm:$0xff] %vm299, %v402
        %412 = vrot.lane.b32.xlu0 %v236, 109
        %v413 = vpop.permute.xlu0 %412
        %414 = vrot.lane.b32.xlu0 %v237, 109
        %v415 = vpop.permute.xlu0 %414
        %416 = vrot.lane.b32.xlu0 %v238, 109
        %v417 = vpop.permute.xlu0 %416
        %v418 = vsel %vm403, %v413, %v415
        %v419 = vsel %vm403, %v415, %v417
        %423 = vst [vmem:[#allocation2 + $0x138] sm:$0xff] %v418
        %424 = vst [vmem:[#allocation2 + $0x140] sm:$0xff] %v419
        %425 = vst.msk [vmem:[#allocation2 + $0x148] sm:$0xff] %vm299, %v417
        %426 = vrot.lane.b32.xlu0 %v294, 108
        %v427 = vpop.permute.xlu0 %426
        %428 = vrot.lane.b32.xlu0 %v295, 108
        %v429 = vpop.permute.xlu0 %428
        %430 = vrot.lane.b32.xlu0 %v296, 108
        %v431 = vpop.permute.xlu0 %430
        %vm432 = vcmask 883712
        %v433 = vsel %vm432, %v427, %v429
        %v434 = vsel %vm432, %v429, %v431
        %438 = vst [vmem:[#allocation2 + $0x78] sm:$0xff] %v433
        %439 = vst [vmem:[#allocation2 + $0x80] sm:$0xff] %v434
        %440 = vst.msk [vmem:[#allocation2 + $0x88] sm:$0xff] %vm299, %v431
        %441 = vrot.lane.b32.xlu0 %v236, 108
        %v442 = vpop.permute.xlu0 %441
        %443 = vrot.lane.b32.xlu0 %v237, 108
        %v444 = vpop.permute.xlu0 %443
        %445 = vrot.lane.b32.xlu0 %v238, 108
        %v446 = vpop.permute.xlu0 %445
        %v447 = vsel %vm432, %v442, %v444
        %v448 = vsel %vm432, %v444, %v446
        %452 = vst [vmem:[#allocation2 + $0x150] sm:$0xff] %v447
        %453 = vst [vmem:[#allocation2 + $0x158] sm:$0xff] %v448
        %454 = vst.msk [vmem:[#allocation2 + $0x160] sm:$0xff] %vm299, %v446
        %455 = vrot.lane.b32.xlu0 %v294, 92
        %v456 = vpop.permute.xlu0 %455
        %457 = vrot.lane.b32.xlu0 %v295, 92
        %v458 = vpop.permute.xlu0 %457
        %459 = vrot.lane.b32.xlu0 %v296, 92
        %v460 = vpop.permute.xlu0 %459
        %vm461 = vcmask 752640
        %v462 = vsel %vm461, %v456, %v458
        %v463 = vsel %vm461, %v458, %v460
        %467 = vst [vmem:[#allocation2 + $0x90] sm:$0xff] %v462
        %468 = vst [vmem:[#allocation2 + $0x98] sm:$0xff] %v463
        %469 = vst.msk [vmem:[#allocation2 + $0xa0] sm:$0xff] %vm299, %v460
        %470 = vrot.lane.b32.xlu0 %v236, 92
        %v471 = vpop.permute.xlu0 %470
        %472 = vrot.lane.b32.xlu0 %v237, 92
        %v473 = vpop.permute.xlu0 %472
        %474 = vrot.lane.b32.xlu0 %v238, 92
        %v475 = vpop.permute.xlu0 %474
        %v476 = vsel %vm461, %v471, %v473
        %v477 = vsel %vm461, %v473, %v475
        %481 = vst [vmem:[#allocation2 + $0x168] sm:$0xff] %v476
        %482 = vst [vmem:[#allocation2 + $0x170] sm:$0xff] %v477
        %483 = vst.msk [vmem:[#allocation2 + $0x178] sm:$0xff] %vm299, %v475
        %484 = vrot.lane.b32.xlu0 %v294, 91
        %v485 = vpop.permute.xlu0 %484
        %486 = vrot.lane.b32.xlu0 %v295, 91
        %v487 = vpop.permute.xlu0 %486
        %488 = vrot.lane.b32.xlu0 %v296, 91
        %v489 = vpop.permute.xlu0 %488
        %vm490 = vcmask 744448
        %v491 = vsel %vm490, %v485, %v487
        %v492 = vsel %vm490, %v487, %v489
        %496 = vst [vmem:[#allocation2 + $0xa8] sm:$0xff] %v491
        %497 = vst [vmem:[#allocation2 + $0xb0] sm:$0xff] %v492
        %498 = vst.msk [vmem:[#allocation2 + $0xb8] sm:$0xff] %vm299, %v489
        %499 = vrot.lane.b32.xlu0 %v236, 91
        %v500 = vpop.permute.xlu0 %499
        %501 = vrot.lane.b32.xlu0 %v237, 91
        %v502 = vpop.permute.xlu0 %501
        %503 = vrot.lane.b32.xlu0 %v238, 91
        %v504 = vpop.permute.xlu0 %503
        %v505 = vsel %vm490, %v500, %v502
        %v506 = vsel %vm490, %v502, %v504
        %510 = vst [vmem:[#allocation2 + $0x180] sm:$0xff] %v505
        %511 = vst [vmem:[#allocation2 + $0x188] sm:$0xff] %v506
        %512 = vst.msk [vmem:[#allocation2 + $0x190] sm:$0xff] %vm299, %v504
        %513 = vrot.lane.b32.xlu0 %v294, 90
        %v514 = vpop.permute.xlu0 %513
        %515 = vrot.lane.b32.xlu0 %v295, 90
        %v516 = vpop.permute.xlu0 %515
        %517 = vrot.lane.b32.xlu0 %v296, 90
        %v518 = vpop.permute.xlu0 %517
        %vm519 = vcmask 736256
        %v520 = vsel %vm519, %v514, %v516
        %v521 = vsel %vm519, %v516, %v518
        %525 = vst [vmem:[#allocation2 + $0xc0] sm:$0xff] %v520
        %526 = vst [vmem:[#allocation2 + $0xc8] sm:$0xff] %v521
        %527 = vst.msk [vmem:[#allocation2 + $0xd0] sm:$0xff] %vm299, %v518
        %528 = vrot.lane.b32.xlu0 %v236, 90
        %v529 = vpop.permute.xlu0 %528
        %530 = vrot.lane.b32.xlu0 %v237, 90
        %v531 = vpop.permute.xlu0 %530
        %532 = vrot.lane.b32.xlu0 %v238, 90
        %v533 = vpop.permute.xlu0 %532
        %v534 = vsel %vm519, %v529, %v531
        %v535 = vsel %vm519, %v531, %v533
        %539 = vst [vmem:[#allocation2 + $0x198] sm:$0xff] %v534
        %540 = vst [vmem:[#allocation2 + $0x1a0] sm:$0xff] %v535
        %541 = vst.msk [vmem:[#allocation2 + $0x1a8] sm:$0xff] %vm299, %v533
        %v542 = vld [vmem:[%s1] sm:$0xff]
        %v543 = vld [vmem:[%s1 + $0x8] sm:$0xff]
        %v544 = vld [vmem:[%s1 + $0x10] sm:$0xff]
        %v545 = vld [vmem:[%s1 + $0x18] sm:$0xff]
        %v546 = vld [vmem:[#allocation2] sm:$0xff]
        %v547 = vld [vmem:[#allocation2 + $0x8] sm:$0xff]
        %v548 = vld [vmem:[#allocation2 + $0x10] sm:$0xff]
        %v549 = vld [vmem:[#allocation2 + $0x18] sm:$0xff]
        %v550 = vld [vmem:[#allocation2 + $0x20] sm:$0xff]
        %v551 = vld [vmem:[#allocation2 + $0x28] sm:$0xff]
        %v552 = vld [vmem:[#allocation2 + $0x30] sm:$0xff]
        %v553 = vld [vmem:[#allocation2 + $0x38] sm:$0xff]
        %v554 = vld [vmem:[#allocation2 + $0x40] sm:$0xff]
        %v555 = vld [vmem:[#allocation2 + $0x48] sm:$0xff]
        %v556 = vld [vmem:[#allocation2 + $0x50] sm:$0xff]
        %v557 = vld [vmem:[#allocation2 + $0x58] sm:$0xff]
        %v558 = vld [vmem:[#allocation2 + $0x60] sm:$0xff]
        %v559 = vld [vmem:[#allocation2 + $0x68] sm:$0xff]
        %v560 = vld [vmem:[#allocation2 + $0x70] sm:$0xff]
        %v561 = vld [vmem:[#allocation2 + $0x78] sm:$0xff]
        %v562 = vld [vmem:[#allocation2 + $0x80] sm:$0xff]
        %v563 = vld [vmem:[#allocation2 + $0x88] sm:$0xff]
        %v564 = vld [vmem:[#allocation2 + $0x90] sm:$0xff]
        %v565 = vld [vmem:[#allocation2 + $0x98] sm:$0xff]
        %v566 = vld [vmem:[#allocation2 + $0xa0] sm:$0xff]
        %v567 = vld [vmem:[#allocation2 + $0xa8] sm:$0xff]
        %v568 = vld [vmem:[#allocation2 + $0xb0] sm:$0xff]
        %v569 = vld [vmem:[#allocation2 + $0xb8] sm:$0xff]
        %v570 = vld [vmem:[#allocation2 + $0xc0] sm:$0xff]
        %v571 = vld [vmem:[#allocation2 + $0xc8] sm:$0xff]
        %v572 = vld [vmem:[#allocation2 + $0xd0] sm:$0xff]
        %v573 = vld [vmem:[#allocation2 + $0xd8] sm:$0xff]
        %v574 = vld [vmem:[#allocation2 + $0xe0] sm:$0xff]
        %v575 = vld [vmem:[#allocation2 + $0xe8] sm:$0xff]
        %v576 = vld [vmem:[#allocation2 + $0xf0] sm:$0xff]
        %v577 = vld [vmem:[#allocation2 + $0xf8] sm:$0xff]
        %v578 = vld [vmem:[#allocation2 + $0x100] sm:$0xff]
        %v579 = vld [vmem:[#allocation2 + $0x108] sm:$0xff]
        %v580 = vld [vmem:[#allocation2 + $0x110] sm:$0xff]
        %v581 = vld [vmem:[#allocation2 + $0x118] sm:$0xff]
        %v582 = vld [vmem:[#allocation2 + $0x120] sm:$0xff]
        %v583 = vld [vmem:[#allocation2 + $0x128] sm:$0xff]
        %v584 = vld [vmem:[#allocation2 + $0x130] sm:$0xff]
        %v585 = vld [vmem:[#allocation2 + $0x138] sm:$0xff]
        %v586 = vld [vmem:[#allocation2 + $0x140] sm:$0xff]
        %v587 = vld [vmem:[#allocation2 + $0x148] sm:$0xff]
        %v588 = vld [vmem:[#allocation2 + $0x150] sm:$0xff]
        %v589 = vld [vmem:[#allocation2 + $0x158] sm:$0xff]
        %v590 = vld [vmem:[#allocation2 + $0x160] sm:$0xff]
        %v591 = vld [vmem:[#allocation2 + $0x168] sm:$0xff]
        %v592 = vld [vmem:[#allocation2 + $0x170] sm:$0xff]
        %v593 = vld [vmem:[#allocation2 + $0x178] sm:$0xff]
        %v594 = vld [vmem:[#allocation2 + $0x180] sm:$0xff]
        %v595 = vld [vmem:[#allocation2 + $0x188] sm:$0xff]
        %v596 = vld [vmem:[#allocation2 + $0x190] sm:$0xff]
        %v597 = vld [vmem:[#allocation2 + $0x198] sm:$0xff]
        %v598 = vld [vmem:[#allocation2 + $0x1a0] sm:$0xff]
        %v599 = vld [vmem:[#allocation2 + $0x1a8] sm:$0xff]
        %vm600 = vcmask 130048
        %v602 = vsel %vm600, %v543, 0
        %v605 = vsel %vm600, %v545, 0
        %v607 = vand.u32 %v592, 4294901760
        %608 = vmatprep.subr.mxu0 %v607
        %v609 = vand.u32 %v591, 4294901760
        %610 = vmatpush1.msra.mxu0 %v609
        %v611 = vand.u32 %v589, 4294901760
        %612 = vmatprep.subr.mxu0 %v611
        %v613 = vand.u32 %v588, 4294901760
        %614 = vmatpush1.msra.mxu0 %v613
        %v615 = vand.u32 %v586, 4294901760
        %616 = vmatprep.subr.mxu0 %v615
        %v617 = vand.u32 %v585, 4294901760
        %618 = vmatpush1.msra.mxu0 %v617
        %v619 = vand.u32 %v583, 4294901760
        %620 = vmatprep.subr.mxu0 %v619
        %v621 = vand.u32 %v582, 4294901760
        %622 = vmatpush1.msra.mxu0 %v621
        %v623 = vand.u32 %v580, 4294901760
        %624 = vmatprep.subr.mxu0 %v623
        %v625 = vand.u32 %v579, 4294901760
        %626 = vmatpush1.msra.mxu0 %v625
        %v627 = vand.u32 %v577, 4294901760
        %628 = vmatprep.subr.mxu0 %v627
        %v629 = vand.u32 %v576, 4294901760
        %630 = vmatpush1.msra.mxu0 %v629
        %v631 = vand.u32 %v574, 4294901760
        %632 = vmatprep.subr.mxu0 %v631
        %v633 = vand.u32 %v573, 4294901760
        %634 = vmatpush1.msra.mxu0 %v633
        %v635 = vand.u32 %v571, 4294901760
        %636 = vmatprep.subr.mxu0 %v635
        %v637 = vand.u32 %v570, 4294901760
        %638 = vmatpush1.msra.mxu0 %v637
        %v639 = vand.u32 %v568, 4294901760
        %640 = vmatprep.subr.mxu0 %v639
        %v641 = vand.u32 %v567, 4294901760
        %642 = vmatpush1.msra.mxu0 %v641
        %v643 = vand.u32 %v565, 4294901760
        %644 = vmatprep.subr.mxu0 %v643
        %v645 = vand.u32 %v564, 4294901760
        %646 = vmatpush1.msra.mxu0 %v645
        %v647 = vand.u32 %v562, 4294901760
        %648 = vmatprep.subr.mxu0 %v647
        %v649 = vand.u32 %v561, 4294901760
        %650 = vmatpush1.msra.mxu0 %v649
        %v651 = vand.u32 %v559, 4294901760
        %652 = vmatprep.subr.mxu0 %v651
        %v653 = vand.u32 %v558, 4294901760
        %654 = vmatpush1.msra.mxu0 %v653
        %v655 = vand.u32 %v556, 4294901760
        %656 = vmatprep.subr.mxu0 %v655
        %v657 = vand.u32 %v555, 4294901760
        %658 = vmatpush1.msra.mxu0 %v657
        %v659 = vand.u32 %v553, 4294901760
        %660 = vmatprep.subr.mxu0 %v659
        %v661 = vand.u32 %v552, 4294901760
        %662 = vmatpush1.msra.mxu0 %v661
        %v663 = vand.u32 %v550, 4294901760
        %664 = vmatprep.subr.mxu0 %v663
        %v665 = vand.u32 %v549, 4294901760
        %666 = vmatpush1.msra.mxu0 %v665
        %v667 = vand.u32 %v547, 4294901760
        %668 = vmatprep.subr.mxu0 %v667
        %v669 = vand.u32 %v546, 4294901760
        %670 = vmatpush1.msra.mxu0 %v669
        %671 = vmatprep.subr.mxu0 0.0
        %672 = vmatpush2.msra.mxu0 0.0
        %673 = vmatprep.subr.mxu0 0.0
        %674 = vmatpush2.msra.mxu0 0.0
        %675 = vmatprep.subr.mxu0 0.0
        %676 = vmatpush2.msra.mxu0 0.0
        %677 = vmatprep.subr.mxu0 0.0
        %678 = vmatpush2.msra.mxu0 0.0
        %679 = vmatprep.subr.mxu0 0.0
        %680 = vmatpush2.msra.mxu0 0.0
        %681 = vmatprep.subr.mxu0 0.0
        %682 = vmatpush2.msra.mxu0 0.0
        %683 = vmatprep.subr.mxu0 0.0
        %684 = vmatpush2.msra.mxu0 0.0
        %685 = vmatprep.subr.mxu0 0.0
        %686 = vmatpush2.msra.mxu0 0.0
        %687 = vmatprep.subr.mxu0 0.0
        %688 = vmatpush2.msra.mxu0 0.0
        %689 = vmatprep.subr.mxu0 0.0
        %690 = vmatpush2.msra.mxu0 0.0
        %691 = vmatprep.subr.mxu0 0.0
        %692 = vmatpush2.msra.mxu0 0.0
        %693 = vmatprep.subr.mxu0 0.0
        %694 = vmatpush2.msra.mxu0 0.0
        %695 = vmatprep.subr.mxu0 0.0
        %696 = vmatpush2.msra.mxu0 0.0
        %697 = vmatprep.subr.mxu0 0.0
        %698 = vmatpush2.msra.mxu0 0.0
        %v699 = vand.u32 %v598, 4294901760
        %700 = vmatprep.subr.mxu0 %v699
        %v701 = vand.u32 %v597, 4294901760
        %702 = vmatpush2.msra.mxu0 %v701
        %v703 = vand.u32 %v595, 4294901760
        %704 = vmatprep.subr.mxu0 %v703
        %v705 = vand.u32 %v594, 4294901760
        %706 = vmatpush2.msra.mxu0 %v705
        %v707 = vand.u32 %v602, 4294901760
        %v708 = vsub.f32 %v602, %v707
        %v709 = vand.u32 %v708, 4294901760
        %v710 = vsub.f32 %v708, %v709
        %v711 = vand.u32 %v710, 4294901760
        %712 = vmatprep.mubr.f32.mxu0 %v711
        %v713 = vand.u32 %v542, 4294901760
        %v714 = vsub.f32 %v542, %v713
        %v715 = vand.u32 %v714, 4294901760
        %v716 = vsub.f32 %v714, %v715
        %v717 = vand.u32 %v716, 4294901760
        %718 = vmatmul.mubr.f32.gmra.mxu0 %v717
        %v719 = vpop.f32.mrf.mxu0
        %v720 = vadd.f32 0.0, %v719
        %v721 = vpop.f32.mrf.mxu0
        %v722 = vadd.f32 0.0, %v721
        %v723 = vand.u32 %v605, 4294901760
        %v724 = vsub.f32 %v605, %v723
        %v725 = vand.u32 %v724, 4294901760
        %v726 = vsub.f32 %v724, %v725
        %v727 = vand.u32 %v726, 4294901760
        %728 = vmatprep.mubr.f32.mxu0 %v727
        %v729 = vand.u32 %v544, 4294901760
        %v730 = vsub.f32 %v544, %v729
        %v731 = vand.u32 %v730, 4294901760
        %v732 = vsub.f32 %v730, %v731
        %v733 = vand.u32 %v732, 4294901760
        %734 = vmatmul.mubr.f32.gmra.mxu0 %v733
        %v735 = vpop.f32.mrf.mxu0
        %v736 = vadd.f32 0.0, %v735
        %v737 = vpop.f32.mrf.mxu0
        %v738 = vadd.f32 0.0, %v737
        %739 = vdwg.mxu0
        %v740 = vand.u32 %v592, 4294901760
        %v741 = vsub.f32 %v592, %v740
        %v742 = vand.u32 %v741, 4294901760
        %v743 = vsub.f32 %v741, %v742
        %v744 = vand.u32 %v743, 4294901760
        %745 = vmatprep.subr.mxu0 %v744
        %v746 = vand.u32 %v591, 4294901760
        %v747 = vsub.f32 %v591, %v746
        %v748 = vand.u32 %v747, 4294901760
        %v749 = vsub.f32 %v747, %v748
        %v750 = vand.u32 %v749, 4294901760
        %751 = vmatpush1.msra.mxu0 %v750
        %v752 = vand.u32 %v589, 4294901760
        %v753 = vsub.f32 %v589, %v752
        %v754 = vand.u32 %v753, 4294901760
        %v755 = vsub.f32 %v753, %v754
        %v756 = vand.u32 %v755, 4294901760
        %757 = vmatprep.subr.mxu0 %v756
        %v758 = vand.u32 %v588, 4294901760
        %v759 = vsub.f32 %v588, %v758
        %v760 = vand.u32 %v759, 4294901760
        %v761 = vsub.f32 %v759, %v760
        %v762 = vand.u32 %v761, 4294901760
        %763 = vmatpush1.msra.mxu0 %v762
        %v764 = vand.u32 %v586, 4294901760
        %v765 = vsub.f32 %v586, %v764
        %v766 = vand.u32 %v765, 4294901760
        %v767 = vsub.f32 %v765, %v766
        %v768 = vand.u32 %v767, 4294901760
        %769 = vmatprep.subr.mxu0 %v768
        %v770 = vand.u32 %v585, 4294901760
        %v771 = vsub.f32 %v585, %v770
        %v772 = vand.u32 %v771, 4294901760
        %v773 = vsub.f32 %v771, %v772
        %v774 = vand.u32 %v773, 4294901760
        %775 = vmatpush1.msra.mxu0 %v774
        %v776 = vand.u32 %v583, 4294901760
        %v777 = vsub.f32 %v583, %v776
        %v778 = vand.u32 %v777, 4294901760
        %v779 = vsub.f32 %v777, %v778
        %v780 = vand.u32 %v779, 4294901760
        %781 = vmatprep.subr.mxu0 %v780
        %v782 = vand.u32 %v582, 4294901760
        %v783 = vsub.f32 %v582, %v782
        %v784 = vand.u32 %v783, 4294901760
        %v785 = vsub.f32 %v783, %v784
        %v786 = vand.u32 %v785, 4294901760
        %787 = vmatpush1.msra.mxu0 %v786
        %v788 = vand.u32 %v580, 4294901760
        %v789 = vsub.f32 %v580, %v788
        %v790 = vand.u32 %v789, 4294901760
        %v791 = vsub.f32 %v789, %v790
        %v792 = vand.u32 %v791, 4294901760
        %793 = vmatprep.subr.mxu0 %v792
        %v794 = vand.u32 %v579, 4294901760
        %v795 = vsub.f32 %v579, %v794
        %v796 = vand.u32 %v795, 4294901760
        %v797 = vsub.f32 %v795, %v796
        %v798 = vand.u32 %v797, 4294901760
        %799 = vmatpush1.msra.mxu0 %v798
        %v800 = vand.u32 %v577, 4294901760
        %v801 = vsub.f32 %v577, %v800
        %v802 = vand.u32 %v801, 4294901760
        %v803 = vsub.f32 %v801, %v802
        %v804 = vand.u32 %v803, 4294901760
        %805 = vmatprep.subr.mxu0 %v804
        %v806 = vand.u32 %v576, 4294901760
        %v807 = vsub.f32 %v576, %v806
        %v808 = vand.u32 %v807, 4294901760
        %v809 = vsub.f32 %v807, %v808
        %v810 = vand.u32 %v809, 4294901760
        %811 = vmatpush1.msra.mxu0 %v810
        %v812 = vand.u32 %v574, 4294901760
        %v813 = vsub.f32 %v574, %v812
        %v814 = vand.u32 %v813, 4294901760
        %v815 = vsub.f32 %v813, %v814
        %v816 = vand.u32 %v815, 4294901760
        %817 = vmatprep.subr.mxu0 %v816
        %v818 = vand.u32 %v573, 4294901760
        %v819 = vsub.f32 %v573, %v818
        %v820 = vand.u32 %v819, 4294901760
        %v821 = vsub.f32 %v819, %v820
        %v822 = vand.u32 %v821, 4294901760
        %823 = vmatpush1.msra.mxu0 %v822
        %v824 = vand.u32 %v571, 4294901760
        %v825 = vsub.f32 %v571, %v824
        %v826 = vand.u32 %v825, 4294901760
        %v827 = vsub.f32 %v825, %v826
        %v828 = vand.u32 %v827, 4294901760
        %829 = vmatprep.subr.mxu0 %v828
        %v830 = vand.u32 %v570, 4294901760
        %v831 = vsub.f32 %v570, %v830
        %v832 = vand.u32 %v831, 4294901760
        %v833 = vsub.f32 %v831, %v832
        %v834 = vand.u32 %v833, 4294901760
        %835 = vmatpush1.msra.mxu0 %v834
        %v836 = vand.u32 %v568, 4294901760
        %v837 = vsub.f32 %v568, %v836
        %v838 = vand.u32 %v837, 4294901760
        %v839 = vsub.f32 %v837, %v838
        %v840 = vand.u32 %v839, 4294901760
        %841 = vmatprep.subr.mxu0 %v840
        %v842 = vand.u32 %v567, 4294901760
        %v843 = vsub.f32 %v567, %v842
        %v844 = vand.u32 %v843, 4294901760
        %v845 = vsub.f32 %v843, %v844
        %v846 = vand.u32 %v845, 4294901760
        %847 = vmatpush1.msra.mxu0 %v846
        %v848 = vand.u32 %v565, 4294901760
        %v849 = vsub.f32 %v565, %v848
        %v850 = vand.u32 %v849, 4294901760
        %v851 = vsub.f32 %v849, %v850
        %v852 = vand.u32 %v851, 4294901760
        %853 = vmatprep.subr.mxu0 %v852
        %v854 = vand.u32 %v564, 4294901760
        %v855 = vsub.f32 %v564, %v854
        %v856 = vand.u32 %v855, 4294901760
        %v857 = vsub.f32 %v855, %v856
        %v858 = vand.u32 %v857, 4294901760
        %859 = vmatpush1.msra.mxu0 %v858
        %v860 = vand.u32 %v562, 4294901760
        %v861 = vsub.f32 %v562, %v860
        %v862 = vand.u32 %v861, 4294901760
        %v863 = vsub.f32 %v861, %v862
        %v864 = vand.u32 %v863, 4294901760
        %865 = vmatprep.subr.mxu0 %v864
        %v866 = vand.u32 %v561, 4294901760
        %v867 = vsub.f32 %v561, %v866
        %v868 = vand.u32 %v867, 4294901760
        %v869 = vsub.f32 %v867, %v868
        %v870 = vand.u32 %v869, 4294901760
        %871 = vmatpush1.msra.mxu0 %v870
        %v872 = vand.u32 %v559, 4294901760
        %v873 = vsub.f32 %v559, %v872
        %v874 = vand.u32 %v873, 4294901760
        %v875 = vsub.f32 %v873, %v874
        %v876 = vand.u32 %v875, 4294901760
        %877 = vmatprep.subr.mxu0 %v876
        %v878 = vand.u32 %v558, 4294901760
        %v879 = vsub.f32 %v558, %v878
        %v880 = vand.u32 %v879, 4294901760
        %v881 = vsub.f32 %v879, %v880
        %v882 = vand.u32 %v881, 4294901760
        %883 = vmatpush1.msra.mxu0 %v882
        %v884 = vand.u32 %v556, 4294901760
        %v885 = vsub.f32 %v556, %v884
        %v886 = vand.u32 %v885, 4294901760
        %v887 = vsub.f32 %v885, %v886
        %v888 = vand.u32 %v887, 4294901760
        %889 = vmatprep.subr.mxu0 %v888
        %v890 = vand.u32 %v555, 4294901760
        %v891 = vsub.f32 %v555, %v890
        %v892 = vand.u32 %v891, 4294901760
        %v893 = vsub.f32 %v891, %v892
        %v894 = vand.u32 %v893, 4294901760
        %895 = vmatpush1.msra.mxu0 %v894
        %v896 = vand.u32 %v553, 4294901760
        %v897 = vsub.f32 %v553, %v896
        %v898 = vand.u32 %v897, 4294901760
        %v899 = vsub.f32 %v897, %v898
        %v900 = vand.u32 %v899, 4294901760
        %901 = vmatprep.subr.mxu0 %v900
        %v902 = vand.u32 %v552, 4294901760
        %v903 = vsub.f32 %v552, %v902
        %v904 = vand.u32 %v903, 4294901760
        %v905 = vsub.f32 %v903, %v904
        %v906 = vand.u32 %v905, 4294901760
        %907 = vmatpush1.msra.mxu0 %v906
        %v908 = vand.u32 %v550, 4294901760
        %v909 = vsub.f32 %v550, %v908
        %v910 = vand.u32 %v909, 4294901760
        %v911 = vsub.f32 %v909, %v910
        %v912 = vand.u32 %v911, 4294901760
        %913 = vmatprep.subr.mxu0 %v912
        %v914 = vand.u32 %v549, 4294901760
        %v915 = vsub.f32 %v549, %v914
        %v916 = vand.u32 %v915, 4294901760
        %v917 = vsub.f32 %v915, %v916
        %v918 = vand.u32 %v917, 4294901760
        %919 = vmatpush1.msra.mxu0 %v918
        %v920 = vand.u32 %v547, 4294901760
        %v921 = vsub.f32 %v547, %v920
        %v922 = vand.u32 %v921, 4294901760
        %v923 = vsub.f32 %v921, %v922
        %v924 = vand.u32 %v923, 4294901760
        %925 = vmatprep.subr.mxu0 %v924
        %v926 = vand.u32 %v546, 4294901760
        %v927 = vsub.f32 %v546, %v926
        %v928 = vand.u32 %v927, 4294901760
        %v929 = vsub.f32 %v927, %v928
        %v930 = vand.u32 %v929, 4294901760
        %931 = vmatpush1.msra.mxu0 %v930
        %932 = vmatprep.subr.mxu0 0.0
        %933 = vmatpush2.msra.mxu0 0.0
        %934 = vmatprep.subr.mxu0 0.0
        %935 = vmatpush2.msra.mxu0 0.0
        %936 = vmatprep.subr.mxu0 0.0
        %937 = vmatpush2.msra.mxu0 0.0
        %938 = vmatprep.subr.mxu0 0.0
        %939 = vmatpush2.msra.mxu0 0.0
        %940 = vmatprep.subr.mxu0 0.0
        %941 = vmatpush2.msra.mxu0 0.0
        %942 = vmatprep.subr.mxu0 0.0
        %943 = vmatpush2.msra.mxu0 0.0
        %944 = vmatprep.subr.mxu0 0.0
        %945 = vmatpush2.msra.mxu0 0.0
        %946 = vmatprep.subr.mxu0 0.0
        %947 = vmatpush2.msra.mxu0 0.0
        %948 = vmatprep.subr.mxu0 0.0
        %949 = vmatpush2.msra.mxu0 0.0
        %950 = vmatprep.subr.mxu0 0.0
        %951 = vmatpush2.msra.mxu0 0.0
        %952 = vmatprep.subr.mxu0 0.0
        %953 = vmatpush2.msra.mxu0 0.0
        %954 = vmatprep.subr.mxu0 0.0
        %955 = vmatpush2.msra.mxu0 0.0
        %956 = vmatprep.subr.mxu0 0.0
        %957 = vmatpush2.msra.mxu0 0.0
        %958 = vmatprep.subr.mxu0 0.0
        %959 = vmatpush2.msra.mxu0 0.0
        %v960 = vand.u32 %v598, 4294901760
        %v961 = vsub.f32 %v598, %v960
        %v962 = vand.u32 %v961, 4294901760
        %v963 = vsub.f32 %v961, %v962
        %v964 = vand.u32 %v963, 4294901760
        %965 = vmatprep.subr.mxu0 %v964
        %v966 = vand.u32 %v597, 4294901760
        %v967 = vsub.f32 %v597, %v966
        %v968 = vand.u32 %v967, 4294901760
        %v969 = vsub.f32 %v967, %v968
        %v970 = vand.u32 %v969, 4294901760
        %971 = vmatpush2.msra.mxu0 %v970
        %v972 = vand.u32 %v595, 4294901760
        %v973 = vsub.f32 %v595, %v972
        %v974 = vand.u32 %v973, 4294901760
        %v975 = vsub.f32 %v973, %v974
        %v976 = vand.u32 %v975, 4294901760
        %977 = vmatprep.subr.mxu0 %v976
        %v978 = vand.u32 %v594, 4294901760
        %v979 = vsub.f32 %v594, %v978
        %v980 = vand.u32 %v979, 4294901760
        %v981 = vsub.f32 %v979, %v980
        %v982 = vand.u32 %v981, 4294901760
        %983 = vmatpush2.msra.mxu0 %v982
        %v984 = vand.u32 %v602, 4294901760
        %985 = vmatprep.mubr.f32.mxu0 %v984
        %v986 = vand.u32 %v542, 4294901760
        %987 = vmatmul.mubr.f32.gmra.mxu0 %v986
        %v988 = vpop.f32.mrf.mxu0
        %v989 = vadd.f32 %v720, %v988
        %v990 = vpop.f32.mrf.mxu0
        %v991 = vadd.f32 %v722, %v990
        %v992 = vand.u32 %v605, 4294901760
        %993 = vmatprep.mubr.f32.mxu0 %v992
        %v994 = vand.u32 %v544, 4294901760
        %995 = vmatmul.mubr.f32.gmra.mxu0 %v994
        %v996 = vpop.f32.mrf.mxu0
        %v997 = vadd.f32 %v736, %v996
        %v998 = vpop.f32.mrf.mxu0
        %v999 = vadd.f32 %v738, %v998
        %1000 = vdwg.mxu0
        %v1001 = vand.u32 %v592, 4294901760
        %v1002 = vsub.f32 %v592, %v1001
        %1003 = vmatprep.subr.mxu0 %v1002
        %v1004 = vand.u32 %v591, 4294901760
        %v1005 = vsub.f32 %v591, %v1004
        %1006 = vmatpush1.msra.mxu0 %v1005
        %v1007 = vand.u32 %v589, 4294901760
        %v1008 = vsub.f32 %v589, %v1007
        %1009 = vmatprep.subr.mxu0 %v1008
        %v1010 = vand.u32 %v588, 4294901760
        %v1011 = vsub.f32 %v588, %v1010
        %1012 = vmatpush1.msra.mxu0 %v1011
        %v1013 = vand.u32 %v586, 4294901760
        %v1014 = vsub.f32 %v586, %v1013
        %1015 = vmatprep.subr.mxu0 %v1014
        %v1016 = vand.u32 %v585, 4294901760
        %v1017 = vsub.f32 %v585, %v1016
        %1018 = vmatpush1.msra.mxu0 %v1017
        %v1019 = vand.u32 %v583, 4294901760
        %v1020 = vsub.f32 %v583, %v1019
        %1021 = vmatprep.subr.mxu0 %v1020
        %v1022 = vand.u32 %v582, 4294901760
        %v1023 = vsub.f32 %v582, %v1022
        %1024 = vmatpush1.msra.mxu0 %v1023
        %v1025 = vand.u32 %v580, 4294901760
        %v1026 = vsub.f32 %v580, %v1025
        %1027 = vmatprep.subr.mxu0 %v1026
        %v1028 = vand.u32 %v579, 4294901760
        %v1029 = vsub.f32 %v579, %v1028
        %1030 = vmatpush1.msra.mxu0 %v1029
        %v1031 = vand.u32 %v577, 4294901760
        %v1032 = vsub.f32 %v577, %v1031
        %1033 = vmatprep.subr.mxu0 %v1032
        %v1034 = vand.u32 %v576, 4294901760
        %v1035 = vsub.f32 %v576, %v1034
        %1036 = vmatpush1.msra.mxu0 %v1035
        %v1037 = vand.u32 %v574, 4294901760
        %v1038 = vsub.f32 %v574, %v1037
        %1039 = vmatprep.subr.mxu0 %v1038
        %v1040 = vand.u32 %v573, 4294901760
        %v1041 = vsub.f32 %v573, %v1040
        %1042 = vmatpush1.msra.mxu0 %v1041
        %v1043 = vand.u32 %v571, 4294901760
        %v1044 = vsub.f32 %v571, %v1043
        %1045 = vmatprep.subr.mxu0 %v1044
        %v1046 = vand.u32 %v570, 4294901760
        %v1047 = vsub.f32 %v570, %v1046
        %1048 = vmatpush1.msra.mxu0 %v1047
        %v1049 = vand.u32 %v568, 4294901760
        %v1050 = vsub.f32 %v568, %v1049
        %1051 = vmatprep.subr.mxu0 %v1050
        %v1052 = vand.u32 %v567, 4294901760
        %v1053 = vsub.f32 %v567, %v1052
        %1054 = vmatpush1.msra.mxu0 %v1053
        %v1055 = vand.u32 %v565, 4294901760
        %v1056 = vsub.f32 %v565, %v1055
        %1057 = vmatprep.subr.mxu0 %v1056
        %v1058 = vand.u32 %v564, 4294901760
        %v1059 = vsub.f32 %v564, %v1058
        %1060 = vmatpush1.msra.mxu0 %v1059
        %v1061 = vand.u32 %v562, 4294901760
        %v1062 = vsub.f32 %v562, %v1061
        %1063 = vmatprep.subr.mxu0 %v1062
        %v1064 = vand.u32 %v561, 4294901760
        %v1065 = vsub.f32 %v561, %v1064
        %1066 = vmatpush1.msra.mxu0 %v1065
        %v1067 = vand.u32 %v559, 4294901760
        %v1068 = vsub.f32 %v559, %v1067
        %1069 = vmatprep.subr.mxu0 %v1068
        %v1070 = vand.u32 %v558, 4294901760
        %v1071 = vsub.f32 %v558, %v1070
        %1072 = vmatpush1.msra.mxu0 %v1071
        %v1073 = vand.u32 %v556, 4294901760
        %v1074 = vsub.f32 %v556, %v1073
        %1075 = vmatprep.subr.mxu0 %v1074
        %v1076 = vand.u32 %v555, 4294901760
        %v1077 = vsub.f32 %v555, %v1076
        %1078 = vmatpush1.msra.mxu0 %v1077
        %v1079 = vand.u32 %v553, 4294901760
        %v1080 = vsub.f32 %v553, %v1079
        %1081 = vmatprep.subr.mxu0 %v1080
        %v1082 = vand.u32 %v552, 4294901760
        %v1083 = vsub.f32 %v552, %v1082
        %1084 = vmatpush1.msra.mxu0 %v1083
        %v1085 = vand.u32 %v550, 4294901760
        %v1086 = vsub.f32 %v550, %v1085
        %1087 = vmatprep.subr.mxu0 %v1086
        %v1088 = vand.u32 %v549, 4294901760
        %v1089 = vsub.f32 %v549, %v1088
        %1090 = vmatpush1.msra.mxu0 %v1089
        %v1091 = vand.u32 %v547, 4294901760
        %v1092 = vsub.f32 %v547, %v1091
        %1093 = vmatprep.subr.mxu0 %v1092
        %v1094 = vand.u32 %v546, 4294901760
        %v1095 = vsub.f32 %v546, %v1094
        %1096 = vmatpush1.msra.mxu0 %v1095
        %1097 = vmatprep.subr.mxu0 0.0
        %1098 = vmatpush2.msra.mxu0 0.0
        %1099 = vmatprep.subr.mxu0 0.0
        %1100 = vmatpush2.msra.mxu0 0.0
        %1101 = vmatprep.subr.mxu0 0.0
        %1102 = vmatpush2.msra.mxu0 0.0
        %1103 = vmatprep.subr.mxu0 0.0
        %1104 = vmatpush2.msra.mxu0 0.0
        %1105 = vmatprep.subr.mxu0 0.0
        %1106 = vmatpush2.msra.mxu0 0.0
        %1107 = vmatprep.subr.mxu0 0.0
        %1108 = vmatpush2.msra.mxu0 0.0
        %1109 = vmatprep.subr.mxu0 0.0
        %1110 = vmatpush2.msra.mxu0 0.0
        %1111 = vmatprep.subr.mxu0 0.0
        %1112 = vmatpush2.msra.mxu0 0.0
        %1113 = vmatprep.subr.mxu0 0.0
        %1114 = vmatpush2.msra.mxu0 0.0
        %1115 = vmatprep.subr.mxu0 0.0
        %1116 = vmatpush2.msra.mxu0 0.0
        %1117 = vmatprep.subr.mxu0 0.0
        %1118 = vmatpush2.msra.mxu0 0.0
        %1119 = vmatprep.subr.mxu0 0.0
        %1120 = vmatpush2.msra.mxu0 0.0
        %1121 = vmatprep.subr.mxu0 0.0
        %1122 = vmatpush2.msra.mxu0 0.0
        %1123 = vmatprep.subr.mxu0 0.0
        %1124 = vmatpush2.msra.mxu0 0.0
        %v1125 = vand.u32 %v598, 4294901760
        %v1126 = vsub.f32 %v598, %v1125
        %1127 = vmatprep.subr.mxu0 %v1126
        %v1128 = vand.u32 %v597, 4294901760
        %v1129 = vsub.f32 %v597, %v1128
        %1130 = vmatpush2.msra.mxu0 %v1129
        %v1131 = vand.u32 %v595, 4294901760
        %v1132 = vsub.f32 %v595, %v1131
        %1133 = vmatprep.subr.mxu0 %v1132
        %v1134 = vand.u32 %v594, 4294901760
        %v1135 = vsub.f32 %v594, %v1134
        %1136 = vmatpush2.msra.mxu0 %v1135
        %v1137 = vand.u32 %v602, 4294901760
        %v1138 = vsub.f32 %v602, %v1137
        %1139 = vmatprep.mubr.f32.mxu0 %v1138
        %v1140 = vand.u32 %v542, 4294901760
        %v1141 = vsub.f32 %v542, %v1140
        %1142 = vmatmul.mubr.f32.gmra.mxu0 %v1141
        %v1143 = vpop.f32.mrf.mxu0
        %v1144 = vadd.f32 %v989, %v1143
        %v1145 = vpop.f32.mrf.mxu0
        %v1146 = vadd.f32 %v991, %v1145
        %v1147 = vand.u32 %v605, 4294901760
        %v1148 = vsub.f32 %v605, %v1147
        %1149 = vmatprep.mubr.f32.mxu0 %v1148
        %v1150 = vand.u32 %v544, 4294901760
        %v1151 = vsub.f32 %v544, %v1150
        %1152 = vmatmul.mubr.f32.gmra.mxu0 %v1151
        %v1153 = vpop.f32.mrf.mxu0
        %v1154 = vadd.f32 %v997, %v1153
        %v1155 = vpop.f32.mrf.mxu0
        %v1156 = vadd.f32 %v999, %v1155
        %1157 = vdwg.mxu0
        %v1158 = vand.u32 %v592, 4294901760
        %1159 = vmatprep.subr.mxu0 %v1158
        %v1160 = vand.u32 %v591, 4294901760
        %1161 = vmatpush1.msra.mxu0 %v1160
        %v1162 = vand.u32 %v589, 4294901760
        %1163 = vmatprep.subr.mxu0 %v1162
        %v1164 = vand.u32 %v588, 4294901760
        %1165 = vmatpush1.msra.mxu0 %v1164
        %v1166 = vand.u32 %v586, 4294901760
        %1167 = vmatprep.subr.mxu0 %v1166
        %v1168 = vand.u32 %v585, 4294901760
        %1169 = vmatpush1.msra.mxu0 %v1168
        %v1170 = vand.u32 %v583, 4294901760
        %1171 = vmatprep.subr.mxu0 %v1170
        %v1172 = vand.u32 %v582, 4294901760
        %1173 = vmatpush1.msra.mxu0 %v1172
        %v1174 = vand.u32 %v580, 4294901760
        %1175 = vmatprep.subr.mxu0 %v1174
        %v1176 = vand.u32 %v579, 4294901760
        %1177 = vmatpush1.msra.mxu0 %v1176
        %v1178 = vand.u32 %v577, 4294901760
        %1179 = vmatprep.subr.mxu0 %v1178
        %v1180 = vand.u32 %v576, 4294901760
        %1181 = vmatpush1.msra.mxu0 %v1180
        %v1182 = vand.u32 %v574, 4294901760
        %1183 = vmatprep.subr.mxu0 %v1182
        %v1184 = vand.u32 %v573, 4294901760
        %1185 = vmatpush1.msra.mxu0 %v1184
        %v1186 = vand.u32 %v571, 4294901760
        %1187 = vmatprep.subr.mxu0 %v1186
        %v1188 = vand.u32 %v570, 4294901760
        %1189 = vmatpush1.msra.mxu0 %v1188
        %v1190 = vand.u32 %v568, 4294901760
        %1191 = vmatprep.subr.mxu0 %v1190
        %v1192 = vand.u32 %v567, 4294901760
        %1193 = vmatpush1.msra.mxu0 %v1192
        %v1194 = vand.u32 %v565, 4294901760
        %1195 = vmatprep.subr.mxu0 %v1194
        %v1196 = vand.u32 %v564, 4294901760
        %1197 = vmatpush1.msra.mxu0 %v1196
        %v1198 = vand.u32 %v562, 4294901760
        %1199 = vmatprep.subr.mxu0 %v1198
        %v1200 = vand.u32 %v561, 4294901760
        %1201 = vmatpush1.msra.mxu0 %v1200
        %v1202 = vand.u32 %v559, 4294901760
        %1203 = vmatprep.subr.mxu0 %v1202
        %v1204 = vand.u32 %v558, 4294901760
        %1205 = vmatpush1.msra.mxu0 %v1204
        %v1206 = vand.u32 %v556, 4294901760
        %1207 = vmatprep.subr.mxu0 %v1206
        %v1208 = vand.u32 %v555, 4294901760
        %1209 = vmatpush1.msra.mxu0 %v1208
        %v1210 = vand.u32 %v553, 4294901760
        %1211 = vmatprep.subr.mxu0 %v1210
        %v1212 = vand.u32 %v552, 4294901760
        %1213 = vmatpush1.msra.mxu0 %v1212
        %v1214 = vand.u32 %v550, 4294901760
        %1215 = vmatprep.subr.mxu0 %v1214
        %v1216 = vand.u32 %v549, 4294901760
        %1217 = vmatpush1.msra.mxu0 %v1216
        %v1218 = vand.u32 %v547, 4294901760
        %1219 = vmatprep.subr.mxu0 %v1218
        %v1220 = vand.u32 %v546, 4294901760
        %1221 = vmatpush1.msra.mxu0 %v1220
        %1222 = vmatprep.subr.mxu0 0.0
        %1223 = vmatpush2.msra.mxu0 0.0
        %1224 = vmatprep.subr.mxu0 0.0
        %1225 = vmatpush2.msra.mxu0 0.0
        %1226 = vmatprep.subr.mxu0 0.0
        %1227 = vmatpush2.msra.mxu0 0.0
        %1228 = vmatprep.subr.mxu0 0.0
        %1229 = vmatpush2.msra.mxu0 0.0
        %1230 = vmatprep.subr.mxu0 0.0
        %1231 = vmatpush2.msra.mxu0 0.0
        %1232 = vmatprep.subr.mxu0 0.0
        %1233 = vmatpush2.msra.mxu0 0.0
        %1234 = vmatprep.subr.mxu0 0.0
        %1235 = vmatpush2.msra.mxu0 0.0
        %1236 = vmatprep.subr.mxu0 0.0
        %1237 = vmatpush2.msra.mxu0 0.0
        %1238 = vmatprep.subr.mxu0 0.0
        %1239 = vmatpush2.msra.mxu0 0.0
        %1240 = vmatprep.subr.mxu0 0.0
        %1241 = vmatpush2.msra.mxu0 0.0
        %1242 = vmatprep.subr.mxu0 0.0
        %1243 = vmatpush2.msra.mxu0 0.0
        %1244 = vmatprep.subr.mxu0 0.0
        %1245 = vmatpush2.msra.mxu0 0.0
        %1246 = vmatprep.subr.mxu0 0.0
        %1247 = vmatpush2.msra.mxu0 0.0
        %1248 = vmatprep.subr.mxu0 0.0
        %1249 = vmatpush2.msra.mxu0 0.0
        %v1250 = vand.u32 %v598, 4294901760
        %1251 = vmatprep.subr.mxu0 %v1250
        %v1252 = vand.u32 %v597, 4294901760
        %1253 = vmatpush2.msra.mxu0 %v1252
        %v1254 = vand.u32 %v595, 4294901760
        %1255 = vmatprep.subr.mxu0 %v1254
        %v1256 = vand.u32 %v594, 4294901760
        %1257 = vmatpush2.msra.mxu0 %v1256
        %v1258 = vand.u32 %v602, 4294901760
        %v1259 = vsub.f32 %v602, %v1258
        %v1260 = vand.u32 %v1259, 4294901760
        %1261 = vmatprep.mubr.f32.mxu0 %v1260
        %v1262 = vand.u32 %v542, 4294901760
        %v1263 = vsub.f32 %v542, %v1262
        %v1264 = vand.u32 %v1263, 4294901760
        %1265 = vmatmul.mubr.f32.gmra.mxu0 %v1264
        %v1266 = vpop.f32.mrf.mxu0
        %v1267 = vadd.f32 %v1144, %v1266
        %v1268 = vpop.f32.mrf.mxu0
        %v1269 = vadd.f32 %v1146, %v1268
        %v1270 = vand.u32 %v605, 4294901760
        %v1271 = vsub.f32 %v605, %v1270
        %v1272 = vand.u32 %v1271, 4294901760
        %1273 = vmatprep.mubr.f32.mxu0 %v1272
        %v1274 = vand.u32 %v544, 4294901760
        %v1275 = vsub.f32 %v544, %v1274
        %v1276 = vand.u32 %v1275, 4294901760
        %1277 = vmatmul.mubr.f32.gmra.mxu0 %v1276
        %v1278 = vpop.f32.mrf.mxu0
        %v1279 = vadd.f32 %v1154, %v1278
        %v1280 = vpop.f32.mrf.mxu0
        %v1281 = vadd.f32 %v1156, %v1280
        %1282 = vdwg.mxu0
        %v1283 = vand.u32 %v592, 4294901760
        %v1284 = vsub.f32 %v592, %v1283
        %v1285 = vand.u32 %v1284, 4294901760
        %1286 = vmatprep.subr.mxu0 %v1285
        %v1287 = vand.u32 %v591, 4294901760
        %v1288 = vsub.f32 %v591, %v1287
        %v1289 = vand.u32 %v1288, 4294901760
        %1290 = vmatpush1.msra.mxu0 %v1289
        %v1291 = vand.u32 %v589, 4294901760
        %v1292 = vsub.f32 %v589, %v1291
        %v1293 = vand.u32 %v1292, 4294901760
        %1294 = vmatprep.subr.mxu0 %v1293
        %v1295 = vand.u32 %v588, 4294901760
        %v1296 = vsub.f32 %v588, %v1295
        %v1297 = vand.u32 %v1296, 4294901760
        %1298 = vmatpush1.msra.mxu0 %v1297
        %v1299 = vand.u32 %v586, 4294901760
        %v1300 = vsub.f32 %v586, %v1299
        %v1301 = vand.u32 %v1300, 4294901760
        %1302 = vmatprep.subr.mxu0 %v1301
        %v1303 = vand.u32 %v585, 4294901760
        %v1304 = vsub.f32 %v585, %v1303
        %v1305 = vand.u32 %v1304, 4294901760
        %1306 = vmatpush1.msra.mxu0 %v1305
        %v1307 = vand.u32 %v583, 4294901760
        %v1308 = vsub.f32 %v583, %v1307
        %v1309 = vand.u32 %v1308, 4294901760
        %1310 = vmatprep.subr.mxu0 %v1309
        %v1311 = vand.u32 %v582, 4294901760
        %v1312 = vsub.f32 %v582, %v1311
        %v1313 = vand.u32 %v1312, 4294901760
        %1314 = vmatpush1.msra.mxu0 %v1313
        %v1315 = vand.u32 %v580, 4294901760
        %v1316 = vsub.f32 %v580, %v1315
        %v1317 = vand.u32 %v1316, 4294901760
        %1318 = vmatprep.subr.mxu0 %v1317
        %v1319 = vand.u32 %v579, 4294901760
        %v1320 = vsub.f32 %v579, %v1319
        %v1321 = vand.u32 %v1320, 4294901760
        %1322 = vmatpush1.msra.mxu0 %v1321
        %v1323 = vand.u32 %v577, 4294901760
        %v1324 = vsub.f32 %v577, %v1323
        %v1325 = vand.u32 %v1324, 4294901760
        %1326 = vmatprep.subr.mxu0 %v1325
        %v1327 = vand.u32 %v576, 4294901760
        %v1328 = vsub.f32 %v576, %v1327
        %v1329 = vand.u32 %v1328, 4294901760
        %1330 = vmatpush1.msra.mxu0 %v1329
        %v1331 = vand.u32 %v574, 4294901760
        %v1332 = vsub.f32 %v574, %v1331
        %v1333 = vand.u32 %v1332, 4294901760
        %1334 = vmatprep.subr.mxu0 %v1333
        %v1335 = vand.u32 %v573, 4294901760
        %v1336 = vsub.f32 %v573, %v1335
        %v1337 = vand.u32 %v1336, 4294901760
        %1338 = vmatpush1.msra.mxu0 %v1337
        %v1339 = vand.u32 %v571, 4294901760
        %v1340 = vsub.f32 %v571, %v1339
        %v1341 = vand.u32 %v1340, 4294901760
        %1342 = vmatprep.subr.mxu0 %v1341
        %v1343 = vand.u32 %v570, 4294901760
        %v1344 = vsub.f32 %v570, %v1343
        %v1345 = vand.u32 %v1344, 4294901760
        %1346 = vmatpush1.msra.mxu0 %v1345
        %v1347 = vand.u32 %v568, 4294901760
        %v1348 = vsub.f32 %v568, %v1347
        %v1349 = vand.u32 %v1348, 4294901760
        %1350 = vmatprep.subr.mxu0 %v1349
        %v1351 = vand.u32 %v567, 4294901760
        %v1352 = vsub.f32 %v567, %v1351
        %v1353 = vand.u32 %v1352, 4294901760
        %1354 = vmatpush1.msra.mxu0 %v1353
        %v1355 = vand.u32 %v565, 4294901760
        %v1356 = vsub.f32 %v565, %v1355
        %v1357 = vand.u32 %v1356, 4294901760
        %1358 = vmatprep.subr.mxu0 %v1357
        %v1359 = vand.u32 %v564, 4294901760
        %v1360 = vsub.f32 %v564, %v1359
        %v1361 = vand.u32 %v1360, 4294901760
        %1362 = vmatpush1.msra.mxu0 %v1361
        %v1363 = vand.u32 %v562, 4294901760
        %v1364 = vsub.f32 %v562, %v1363
        %v1365 = vand.u32 %v1364, 4294901760
        %1366 = vmatprep.subr.mxu0 %v1365
        %v1367 = vand.u32 %v561, 4294901760
        %v1368 = vsub.f32 %v561, %v1367
        %v1369 = vand.u32 %v1368, 4294901760
        %1370 = vmatpush1.msra.mxu0 %v1369
        %v1371 = vand.u32 %v559, 4294901760
        %v1372 = vsub.f32 %v559, %v1371
        %v1373 = vand.u32 %v1372, 4294901760
        %1374 = vmatprep.subr.mxu0 %v1373
        %v1375 = vand.u32 %v558, 4294901760
        %v1376 = vsub.f32 %v558, %v1375
        %v1377 = vand.u32 %v1376, 4294901760
        %1378 = vmatpush1.msra.mxu0 %v1377
        %v1379 = vand.u32 %v556, 4294901760
        %v1380 = vsub.f32 %v556, %v1379
        %v1381 = vand.u32 %v1380, 4294901760
        %1382 = vmatprep.subr.mxu0 %v1381
        %v1383 = vand.u32 %v555, 4294901760
        %v1384 = vsub.f32 %v555, %v1383
        %v1385 = vand.u32 %v1384, 4294901760
        %1386 = vmatpush1.msra.mxu0 %v1385
        %v1387 = vand.u32 %v553, 4294901760
        %v1388 = vsub.f32 %v553, %v1387
        %v1389 = vand.u32 %v1388, 4294901760
        %1390 = vmatprep.subr.mxu0 %v1389
        %v1391 = vand.u32 %v552, 4294901760
        %v1392 = vsub.f32 %v552, %v1391
        %v1393 = vand.u32 %v1392, 4294901760
        %1394 = vmatpush1.msra.mxu0 %v1393
        %v1395 = vand.u32 %v550, 4294901760
        %v1396 = vsub.f32 %v550, %v1395
        %v1397 = vand.u32 %v1396, 4294901760
        %1398 = vmatprep.subr.mxu0 %v1397
        %v1399 = vand.u32 %v549, 4294901760
        %v1400 = vsub.f32 %v549, %v1399
        %v1401 = vand.u32 %v1400, 4294901760
        %1402 = vmatpush1.msra.mxu0 %v1401
        %v1403 = vand.u32 %v547, 4294901760
        %v1404 = vsub.f32 %v547, %v1403
        %v1405 = vand.u32 %v1404, 4294901760
        %1406 = vmatprep.subr.mxu0 %v1405
        %v1407 = vand.u32 %v546, 4294901760
        %v1408 = vsub.f32 %v546, %v1407
        %v1409 = vand.u32 %v1408, 4294901760
        %1410 = vmatpush1.msra.mxu0 %v1409
        %1411 = vmatprep.subr.mxu0 0.0
        %1412 = vmatpush2.msra.mxu0 0.0
        %1413 = vmatprep.subr.mxu0 0.0
        %1414 = vmatpush2.msra.mxu0 0.0
        %1415 = vmatprep.subr.mxu0 0.0
        %1416 = vmatpush2.msra.mxu0 0.0
        %1417 = vmatprep.subr.mxu0 0.0
        %1418 = vmatpush2.msra.mxu0 0.0
        %1419 = vmatprep.subr.mxu0 0.0
        %1420 = vmatpush2.msra.mxu0 0.0
        %1421 = vmatprep.subr.mxu0 0.0
        %1422 = vmatpush2.msra.mxu0 0.0
        %1423 = vmatprep.subr.mxu0 0.0
        %1424 = vmatpush2.msra.mxu0 0.0
        %1425 = vmatprep.subr.mxu0 0.0
        %1426 = vmatpush2.msra.mxu0 0.0
        %1427 = vmatprep.subr.mxu0 0.0
        %1428 = vmatpush2.msra.mxu0 0.0
        %1429 = vmatprep.subr.mxu0 0.0
        %1430 = vmatpush2.msra.mxu0 0.0
        %1431 = vmatprep.subr.mxu0 0.0
        %1432 = vmatpush2.msra.mxu0 0.0
        %1433 = vmatprep.subr.mxu0 0.0
        %1434 = vmatpush2.msra.mxu0 0.0
        %1435 = vmatprep.subr.mxu0 0.0
        %1436 = vmatpush2.msra.mxu0 0.0
        %1437 = vmatprep.subr.mxu0 0.0
        %1438 = vmatpush2.msra.mxu0 0.0
        %v1439 = vand.u32 %v598, 4294901760
        %v1440 = vsub.f32 %v598, %v1439
        %v1441 = vand.u32 %v1440, 4294901760
        %1442 = vmatprep.subr.mxu0 %v1441
        %v1443 = vand.u32 %v597, 4294901760
        %v1444 = vsub.f32 %v597, %v1443
        %v1445 = vand.u32 %v1444, 4294901760
        %1446 = vmatpush2.msra.mxu0 %v1445
        %v1447 = vand.u32 %v595, 4294901760
        %v1448 = vsub.f32 %v595, %v1447
        %v1449 = vand.u32 %v1448, 4294901760
        %1450 = vmatprep.subr.mxu0 %v1449
        %v1451 = vand.u32 %v594, 4294901760
        %v1452 = vsub.f32 %v594, %v1451
        %v1453 = vand.u32 %v1452, 4294901760
        %1454 = vmatpush2.msra.mxu0 %v1453
        %v1455 = vand.u32 %v602, 4294901760
        %1456 = vmatprep.mubr.f32.mxu0 %v1455
        %v1457 = vand.u32 %v542, 4294901760
        %1458 = vmatmul.mubr.f32.gmra.mxu0 %v1457
        %v1459 = vpop.f32.mrf.mxu0
        %v1460 = vadd.f32 %v1267, %v1459
        %v1461 = vpop.f32.mrf.mxu0
        %v1462 = vadd.f32 %v1269, %v1461
        %v1463 = vand.u32 %v605, 4294901760
        %1464 = vmatprep.mubr.f32.mxu0 %v1463
        %v1465 = vand.u32 %v544, 4294901760
        %1466 = vmatmul.mubr.f32.gmra.mxu0 %v1465
        %v1467 = vpop.f32.mrf.mxu0
        %v1468 = vadd.f32 %v1279, %v1467
        %v1469 = vpop.f32.mrf.mxu0
        %v1470 = vadd.f32 %v1281, %v1469
        %1471 = vdwg.mxu0
        %v1472 = vand.u32 %v592, 4294901760
        %1473 = vmatprep.subr.mxu0 %v1472
        %v1474 = vand.u32 %v591, 4294901760
        %1475 = vmatpush1.msra.mxu0 %v1474
        %v1476 = vand.u32 %v589, 4294901760
        %1477 = vmatprep.subr.mxu0 %v1476
        %v1478 = vand.u32 %v588, 4294901760
        %1479 = vmatpush1.msra.mxu0 %v1478
        %v1480 = vand.u32 %v586, 4294901760
        %1481 = vmatprep.subr.mxu0 %v1480
        %v1482 = vand.u32 %v585, 4294901760
        %1483 = vmatpush1.msra.mxu0 %v1482
        %v1484 = vand.u32 %v583, 4294901760
        %1485 = vmatprep.subr.mxu0 %v1484
        %v1486 = vand.u32 %v582, 4294901760
        %1487 = vmatpush1.msra.mxu0 %v1486
        %v1488 = vand.u32 %v580, 4294901760
        %1489 = vmatprep.subr.mxu0 %v1488
        %v1490 = vand.u32 %v579, 4294901760
        %1491 = vmatpush1.msra.mxu0 %v1490
        %v1492 = vand.u32 %v577, 4294901760
        %1493 = vmatprep.subr.mxu0 %v1492
        %v1494 = vand.u32 %v576, 4294901760
        %1495 = vmatpush1.msra.mxu0 %v1494
        %v1496 = vand.u32 %v574, 4294901760
        %1497 = vmatprep.subr.mxu0 %v1496
        %v1498 = vand.u32 %v573, 4294901760
        %1499 = vmatpush1.msra.mxu0 %v1498
        %v1500 = vand.u32 %v571, 4294901760
        %1501 = vmatprep.subr.mxu0 %v1500
        %v1502 = vand.u32 %v570, 4294901760
        %1503 = vmatpush1.msra.mxu0 %v1502
        %v1504 = vand.u32 %v568, 4294901760
        %1505 = vmatprep.subr.mxu0 %v1504
        %v1506 = vand.u32 %v567, 4294901760
        %1507 = vmatpush1.msra.mxu0 %v1506
        %v1508 = vand.u32 %v565, 4294901760
        %1509 = vmatprep.subr.mxu0 %v1508
        %v1510 = vand.u32 %v564, 4294901760
        %1511 = vmatpush1.msra.mxu0 %v1510
        %v1512 = vand.u32 %v562, 4294901760
        %1513 = vmatprep.subr.mxu0 %v1512
        %v1514 = vand.u32 %v561, 4294901760
        %1515 = vmatpush1.msra.mxu0 %v1514
        %v1516 = vand.u32 %v559, 4294901760
        %1517 = vmatprep.subr.mxu0 %v1516
        %v1518 = vand.u32 %v558, 4294901760
        %1519 = vmatpush1.msra.mxu0 %v1518
        %v1520 = vand.u32 %v556, 4294901760
        %1521 = vmatprep.subr.mxu0 %v1520
        %v1522 = vand.u32 %v555, 4294901760
        %1523 = vmatpush1.msra.mxu0 %v1522
        %v1524 = vand.u32 %v553, 4294901760
        %1525 = vmatprep.subr.mxu0 %v1524
        %v1526 = vand.u32 %v552, 4294901760
        %1527 = vmatpush1.msra.mxu0 %v1526
        %v1528 = vand.u32 %v550, 4294901760
        %1529 = vmatprep.subr.mxu0 %v1528
        %v1530 = vand.u32 %v549, 4294901760
        %1531 = vmatpush1.msra.mxu0 %v1530
        %v1532 = vand.u32 %v547, 4294901760
        %1533 = vmatprep.subr.mxu0 %v1532
        %v1534 = vand.u32 %v546, 4294901760
        %1535 = vmatpush1.msra.mxu0 %v1534
        %1536 = vmatprep.subr.mxu0 0.0
        %1537 = vmatpush2.msra.mxu0 0.0
        %1538 = vmatprep.subr.mxu0 0.0
        %1539 = vmatpush2.msra.mxu0 0.0
        %1540 = vmatprep.subr.mxu0 0.0
        %1541 = vmatpush2.msra.mxu0 0.0
        %1542 = vmatprep.subr.mxu0 0.0
        %1543 = vmatpush2.msra.mxu0 0.0
        %1544 = vmatprep.subr.mxu0 0.0
        %1545 = vmatpush2.msra.mxu0 0.0
        %1546 = vmatprep.subr.mxu0 0.0
        %1547 = vmatpush2.msra.mxu0 0.0
        %1548 = vmatprep.subr.mxu0 0.0
        %1549 = vmatpush2.msra.mxu0 0.0
        %1550 = vmatprep.subr.mxu0 0.0
        %1551 = vmatpush2.msra.mxu0 0.0
        %1552 = vmatprep.subr.mxu0 0.0
        %1553 = vmatpush2.msra.mxu0 0.0
        %1554 = vmatprep.subr.mxu0 0.0
        %1555 = vmatpush2.msra.mxu0 0.0
        %1556 = vmatprep.subr.mxu0 0.0
        %1557 = vmatpush2.msra.mxu0 0.0
        %1558 = vmatprep.subr.mxu0 0.0
        %1559 = vmatpush2.msra.mxu0 0.0
        %1560 = vmatprep.subr.mxu0 0.0
        %1561 = vmatpush2.msra.mxu0 0.0
        %1562 = vmatprep.subr.mxu0 0.0
        %1563 = vmatpush2.msra.mxu0 0.0
        %v1564 = vand.u32 %v598, 4294901760
        %1565 = vmatprep.subr.mxu0 %v1564
        %v1566 = vand.u32 %v597, 4294901760
        %1567 = vmatpush2.msra.mxu0 %v1566
        %v1568 = vand.u32 %v595, 4294901760
        %1569 = vmatprep.subr.mxu0 %v1568
        %v1570 = vand.u32 %v594, 4294901760
        %1571 = vmatpush2.msra.mxu0 %v1570
        %v1572 = vand.u32 %v602, 4294901760
        %1573 = vmatprep.mubr.f32.mxu0 %v1572
        %v1574 = vand.u32 %v542, 4294901760
        %1575 = vmatmul.mubr.f32.gmra.mxu0 %v1574
        %v1576 = vpop.f32.mrf.mxu0
        %v1577 = vadd.f32 %v1460, %v1576
        %v1578 = vpop.f32.mrf.mxu0
        %v1579 = vadd.f32 %v1462, %v1578
        %v1580 = vand.u32 %v605, 4294901760
        %1581 = vmatprep.mubr.f32.mxu0 %v1580
        %v1582 = vand.u32 %v544, 4294901760
        %1583 = vmatmul.mubr.f32.gmra.mxu0 %v1582
        %v1584 = vpop.f32.mrf.mxu0
        %v1585 = vadd.f32 %v1468, %v1584
        %v1586 = vpop.f32.mrf.mxu0
        %v1587 = vadd.f32 %v1470, %v1586
        %1588 = vdwg.mxu0
        %1589 = vmatprep.subr.mxu0 0.0
        %v1590 = vand.u32 %v593, 4294901760
        %1591 = vmatpush1.msra.mxu0 %v1590
        %1592 = vmatprep.subr.mxu0 0.0
        %v1593 = vand.u32 %v590, 4294901760
        %1594 = vmatpush1.msra.mxu0 %v1593
        %1595 = vmatprep.subr.mxu0 0.0
        %v1596 = vand.u32 %v587, 4294901760
        %1597 = vmatpush1.msra.mxu0 %v1596
        %1598 = vmatprep.subr.mxu0 0.0
        %v1599 = vand.u32 %v584, 4294901760
        %1600 = vmatpush1.msra.mxu0 %v1599
        %1601 = vmatprep.subr.mxu0 0.0
        %v1602 = vand.u32 %v581, 4294901760
        %1603 = vmatpush1.msra.mxu0 %v1602
        %1604 = vmatprep.subr.mxu0 0.0
        %v1605 = vand.u32 %v578, 4294901760
        %1606 = vmatpush1.msra.mxu0 %v1605
        %1607 = vmatprep.subr.mxu0 0.0
        %v1608 = vand.u32 %v575, 4294901760
        %1609 = vmatpush1.msra.mxu0 %v1608
        %1610 = vmatprep.subr.mxu0 0.0
        %v1611 = vand.u32 %v572, 4294901760
        %1612 = vmatpush1.msra.mxu0 %v1611
        %1613 = vmatprep.subr.mxu0 0.0
        %v1614 = vand.u32 %v569, 4294901760
        %1615 = vmatpush1.msra.mxu0 %v1614
        %1616 = vmatprep.subr.mxu0 0.0
        %v1617 = vand.u32 %v566, 4294901760
        %1618 = vmatpush1.msra.mxu0 %v1617
        %1619 = vmatprep.subr.mxu0 0.0
        %v1620 = vand.u32 %v563, 4294901760
        %1621 = vmatpush1.msra.mxu0 %v1620
        %1622 = vmatprep.subr.mxu0 0.0
        %v1623 = vand.u32 %v560, 4294901760
        %1624 = vmatpush1.msra.mxu0 %v1623
        %1625 = vmatprep.subr.mxu0 0.0
        %v1626 = vand.u32 %v557, 4294901760
        %1627 = vmatpush1.msra.mxu0 %v1626
        %1628 = vmatprep.subr.mxu0 0.0
        %v1629 = vand.u32 %v554, 4294901760
        %1630 = vmatpush1.msra.mxu0 %v1629
        %1631 = vmatprep.subr.mxu0 0.0
        %v1632 = vand.u32 %v551, 4294901760
        %1633 = vmatpush1.msra.mxu0 %v1632
        %1634 = vmatprep.subr.mxu0 0.0
        %v1635 = vand.u32 %v548, 4294901760
        %1636 = vmatpush1.msra.mxu0 %v1635
        %1637 = vmatprep.subr.mxu0 0.0
        %1638 = vmatpush2.msra.mxu0 0.0
        %1639 = vmatprep.subr.mxu0 0.0
        %1640 = vmatpush2.msra.mxu0 0.0
        %1641 = vmatprep.subr.mxu0 0.0
        %1642 = vmatpush2.msra.mxu0 0.0
        %1643 = vmatprep.subr.mxu0 0.0
        %1644 = vmatpush2.msra.mxu0 0.0
        %1645 = vmatprep.subr.mxu0 0.0
        %1646 = vmatpush2.msra.mxu0 0.0
        %1647 = vmatprep.subr.mxu0 0.0
        %1648 = vmatpush2.msra.mxu0 0.0
        %1649 = vmatprep.subr.mxu0 0.0
        %1650 = vmatpush2.msra.mxu0 0.0
        %1651 = vmatprep.subr.mxu0 0.0
        %1652 = vmatpush2.msra.mxu0 0.0
        %1653 = vmatprep.subr.mxu0 0.0
        %1654 = vmatpush2.msra.mxu0 0.0
        %1655 = vmatprep.subr.mxu0 0.0
        %1656 = vmatpush2.msra.mxu0 0.0
        %1657 = vmatprep.subr.mxu0 0.0
        %1658 = vmatpush2.msra.mxu0 0.0
        %1659 = vmatprep.subr.mxu0 0.0
        %1660 = vmatpush2.msra.mxu0 0.0
        %1661 = vmatprep.subr.mxu0 0.0
        %1662 = vmatpush2.msra.mxu0 0.0
        %1663 = vmatprep.subr.mxu0 0.0
        %1664 = vmatpush2.msra.mxu0 0.0
        %1665 = vmatprep.subr.mxu0 0.0
        %v1666 = vand.u32 %v599, 4294901760
        %1667 = vmatpush2.msra.mxu0 %v1666
        %1668 = vmatprep.subr.mxu0 0.0
        %v1669 = vand.u32 %v596, 4294901760
        %1670 = vmatpush2.msra.mxu0 %v1669
        %v1671 = vand.u32 %v602, 4294901760
        %v1672 = vsub.f32 %v602, %v1671
        %v1673 = vand.u32 %v1672, 4294901760
        %v1674 = vsub.f32 %v1672, %v1673
        %v1675 = vand.u32 %v1674, 4294901760
        %1676 = vmatprep.mubr.f32.mxu0 %v1675
        %v1677 = vand.u32 %v542, 4294901760
        %v1678 = vsub.f32 %v542, %v1677
        %v1679 = vand.u32 %v1678, 4294901760
        %v1680 = vsub.f32 %v1678, %v1679
        %v1681 = vand.u32 %v1680, 4294901760
        %1682 = vmatmul.mubr.f32.gmra.mxu0 %v1681
        %v1683 = vpop.f32.mrf.mxu0
        %v1684 = vadd.f32 0.0, %v1683
        %v1685 = vpop.f32.mrf.mxu0
        %v1686 = vand.u32 %v605, 4294901760
        %v1687 = vsub.f32 %v605, %v1686
        %v1688 = vand.u32 %v1687, 4294901760
        %v1689 = vsub.f32 %v1687, %v1688
        %v1690 = vand.u32 %v1689, 4294901760
        %1691 = vmatprep.mubr.f32.mxu0 %v1690
        %v1692 = vand.u32 %v544, 4294901760
        %v1693 = vsub.f32 %v544, %v1692
        %v1694 = vand.u32 %v1693, 4294901760
        %v1695 = vsub.f32 %v1693, %v1694
        %v1696 = vand.u32 %v1695, 4294901760
        %1697 = vmatmul.mubr.f32.gmra.mxu0 %v1696
        %v1698 = vpop.f32.mrf.mxu0
        %v1699 = vadd.f32 0.0, %v1698
        %v1700 = vpop.f32.mrf.mxu0
        %1701 = vdwg.mxu0
        %1702 = vmatprep.subr.mxu0 0.0
        %v1703 = vand.u32 %v593, 4294901760
        %v1704 = vsub.f32 %v593, %v1703
        %v1705 = vand.u32 %v1704, 4294901760
        %v1706 = vsub.f32 %v1704, %v1705
        %v1707 = vand.u32 %v1706, 4294901760
        %1708 = vmatpush1.msra.mxu0 %v1707
        %1709 = vmatprep.subr.mxu0 0.0
        %v1710 = vand.u32 %v590, 4294901760
        %v1711 = vsub.f32 %v590, %v1710
        %v1712 = vand.u32 %v1711, 4294901760
        %v1713 = vsub.f32 %v1711, %v1712
        %v1714 = vand.u32 %v1713, 4294901760
        %1715 = vmatpush1.msra.mxu0 %v1714
        %1716 = vmatprep.subr.mxu0 0.0
        %v1717 = vand.u32 %v587, 4294901760
        %v1718 = vsub.f32 %v587, %v1717
        %v1719 = vand.u32 %v1718, 4294901760
        %v1720 = vsub.f32 %v1718, %v1719
        %v1721 = vand.u32 %v1720, 4294901760
        %1722 = vmatpush1.msra.mxu0 %v1721
        %1723 = vmatprep.subr.mxu0 0.0
        %v1724 = vand.u32 %v584, 4294901760
        %v1725 = vsub.f32 %v584, %v1724
        %v1726 = vand.u32 %v1725, 4294901760
        %v1727 = vsub.f32 %v1725, %v1726
        %v1728 = vand.u32 %v1727, 4294901760
        %1729 = vmatpush1.msra.mxu0 %v1728
        %1730 = vmatprep.subr.mxu0 0.0
        %v1731 = vand.u32 %v581, 4294901760
        %v1732 = vsub.f32 %v581, %v1731
        %v1733 = vand.u32 %v1732, 4294901760
        %v1734 = vsub.f32 %v1732, %v1733
        %v1735 = vand.u32 %v1734, 4294901760
        %1736 = vmatpush1.msra.mxu0 %v1735
        %1737 = vmatprep.subr.mxu0 0.0
        %v1738 = vand.u32 %v578, 4294901760
        %v1739 = vsub.f32 %v578, %v1738
        %v1740 = vand.u32 %v1739, 4294901760
        %v1741 = vsub.f32 %v1739, %v1740
        %v1742 = vand.u32 %v1741, 4294901760
        %1743 = vmatpush1.msra.mxu0 %v1742
        %1744 = vmatprep.subr.mxu0 0.0
        %v1745 = vand.u32 %v575, 4294901760
        %v1746 = vsub.f32 %v575, %v1745
        %v1747 = vand.u32 %v1746, 4294901760
        %v1748 = vsub.f32 %v1746, %v1747
        %v1749 = vand.u32 %v1748, 4294901760
        %1750 = vmatpush1.msra.mxu0 %v1749
        %1751 = vmatprep.subr.mxu0 0.0
        %v1752 = vand.u32 %v572, 4294901760
        %v1753 = vsub.f32 %v572, %v1752
        %v1754 = vand.u32 %v1753, 4294901760
        %v1755 = vsub.f32 %v1753, %v1754
        %v1756 = vand.u32 %v1755, 4294901760
        %1757 = vmatpush1.msra.mxu0 %v1756
        %1758 = vmatprep.subr.mxu0 0.0
        %v1759 = vand.u32 %v569, 4294901760
        %v1760 = vsub.f32 %v569, %v1759
        %v1761 = vand.u32 %v1760, 4294901760
        %v1762 = vsub.f32 %v1760, %v1761
        %v1763 = vand.u32 %v1762, 4294901760
        %1764 = vmatpush1.msra.mxu0 %v1763
        %1765 = vmatprep.subr.mxu0 0.0
        %v1766 = vand.u32 %v566, 4294901760
        %v1767 = vsub.f32 %v566, %v1766
        %v1768 = vand.u32 %v1767, 4294901760
        %v1769 = vsub.f32 %v1767, %v1768
        %v1770 = vand.u32 %v1769, 4294901760
        %1771 = vmatpush1.msra.mxu0 %v1770
        %1772 = vmatprep.subr.mxu0 0.0
        %v1773 = vand.u32 %v563, 4294901760
        %v1774 = vsub.f32 %v563, %v1773
        %v1775 = vand.u32 %v1774, 4294901760
        %v1776 = vsub.f32 %v1774, %v1775
        %v1777 = vand.u32 %v1776, 4294901760
        %1778 = vmatpush1.msra.mxu0 %v1777
        %1779 = vmatprep.subr.mxu0 0.0
        %v1780 = vand.u32 %v560, 4294901760
        %v1781 = vsub.f32 %v560, %v1780
        %v1782 = vand.u32 %v1781, 4294901760
        %v1783 = vsub.f32 %v1781, %v1782
        %v1784 = vand.u32 %v1783, 4294901760
        %1785 = vmatpush1.msra.mxu0 %v1784
        %1786 = vmatprep.subr.mxu0 0.0
        %v1787 = vand.u32 %v557, 4294901760
        %v1788 = vsub.f32 %v557, %v1787
        %v1789 = vand.u32 %v1788, 4294901760
        %v1790 = vsub.f32 %v1788, %v1789
        %v1791 = vand.u32 %v1790, 4294901760
        %1792 = vmatpush1.msra.mxu0 %v1791
        %1793 = vmatprep.subr.mxu0 0.0
        %v1794 = vand.u32 %v554, 4294901760
        %v1795 = vsub.f32 %v554, %v1794
        %v1796 = vand.u32 %v1795, 4294901760
        %v1797 = vsub.f32 %v1795, %v1796
        %v1798 = vand.u32 %v1797, 4294901760
        %1799 = vmatpush1.msra.mxu0 %v1798
        %1800 = vmatprep.subr.mxu0 0.0
        %v1801 = vand.u32 %v551, 4294901760
        %v1802 = vsub.f32 %v551, %v1801
        %v1803 = vand.u32 %v1802, 4294901760
        %v1804 = vsub.f32 %v1802, %v1803
        %v1805 = vand.u32 %v1804, 4294901760
        %1806 = vmatpush1.msra.mxu0 %v1805
        %1807 = vmatprep.subr.mxu0 0.0
        %v1808 = vand.u32 %v548, 4294901760
        %v1809 = vsub.f32 %v548, %v1808
        %v1810 = vand.u32 %v1809, 4294901760
        %v1811 = vsub.f32 %v1809, %v1810
        %v1812 = vand.u32 %v1811, 4294901760
        %1813 = vmatpush1.msra.mxu0 %v1812
        %1814 = vmatprep.subr.mxu0 0.0
        %1815 = vmatpush2.msra.mxu0 0.0
        %1816 = vmatprep.subr.mxu0 0.0
        %1817 = vmatpush2.msra.mxu0 0.0
        %1818 = vmatprep.subr.mxu0 0.0
        %1819 = vmatpush2.msra.mxu0 0.0
        %1820 = vmatprep.subr.mxu0 0.0
        %1821 = vmatpush2.msra.mxu0 0.0
        %1822 = vmatprep.subr.mxu0 0.0
        %1823 = vmatpush2.msra.mxu0 0.0
        %1824 = vmatprep.subr.mxu0 0.0
        %1825 = vmatpush2.msra.mxu0 0.0
        %1826 = vmatprep.subr.mxu0 0.0
        %1827 = vmatpush2.msra.mxu0 0.0
        %1828 = vmatprep.subr.mxu0 0.0
        %1829 = vmatpush2.msra.mxu0 0.0
        %1830 = vmatprep.subr.mxu0 0.0
        %1831 = vmatpush2.msra.mxu0 0.0
        %1832 = vmatprep.subr.mxu0 0.0
        %1833 = vmatpush2.msra.mxu0 0.0
        %1834 = vmatprep.subr.mxu0 0.0
        %1835 = vmatpush2.msra.mxu0 0.0
        %1836 = vmatprep.subr.mxu0 0.0
        %1837 = vmatpush2.msra.mxu0 0.0
        %1838 = vmatprep.subr.mxu0 0.0
        %1839 = vmatpush2.msra.mxu0 0.0
        %1840 = vmatprep.subr.mxu0 0.0
        %1841 = vmatpush2.msra.mxu0 0.0
        %1842 = vmatprep.subr.mxu0 0.0
        %v1843 = vand.u32 %v599, 4294901760
        %v1844 = vsub.f32 %v599, %v1843
        %v1845 = vand.u32 %v1844, 4294901760
        %v1846 = vsub.f32 %v1844, %v1845
        %v1847 = vand.u32 %v1846, 4294901760
        %1848 = vmatpush2.msra.mxu0 %v1847
        %1849 = vmatprep.subr.mxu0 0.0
        %v1850 = vand.u32 %v596, 4294901760
        %v1851 = vsub.f32 %v596, %v1850
        %v1852 = vand.u32 %v1851, 4294901760
        %v1853 = vsub.f32 %v1851, %v1852
        %v1854 = vand.u32 %v1853, 4294901760
        %1855 = vmatpush2.msra.mxu0 %v1854
        %v1856 = vand.u32 %v602, 4294901760
        %1857 = vmatprep.mubr.f32.mxu0 %v1856
        %v1858 = vand.u32 %v542, 4294901760
        %1859 = vmatmul.mubr.f32.gmra.mxu0 %v1858
        %v1860 = vpop.f32.mrf.mxu0
        %v1861 = vadd.f32 %v1684, %v1860
        %v1862 = vpop.f32.mrf.mxu0
        %v1863 = vand.u32 %v605, 4294901760
        %1864 = vmatprep.mubr.f32.mxu0 %v1863
        %v1865 = vand.u32 %v544, 4294901760
        %1866 = vmatmul.mubr.f32.gmra.mxu0 %v1865
        %v1867 = vpop.f32.mrf.mxu0
        %v1868 = vadd.f32 %v1699, %v1867
        %v1869 = vpop.f32.mrf.mxu0
        %1870 = vdwg.mxu0
        %1871 = vmatprep.subr.mxu0 0.0
        %v1872 = vand.u32 %v593, 4294901760
        %v1873 = vsub.f32 %v593, %v1872
        %1874 = vmatpush1.msra.mxu0 %v1873
        %1875 = vmatprep.subr.mxu0 0.0
        %v1876 = vand.u32 %v590, 4294901760
        %v1877 = vsub.f32 %v590, %v1876
        %1878 = vmatpush1.msra.mxu0 %v1877
        %1879 = vmatprep.subr.mxu0 0.0
        %v1880 = vand.u32 %v587, 4294901760
        %v1881 = vsub.f32 %v587, %v1880
        %1882 = vmatpush1.msra.mxu0 %v1881
        %1883 = vmatprep.subr.mxu0 0.0
        %v1884 = vand.u32 %v584, 4294901760
        %v1885 = vsub.f32 %v584, %v1884
        %1886 = vmatpush1.msra.mxu0 %v1885
        %1887 = vmatprep.subr.mxu0 0.0
        %v1888 = vand.u32 %v581, 4294901760
        %v1889 = vsub.f32 %v581, %v1888
        %1890 = vmatpush1.msra.mxu0 %v1889
        %1891 = vmatprep.subr.mxu0 0.0
        %v1892 = vand.u32 %v578, 4294901760
        %v1893 = vsub.f32 %v578, %v1892
        %1894 = vmatpush1.msra.mxu0 %v1893
        %1895 = vmatprep.subr.mxu0 0.0
        %v1896 = vand.u32 %v575, 4294901760
        %v1897 = vsub.f32 %v575, %v1896
        %1898 = vmatpush1.msra.mxu0 %v1897
        %1899 = vmatprep.subr.mxu0 0.0
        %v1900 = vand.u32 %v572, 4294901760
        %v1901 = vsub.f32 %v572, %v1900
        %1902 = vmatpush1.msra.mxu0 %v1901
        %1903 = vmatprep.subr.mxu0 0.0
        %v1904 = vand.u32 %v569, 4294901760
        %v1905 = vsub.f32 %v569, %v1904
        %1906 = vmatpush1.msra.mxu0 %v1905
        %1907 = vmatprep.subr.mxu0 0.0
        %v1908 = vand.u32 %v566, 4294901760
        %v1909 = vsub.f32 %v566, %v1908
        %1910 = vmatpush1.msra.mxu0 %v1909
        %1911 = vmatprep.subr.mxu0 0.0
        %v1912 = vand.u32 %v563, 4294901760
        %v1913 = vsub.f32 %v563, %v1912
        %1914 = vmatpush1.msra.mxu0 %v1913
        %1915 = vmatprep.subr.mxu0 0.0
        %v1916 = vand.u32 %v560, 4294901760
        %v1917 = vsub.f32 %v560, %v1916
        %1918 = vmatpush1.msra.mxu0 %v1917
        %1919 = vmatprep.subr.mxu0 0.0
        %v1920 = vand.u32 %v557, 4294901760
        %v1921 = vsub.f32 %v557, %v1920
        %1922 = vmatpush1.msra.mxu0 %v1921
        %1923 = vmatprep.subr.mxu0 0.0
        %v1924 = vand.u32 %v554, 4294901760
        %v1925 = vsub.f32 %v554, %v1924
        %1926 = vmatpush1.msra.mxu0 %v1925
        %1927 = vmatprep.subr.mxu0 0.0
        %v1928 = vand.u32 %v551, 4294901760
        %v1929 = vsub.f32 %v551, %v1928
        %1930 = vmatpush1.msra.mxu0 %v1929
        %1931 = vmatprep.subr.mxu0 0.0
        %v1932 = vand.u32 %v548, 4294901760
        %v1933 = vsub.f32 %v548, %v1932
        %1934 = vmatpush1.msra.mxu0 %v1933
        %1935 = vmatprep.subr.mxu0 0.0
        %1936 = vmatpush2.msra.mxu0 0.0
        %1937 = vmatprep.subr.mxu0 0.0
        %1938 = vmatpush2.msra.mxu0 0.0
        %1939 = vmatprep.subr.mxu0 0.0
        %1940 = vmatpush2.msra.mxu0 0.0
        %1941 = vmatprep.subr.mxu0 0.0
        %1942 = vmatpush2.msra.mxu0 0.0
        %1943 = vmatprep.subr.mxu0 0.0
        %1944 = vmatpush2.msra.mxu0 0.0
        %1945 = vmatprep.subr.mxu0 0.0
        %1946 = vmatpush2.msra.mxu0 0.0
        %1947 = vmatprep.subr.mxu0 0.0
        %1948 = vmatpush2.msra.mxu0 0.0
        %1949 = vmatprep.subr.mxu0 0.0
        %1950 = vmatpush2.msra.mxu0 0.0
        %1951 = vmatprep.subr.mxu0 0.0
        %1952 = vmatpush2.msra.mxu0 0.0
        %1953 = vmatprep.subr.mxu0 0.0
        %1954 = vmatpush2.msra.mxu0 0.0
        %1955 = vmatprep.subr.mxu0 0.0
        %1956 = vmatpush2.msra.mxu0 0.0
        %1957 = vmatprep.subr.mxu0 0.0
        %1958 = vmatpush2.msra.mxu0 0.0
        %1959 = vmatprep.subr.mxu0 0.0
        %1960 = vmatpush2.msra.mxu0 0.0
        %1961 = vmatprep.subr.mxu0 0.0
        %1962 = vmatpush2.msra.mxu0 0.0
        %1963 = vmatprep.subr.mxu0 0.0
        %v1964 = vand.u32 %v599, 4294901760
        %v1965 = vsub.f32 %v599, %v1964
        %1966 = vmatpush2.msra.mxu0 %v1965
        %1967 = vmatprep.subr.mxu0 0.0
        %v1968 = vand.u32 %v596, 4294901760
        %v1969 = vsub.f32 %v596, %v1968
        %1970 = vmatpush2.msra.mxu0 %v1969
        %v1971 = vand.u32 %v602, 4294901760
        %v1972 = vsub.f32 %v602, %v1971
        %1973 = vmatprep.mubr.f32.mxu0 %v1972
        %v1974 = vand.u32 %v542, 4294901760
        %v1975 = vsub.f32 %v542, %v1974
        %1976 = vmatmul.mubr.f32.gmra.mxu0 %v1975
        %v1977 = vpop.f32.mrf.mxu0
        %v1978 = vadd.f32 %v1861, %v1977
        %v1979 = vpop.f32.mrf.mxu0
        %v1980 = vand.u32 %v605, 4294901760
        %v1981 = vsub.f32 %v605, %v1980
        %1982 = vmatprep.mubr.f32.mxu0 %v1981
        %v1983 = vand.u32 %v544, 4294901760
        %v1984 = vsub.f32 %v544, %v1983
        %1985 = vmatmul.mubr.f32.gmra.mxu0 %v1984
        %v1986 = vpop.f32.mrf.mxu0
        %v1987 = vadd.f32 %v1868, %v1986
        %v1988 = vpop.f32.mrf.mxu0
        %1989 = vdwg.mxu0
        %1990 = vmatprep.subr.mxu0 0.0
        %v1991 = vand.u32 %v593, 4294901760
        %1992 = vmatpush1.msra.mxu0 %v1991
        %1993 = vmatprep.subr.mxu0 0.0
        %v1994 = vand.u32 %v590, 4294901760
        %1995 = vmatpush1.msra.mxu0 %v1994
        %1996 = vmatprep.subr.mxu0 0.0
        %v1997 = vand.u32 %v587, 4294901760
        %1998 = vmatpush1.msra.mxu0 %v1997
        %1999 = vmatprep.subr.mxu0 0.0
        %v2000 = vand.u32 %v584, 4294901760
        %2001 = vmatpush1.msra.mxu0 %v2000
        %2002 = vmatprep.subr.mxu0 0.0
        %v2003 = vand.u32 %v581, 4294901760
        %2004 = vmatpush1.msra.mxu0 %v2003
        %2005 = vmatprep.subr.mxu0 0.0
        %v2006 = vand.u32 %v578, 4294901760
        %2007 = vmatpush1.msra.mxu0 %v2006
        %2008 = vmatprep.subr.mxu0 0.0
        %v2009 = vand.u32 %v575, 4294901760
        %2010 = vmatpush1.msra.mxu0 %v2009
        %2011 = vmatprep.subr.mxu0 0.0
        %v2012 = vand.u32 %v572, 4294901760
        %2013 = vmatpush1.msra.mxu0 %v2012
        %2014 = vmatprep.subr.mxu0 0.0
        %v2015 = vand.u32 %v569, 4294901760
        %2016 = vmatpush1.msra.mxu0 %v2015
        %2017 = vmatprep.subr.mxu0 0.0
        %v2018 = vand.u32 %v566, 4294901760
        %2019 = vmatpush1.msra.mxu0 %v2018
        %2020 = vmatprep.subr.mxu0 0.0
        %v2021 = vand.u32 %v563, 4294901760
        %2022 = vmatpush1.msra.mxu0 %v2021
        %2023 = vmatprep.subr.mxu0 0.0
        %v2024 = vand.u32 %v560, 4294901760
        %2025 = vmatpush1.msra.mxu0 %v2024
        %2026 = vmatprep.subr.mxu0 0.0
        %v2027 = vand.u32 %v557, 4294901760
        %2028 = vmatpush1.msra.mxu0 %v2027
        %2029 = vmatprep.subr.mxu0 0.0
        %v2030 = vand.u32 %v554, 4294901760
        %2031 = vmatpush1.msra.mxu0 %v2030
        %2032 = vmatprep.subr.mxu0 0.0
        %v2033 = vand.u32 %v551, 4294901760
        %2034 = vmatpush1.msra.mxu0 %v2033
        %2035 = vmatprep.subr.mxu0 0.0
        %v2036 = vand.u32 %v548, 4294901760
        %2037 = vmatpush1.msra.mxu0 %v2036
        %2038 = vmatprep.subr.mxu0 0.0
        %2039 = vmatpush2.msra.mxu0 0.0
        %2040 = vmatprep.subr.mxu0 0.0
        %2041 = vmatpush2.msra.mxu0 0.0
        %2042 = vmatprep.subr.mxu0 0.0
        %2043 = vmatpush2.msra.mxu0 0.0
        %2044 = vmatprep.subr.mxu0 0.0
        %2045 = vmatpush2.msra.mxu0 0.0
        %2046 = vmatprep.subr.mxu0 0.0
        %2047 = vmatpush2.msra.mxu0 0.0
        %2048 = vmatprep.subr.mxu0 0.0
        %2049 = vmatpush2.msra.mxu0 0.0
        %2050 = vmatprep.subr.mxu0 0.0
        %2051 = vmatpush2.msra.mxu0 0.0
        %2052 = vmatprep.subr.mxu0 0.0
        %2053 = vmatpush2.msra.mxu0 0.0
        %2054 = vmatprep.subr.mxu0 0.0
        %2055 = vmatpush2.msra.mxu0 0.0
        %2056 = vmatprep.subr.mxu0 0.0
        %2057 = vmatpush2.msra.mxu0 0.0
        %2058 = vmatprep.subr.mxu0 0.0
        %2059 = vmatpush2.msra.mxu0 0.0
        %2060 = vmatprep.subr.mxu0 0.0
        %2061 = vmatpush2.msra.mxu0 0.0
        %2062 = vmatprep.subr.mxu0 0.0
        %2063 = vmatpush2.msra.mxu0 0.0
        %2064 = vmatprep.subr.mxu0 0.0
        %2065 = vmatpush2.msra.mxu0 0.0
        %2066 = vmatprep.subr.mxu0 0.0
        %v2067 = vand.u32 %v599, 4294901760
        %2068 = vmatpush2.msra.mxu0 %v2067
        %2069 = vmatprep.subr.mxu0 0.0
        %v2070 = vand.u32 %v596, 4294901760
        %2071 = vmatpush2.msra.mxu0 %v2070
        %v2072 = vand.u32 %v602, 4294901760
        %v2073 = vsub.f32 %v602, %v2072
        %v2074 = vand.u32 %v2073, 4294901760
        %2075 = vmatprep.mubr.f32.mxu0 %v2074
        %v2076 = vand.u32 %v542, 4294901760
        %v2077 = vsub.f32 %v542, %v2076
        %v2078 = vand.u32 %v2077, 4294901760
        %2079 = vmatmul.mubr.f32.gmra.mxu0 %v2078
        %v2080 = vpop.f32.mrf.mxu0
        %v2081 = vadd.f32 %v1978, %v2080
        %v2082 = vpop.f32.mrf.mxu0
        %v2083 = vand.u32 %v605, 4294901760
        %v2084 = vsub.f32 %v605, %v2083
        %v2085 = vand.u32 %v2084, 4294901760
        %2086 = vmatprep.mubr.f32.mxu0 %v2085
        %v2087 = vand.u32 %v544, 4294901760
        %v2088 = vsub.f32 %v544, %v2087
        %v2089 = vand.u32 %v2088, 4294901760
        %2090 = vmatmul.mubr.f32.gmra.mxu0 %v2089
        %v2091 = vpop.f32.mrf.mxu0
        %v2092 = vadd.f32 %v1987, %v2091
        %v2093 = vpop.f32.mrf.mxu0
        %2094 = vdwg.mxu0
        %2095 = vmatprep.subr.mxu0 0.0
        %v2096 = vand.u32 %v593, 4294901760
        %v2097 = vsub.f32 %v593, %v2096
        %v2098 = vand.u32 %v2097, 4294901760
        %2099 = vmatpush1.msra.mxu0 %v2098
        %2100 = vmatprep.subr.mxu0 0.0
        %v2101 = vand.u32 %v590, 4294901760
        %v2102 = vsub.f32 %v590, %v2101
        %v2103 = vand.u32 %v2102, 4294901760
        %2104 = vmatpush1.msra.mxu0 %v2103
        %2105 = vmatprep.subr.mxu0 0.0
        %v2106 = vand.u32 %v587, 4294901760
        %v2107 = vsub.f32 %v587, %v2106
        %v2108 = vand.u32 %v2107, 4294901760
        %2109 = vmatpush1.msra.mxu0 %v2108
        %2110 = vmatprep.subr.mxu0 0.0
        %v2111 = vand.u32 %v584, 4294901760
        %v2112 = vsub.f32 %v584, %v2111
        %v2113 = vand.u32 %v2112, 4294901760
        %2114 = vmatpush1.msra.mxu0 %v2113
        %2115 = vmatprep.subr.mxu0 0.0
        %v2116 = vand.u32 %v581, 4294901760
        %v2117 = vsub.f32 %v581, %v2116
        %v2118 = vand.u32 %v2117, 4294901760
        %2119 = vmatpush1.msra.mxu0 %v2118
        %2120 = vmatprep.subr.mxu0 0.0
        %v2121 = vand.u32 %v578, 4294901760
        %v2122 = vsub.f32 %v578, %v2121
        %v2123 = vand.u32 %v2122, 4294901760
        %2124 = vmatpush1.msra.mxu0 %v2123
        %2125 = vmatprep.subr.mxu0 0.0
        %v2126 = vand.u32 %v575, 4294901760
        %v2127 = vsub.f32 %v575, %v2126
        %v2128 = vand.u32 %v2127, 4294901760
        %2129 = vmatpush1.msra.mxu0 %v2128
        %2130 = vmatprep.subr.mxu0 0.0
        %v2131 = vand.u32 %v572, 4294901760
        %v2132 = vsub.f32 %v572, %v2131
        %v2133 = vand.u32 %v2132, 4294901760
        %2134 = vmatpush1.msra.mxu0 %v2133
        %2135 = vmatprep.subr.mxu0 0.0
        %v2136 = vand.u32 %v569, 4294901760
        %v2137 = vsub.f32 %v569, %v2136
        %v2138 = vand.u32 %v2137, 4294901760
        %2139 = vmatpush1.msra.mxu0 %v2138
        %2140 = vmatprep.subr.mxu0 0.0
        %v2141 = vand.u32 %v566, 4294901760
        %v2142 = vsub.f32 %v566, %v2141
        %v2143 = vand.u32 %v2142, 4294901760
        %2144 = vmatpush1.msra.mxu0 %v2143
        %2145 = vmatprep.subr.mxu0 0.0
        %v2146 = vand.u32 %v563, 4294901760
        %v2147 = vsub.f32 %v563, %v2146
        %v2148 = vand.u32 %v2147, 4294901760
        %2149 = vmatpush1.msra.mxu0 %v2148
        %2150 = vmatprep.subr.mxu0 0.0
        %v2151 = vand.u32 %v560, 4294901760
        %v2152 = vsub.f32 %v560, %v2151
        %v2153 = vand.u32 %v2152, 4294901760
        %2154 = vmatpush1.msra.mxu0 %v2153
        %2155 = vmatprep.subr.mxu0 0.0
        %v2156 = vand.u32 %v557, 4294901760
        %v2157 = vsub.f32 %v557, %v2156
        %v2158 = vand.u32 %v2157, 4294901760
        %2159 = vmatpush1.msra.mxu0 %v2158
        %2160 = vmatprep.subr.mxu0 0.0
        %v2161 = vand.u32 %v554, 4294901760
        %v2162 = vsub.f32 %v554, %v2161
        %v2163 = vand.u32 %v2162, 4294901760
        %2164 = vmatpush1.msra.mxu0 %v2163
        %2165 = vmatprep.subr.mxu0 0.0
        %v2166 = vand.u32 %v551, 4294901760
        %v2167 = vsub.f32 %v551, %v2166
        %v2168 = vand.u32 %v2167, 4294901760
        %2169 = vmatpush1.msra.mxu0 %v2168
        %2170 = vmatprep.subr.mxu0 0.0
        %v2171 = vand.u32 %v548, 4294901760
        %v2172 = vsub.f32 %v548, %v2171
        %v2173 = vand.u32 %v2172, 4294901760
        %2174 = vmatpush1.msra.mxu0 %v2173
        %2175 = vmatprep.subr.mxu0 0.0
        %2176 = vmatpush2.msra.mxu0 0.0
        %2177 = vmatprep.subr.mxu0 0.0
        %2178 = vmatpush2.msra.mxu0 0.0
        %2179 = vmatprep.subr.mxu0 0.0
        %2180 = vmatpush2.msra.mxu0 0.0
        %2181 = vmatprep.subr.mxu0 0.0
        %2182 = vmatpush2.msra.mxu0 0.0
        %2183 = vmatprep.subr.mxu0 0.0
        %2184 = vmatpush2.msra.mxu0 0.0
        %2185 = vmatprep.subr.mxu0 0.0
        %2186 = vmatpush2.msra.mxu0 0.0
        %2187 = vmatprep.subr.mxu0 0.0
        %2188 = vmatpush2.msra.mxu0 0.0
        %2189 = vmatprep.subr.mxu0 0.0
        %2190 = vmatpush2.msra.mxu0 0.0
        %2191 = vmatprep.subr.mxu0 0.0
        %2192 = vmatpush2.msra.mxu0 0.0
        %2193 = vmatprep.subr.mxu0 0.0
        %2194 = vmatpush2.msra.mxu0 0.0
        %2195 = vmatprep.subr.mxu0 0.0
        %2196 = vmatpush2.msra.mxu0 0.0
        %2197 = vmatprep.subr.mxu0 0.0
        %2198 = vmatpush2.msra.mxu0 0.0
        %2199 = vmatprep.subr.mxu0 0.0
        %2200 = vmatpush2.msra.mxu0 0.0
        %2201 = vmatprep.subr.mxu0 0.0
        %2202 = vmatpush2.msra.mxu0 0.0
        %2203 = vmatprep.subr.mxu0 0.0
        %v2204 = vand.u32 %v599, 4294901760
        %v2205 = vsub.f32 %v599, %v2204
        %v2206 = vand.u32 %v2205, 4294901760
        %2207 = vmatpush2.msra.mxu0 %v2206
        %2208 = vmatprep.subr.mxu0 0.0
        %v2209 = vand.u32 %v596, 4294901760
        %v2210 = vsub.f32 %v596, %v2209
        %v2211 = vand.u32 %v2210, 4294901760
        %2212 = vmatpush2.msra.mxu0 %v2211
        %v2213 = vand.u32 %v602, 4294901760
        %2214 = vmatprep.mubr.f32.mxu0 %v2213
        %v2215 = vand.u32 %v542, 4294901760
        %2216 = vmatmul.mubr.f32.gmra.mxu0 %v2215
        %v2217 = vpop.f32.mrf.mxu0
        %v2218 = vadd.f32 %v2081, %v2217
        %v2219 = vpop.f32.mrf.mxu0
        %v2220 = vand.u32 %v605, 4294901760
        %2221 = vmatprep.mubr.f32.mxu0 %v2220
        %v2222 = vand.u32 %v544, 4294901760
        %2223 = vmatmul.mubr.f32.gmra.mxu0 %v2222
        %v2224 = vpop.f32.mrf.mxu0
        %v2225 = vadd.f32 %v2092, %v2224
        %v2226 = vpop.f32.mrf.mxu0
        %2227 = vdwg.mxu0
        %2228 = vmatprep.subr.mxu0 0.0
        %v2229 = vand.u32 %v593, 4294901760
        %2230 = vmatpush1.msra.mxu0 %v2229
        %2231 = vmatprep.subr.mxu0 0.0
        %v2232 = vand.u32 %v590, 4294901760
        %2233 = vmatpush1.msra.mxu0 %v2232
        %2234 = vmatprep.subr.mxu0 0.0
        %v2235 = vand.u32 %v587, 4294901760
        %2236 = vmatpush1.msra.mxu0 %v2235
        %2237 = vmatprep.subr.mxu0 0.0
        %v2238 = vand.u32 %v584, 4294901760
        %2239 = vmatpush1.msra.mxu0 %v2238
        %2240 = vmatprep.subr.mxu0 0.0
        %v2241 = vand.u32 %v581, 4294901760
        %2242 = vmatpush1.msra.mxu0 %v2241
        %2243 = vmatprep.subr.mxu0 0.0
        %v2244 = vand.u32 %v578, 4294901760
        %2245 = vmatpush1.msra.mxu0 %v2244
        %2246 = vmatprep.subr.mxu0 0.0
        %v2247 = vand.u32 %v575, 4294901760
        %2248 = vmatpush1.msra.mxu0 %v2247
        %2249 = vmatprep.subr.mxu0 0.0
        %v2250 = vand.u32 %v572, 4294901760
        %2251 = vmatpush1.msra.mxu0 %v2250
        %2252 = vmatprep.subr.mxu0 0.0
        %v2253 = vand.u32 %v569, 4294901760
        %2254 = vmatpush1.msra.mxu0 %v2253
        %2255 = vmatprep.subr.mxu0 0.0
        %v2256 = vand.u32 %v566, 4294901760
        %2257 = vmatpush1.msra.mxu0 %v2256
        %2258 = vmatprep.subr.mxu0 0.0
        %v2259 = vand.u32 %v563, 4294901760
        %2260 = vmatpush1.msra.mxu0 %v2259
        %2261 = vmatprep.subr.mxu0 0.0
        %v2262 = vand.u32 %v560, 4294901760
        %2263 = vmatpush1.msra.mxu0 %v2262
        %2264 = vmatprep.subr.mxu0 0.0
        %v2265 = vand.u32 %v557, 4294901760
        %2266 = vmatpush1.msra.mxu0 %v2265
        %2267 = vmatprep.subr.mxu0 0.0
        %v2268 = vand.u32 %v554, 4294901760
        %2269 = vmatpush1.msra.mxu0 %v2268
        %2270 = vmatprep.subr.mxu0 0.0
        %v2271 = vand.u32 %v551, 4294901760
        %2272 = vmatpush1.msra.mxu0 %v2271
        %2273 = vmatprep.subr.mxu0 0.0
        %v2274 = vand.u32 %v548, 4294901760
        %2275 = vmatpush1.msra.mxu0 %v2274
        %2276 = vmatprep.subr.mxu0 0.0
        %2277 = vmatpush2.msra.mxu0 0.0
        %2278 = vmatprep.subr.mxu0 0.0
        %2279 = vmatpush2.msra.mxu0 0.0
        %2280 = vmatprep.subr.mxu0 0.0
        %2281 = vmatpush2.msra.mxu0 0.0
        %2282 = vmatprep.subr.mxu0 0.0
        %2283 = vmatpush2.msra.mxu0 0.0
        %2284 = vmatprep.subr.mxu0 0.0
        %2285 = vmatpush2.msra.mxu0 0.0
        %2286 = vmatprep.subr.mxu0 0.0
        %2287 = vmatpush2.msra.mxu0 0.0
        %2288 = vmatprep.subr.mxu0 0.0
        %2289 = vmatpush2.msra.mxu0 0.0
        %2290 = vmatprep.subr.mxu0 0.0
        %2291 = vmatpush2.msra.mxu0 0.0
        %2292 = vmatprep.subr.mxu0 0.0
        %2293 = vmatpush2.msra.mxu0 0.0
        %2294 = vmatprep.subr.mxu0 0.0
        %2295 = vmatpush2.msra.mxu0 0.0
        %2296 = vmatprep.subr.mxu0 0.0
        %2297 = vmatpush2.msra.mxu0 0.0
        %2298 = vmatprep.subr.mxu0 0.0
        %2299 = vmatpush2.msra.mxu0 0.0
        %2300 = vmatprep.subr.mxu0 0.0
        %2301 = vmatpush2.msra.mxu0 0.0
        %2302 = vmatprep.subr.mxu0 0.0
        %2303 = vmatpush2.msra.mxu0 0.0
        %2304 = vmatprep.subr.mxu0 0.0
        %v2305 = vand.u32 %v599, 4294901760
        %2306 = vmatpush2.msra.mxu0 %v2305
        %2307 = vmatprep.subr.mxu0 0.0
        %v2308 = vand.u32 %v596, 4294901760
        %2309 = vmatpush2.msra.mxu0 %v2308
        %v2310 = vand.u32 %v602, 4294901760
        %2311 = vmatprep.mubr.f32.mxu0 %v2310
        %v2312 = vand.u32 %v542, 4294901760
        %2313 = vmatmul.mubr.f32.gmra.mxu0 %v2312
        %v2314 = vpop.f32.mrf.mxu0
        %v2315 = vadd.f32 %v2218, %v2314
        %v2316 = vpop.f32.mrf.mxu0
        %v2317 = vand.u32 %v605, 4294901760
        %2318 = vmatprep.mubr.f32.mxu0 %v2317
        %v2319 = vand.u32 %v544, 4294901760
        %2320 = vmatmul.mubr.f32.gmra.mxu0 %v2319
        %v2321 = vpop.f32.mrf.mxu0
        %v2322 = vadd.f32 %v2225, %v2321
        %v2323 = vpop.f32.mrf.mxu0
        %2324 = vdwg.mxu0
        %2325 = vst [vmem:[#allocation3] sm:$0xff] %v1577
        %2326 = vst [vmem:[#allocation3 + $0x8] sm:$0xff] %v1579
        %2327 = vst.msk [vmem:[#allocation3 + $0x10] sm:$0xff] %vm299, %v2315
        %2328 = vst [vmem:[#allocation3 + $0x18] sm:$0xff] %v1585
        %2329 = vst [vmem:[#allocation3 + $0x20] sm:$0xff] %v1587
        %2330 = vst.msk [vmem:[#allocation3 + $0x28] sm:$0xff] %vm299, %v2322
        %v2331 = vld [vmem:[#allocation3] sm:$0xff]
        %v2332 = vld [vmem:[#allocation3 + $0x8] sm:$0xff]
        %v2333 = vld [vmem:[#allocation3 + $0x10] sm:$0xff]
        %v2335 = vlaneseq
        %v2336 = vshrl.u32 %v2335, 7
        %v2337 = vsub.s32 0, %v2336
        %v2338 = vrot.slane %v234, %v2337
        %v2339 = vlaneseq
        %v2340 = vshrl.u32 %v2339, 7
        %v2341 = vsub.s32 1, %v2340
        %v2342 = vrot.slane %v234, %v2341
        %v2343 = vlaneseq
        %v2344 = vshrl.u32 %v2343, 7
        %v2345 = vsub.s32 2, %v2344
        %v2346 = vrot.slane %v234, %v2345
        %v2350 = vadd.f32 %v2331, %v2338
        %v2351 = vadd.f32 %v2332, %v2342
        %v2352 = vadd.f32 %v2333, %v2346
        %v2353 = vld [vmem:[#allocation3 + $0x18] sm:$0xff]
        %v2354 = vld [vmem:[#allocation3 + $0x20] sm:$0xff]
        %v2355 = vld [vmem:[#allocation3 + $0x28] sm:$0xff]
        %v2356 = vsel %vm299, %v2352, -inf
        %v2357 = vmax.f32 %v2350, %v2351
        %v2358 = vmax.f32 %v2357, %v2356
        %2359 = vmax.xlane.f32.xlu0 %v2358
        %v2360 = vpop.xlane.xlu0 %2359
        %v2361 = vsub.f32 %v2350, %v2360
        %v2362 = vsub.f32 %v2351, %v2360
        %v2363 = vsub.f32 %v2352, %v2360
        %v2364 = vmul.f32 %v2361, 1.442695
        %v2365 = vpow.pop %v2364
        %v2366 = vmul.f32 %v2362, 1.442695
        %v2367 = vpow.pop %v2366
        %v2368 = vmul.f32 %v2363, 1.442695
        %v2369 = vpow.pop %v2368
        %v2370 = vadd.f32 %v2365, %v2367
        %v2371 = vsel %vm299, %v2369, 0.0
        %v2372 = vadd.f32 %v2370, %v2371
        %2373 = vadd.xlane.f32.xlu0 %v2372
        %v2374 = vpop.xlane.xlu0 %2373
        %v2375 = vrcp.pop %v2374
        %v2376 = vmul.f32 %v2365, %v2375
        %v2377 = vmul.f32 %v2367, %v2375
        %v2378 = vmul.f32 %v2369, %v2375
        %2380 = vset.pattern.permute.xlu0 0
        %2381 = vperm.xlu0 %2380, %v235
        %v2382 = vpop.permute.xlu0 %2381
        %v2385 = vsel %vm299, %v2355, 0
        %v2388 = vsel %vm299, %v2378, 0
        %2390 = vmatprep.subr.mxu0 0.0
        %2391 = vmatpush1.xpose.msra.mxu0 0.0
        %2392 = vmatprep.subr.mxu0 0.0
        %2393 = vmatpush1.xpose.msra.mxu0 0.0
        %2394 = vmatprep.subr.mxu0 0.0
        %2395 = vmatpush1.xpose.msra.mxu0 0.0
        %2396 = vmatprep.subr.mxu0 0.0
        %2397 = vmatpush1.xpose.msra.mxu0 0.0
        %2398 = vmatprep.subr.mxu0 0.0
        %2399 = vmatpush1.xpose.msra.mxu0 0.0
        %2400 = vmatprep.subr.mxu0 0.0
        %2401 = vmatpush1.xpose.msra.mxu0 0.0
        %2402 = vmatprep.subr.mxu0 0.0
        %2403 = vmatpush1.xpose.msra.mxu0 0.0
        %2404 = vmatprep.subr.mxu0 0.0
        %2405 = vmatpush1.xpose.msra.mxu0 0.0
        %2406 = vmatprep.subr.mxu0 0.0
        %2407 = vmatpush1.xpose.msra.mxu0 0.0
        %2408 = vmatprep.subr.mxu0 0.0
        %2409 = vmatpush1.xpose.msra.mxu0 0.0
        %2410 = vmatprep.subr.mxu0 0.0
        %2411 = vmatpush1.xpose.msra.mxu0 0.0
        %2412 = vmatprep.subr.mxu0 0.0
        %2413 = vmatpush1.xpose.msra.mxu0 0.0
        %2414 = vmatprep.subr.mxu0 0.0
        %2415 = vmatpush1.xpose.msra.mxu0 0.0
        %2416 = vmatprep.subr.mxu0 0.0
        %2417 = vmatpush1.xpose.msra.mxu0 0.0
        %2418 = vmatprep.subr.mxu0 0.0
        %2419 = vmatpush1.xpose.msra.mxu0 0.0
        %v2420 = vand.u32 %v2377, 4294901760
        %2421 = vmatprep.subr.mxu0 %v2420
        %v2422 = vand.u32 %v2376, 4294901760
        %2423 = vmatpush1.xpose.msra.mxu0 %v2422
        %2424 = vmatprep.subr.mxu0 0.0
        %2425 = vmatpush2.xpose.msra.mxu0 0.0
        %2426 = vmatprep.subr.mxu0 0.0
        %2427 = vmatpush2.xpose.msra.mxu0 0.0
        %2428 = vmatprep.subr.mxu0 0.0
        %2429 = vmatpush2.xpose.msra.mxu0 0.0
        %2430 = vmatprep.subr.mxu0 0.0
        %2431 = vmatpush2.xpose.msra.mxu0 0.0
        %2432 = vmatprep.subr.mxu0 0.0
        %2433 = vmatpush2.xpose.msra.mxu0 0.0
        %2434 = vmatprep.subr.mxu0 0.0
        %2435 = vmatpush2.xpose.msra.mxu0 0.0
        %2436 = vmatprep.subr.mxu0 0.0
        %2437 = vmatpush2.xpose.msra.mxu0 0.0
        %2438 = vmatprep.subr.mxu0 0.0
        %2439 = vmatpush2.xpose.msra.mxu0 0.0
        %2440 = vmatprep.subr.mxu0 0.0
        %2441 = vmatpush2.xpose.msra.mxu0 0.0
        %2442 = vmatprep.subr.mxu0 0.0
        %2443 = vmatpush2.xpose.msra.mxu0 0.0
        %2444 = vmatprep.subr.mxu0 0.0
        %2445 = vmatpush2.xpose.msra.mxu0 0.0
        %2446 = vmatprep.subr.mxu0 0.0
        %2447 = vmatpush2.xpose.msra.mxu0 0.0
        %2448 = vmatprep.subr.mxu0 0.0
        %2449 = vmatpush2.xpose.msra.mxu0 0.0
        %2450 = vmatprep.subr.mxu0 0.0
        %2451 = vmatpush2.xpose.msra.mxu0 0.0
        %2452 = vmatprep.subr.mxu0 0.0
        %2453 = vmatpush2.xpose.msra.mxu0 0.0
        %2454 = vmatprep.subr.mxu0 0.0
        %2455 = vmatpush2.xpose.msra.mxu0 0.0
        %v2456 = vand.u32 %v2354, 4294901760
        %v2457 = vsub.f32 %v2354, %v2456
        %v2458 = vand.u32 %v2457, 4294901760
        %v2459 = vsub.f32 %v2457, %v2458
        %v2460 = vand.u32 %v2459, 4294901760
        %2461 = vmatprep.mubr.f32.mxu0 %v2460
        %v2462 = vand.u32 %v2353, 4294901760
        %v2463 = vsub.f32 %v2353, %v2462
        %v2464 = vand.u32 %v2463, 4294901760
        %v2465 = vsub.f32 %v2463, %v2464
        %v2466 = vand.u32 %v2465, 4294901760
        %2467 = vmatmul.mubr.f32.gmra.mxu0 %v2466
        %v2468 = vpop.f32.mrf.mxu0
        %v2469 = vadd.f32 %v2382, %v2468
        %v2470 = vpop.f32.mrf.mxu0
        %2471 = vdwg.mxu0
        %2472 = vmatprep.subr.mxu0 0.0
        %2473 = vmatpush1.xpose.msra.mxu0 0.0
        %2474 = vmatprep.subr.mxu0 0.0
        %2475 = vmatpush1.xpose.msra.mxu0 0.0
        %2476 = vmatprep.subr.mxu0 0.0
        %2477 = vmatpush1.xpose.msra.mxu0 0.0
        %2478 = vmatprep.subr.mxu0 0.0
        %2479 = vmatpush1.xpose.msra.mxu0 0.0
        %2480 = vmatprep.subr.mxu0 0.0
        %2481 = vmatpush1.xpose.msra.mxu0 0.0
        %2482 = vmatprep.subr.mxu0 0.0
        %2483 = vmatpush1.xpose.msra.mxu0 0.0
        %2484 = vmatprep.subr.mxu0 0.0
        %2485 = vmatpush1.xpose.msra.mxu0 0.0
        %2486 = vmatprep.subr.mxu0 0.0
        %2487 = vmatpush1.xpose.msra.mxu0 0.0
        %2488 = vmatprep.subr.mxu0 0.0
        %2489 = vmatpush1.xpose.msra.mxu0 0.0
        %2490 = vmatprep.subr.mxu0 0.0
        %2491 = vmatpush1.xpose.msra.mxu0 0.0
        %2492 = vmatprep.subr.mxu0 0.0
        %2493 = vmatpush1.xpose.msra.mxu0 0.0
        %2494 = vmatprep.subr.mxu0 0.0
        %2495 = vmatpush1.xpose.msra.mxu0 0.0
        %2496 = vmatprep.subr.mxu0 0.0
        %2497 = vmatpush1.xpose.msra.mxu0 0.0
        %2498 = vmatprep.subr.mxu0 0.0
        %2499 = vmatpush1.xpose.msra.mxu0 0.0
        %2500 = vmatprep.subr.mxu0 0.0
        %2501 = vmatpush1.xpose.msra.mxu0 0.0
        %v2502 = vand.u32 %v2377, 4294901760
        %v2503 = vsub.f32 %v2377, %v2502
        %v2504 = vand.u32 %v2503, 4294901760
        %v2505 = vsub.f32 %v2503, %v2504
        %v2506 = vand.u32 %v2505, 4294901760
        %2507 = vmatprep.subr.mxu0 %v2506
        %v2508 = vand.u32 %v2376, 4294901760
        %v2509 = vsub.f32 %v2376, %v2508
        %v2510 = vand.u32 %v2509, 4294901760
        %v2511 = vsub.f32 %v2509, %v2510
        %v2512 = vand.u32 %v2511, 4294901760
        %2513 = vmatpush1.xpose.msra.mxu0 %v2512
        %2514 = vmatprep.subr.mxu0 0.0
        %2515 = vmatpush2.xpose.msra.mxu0 0.0
        %2516 = vmatprep.subr.mxu0 0.0
        %2517 = vmatpush2.xpose.msra.mxu0 0.0
        %2518 = vmatprep.subr.mxu0 0.0
        %2519 = vmatpush2.xpose.msra.mxu0 0.0
        %2520 = vmatprep.subr.mxu0 0.0
        %2521 = vmatpush2.xpose.msra.mxu0 0.0
        %2522 = vmatprep.subr.mxu0 0.0
        %2523 = vmatpush2.xpose.msra.mxu0 0.0
        %2524 = vmatprep.subr.mxu0 0.0
        %2525 = vmatpush2.xpose.msra.mxu0 0.0
        %2526 = vmatprep.subr.mxu0 0.0
        %2527 = vmatpush2.xpose.msra.mxu0 0.0
        %2528 = vmatprep.subr.mxu0 0.0
        %2529 = vmatpush2.xpose.msra.mxu0 0.0
        %2530 = vmatprep.subr.mxu0 0.0
        %2531 = vmatpush2.xpose.msra.mxu0 0.0
        %2532 = vmatprep.subr.mxu0 0.0
        %2533 = vmatpush2.xpose.msra.mxu0 0.0
        %2534 = vmatprep.subr.mxu0 0.0
        %2535 = vmatpush2.xpose.msra.mxu0 0.0
        %2536 = vmatprep.subr.mxu0 0.0
        %2537 = vmatpush2.xpose.msra.mxu0 0.0
        %2538 = vmatprep.subr.mxu0 0.0
        %2539 = vmatpush2.xpose.msra.mxu0 0.0
        %2540 = vmatprep.subr.mxu0 0.0
        %2541 = vmatpush2.xpose.msra.mxu0 0.0
        %2542 = vmatprep.subr.mxu0 0.0
        %2543 = vmatpush2.xpose.msra.mxu0 0.0
        %2544 = vmatprep.subr.mxu0 0.0
        %2545 = vmatpush2.xpose.msra.mxu0 0.0
        %v2546 = vand.u32 %v2354, 4294901760
        %2547 = vmatprep.mubr.f32.mxu0 %v2546
        %v2548 = vand.u32 %v2353, 4294901760
        %2549 = vmatmul.mubr.f32.gmra.mxu0 %v2548
        %v2550 = vpop.f32.mrf.mxu0
        %v2551 = vadd.f32 %v2469, %v2550
        %v2552 = vpop.f32.mrf.mxu0
        %2553 = vdwg.mxu0
        %2554 = vmatprep.subr.mxu0 0.0
        %2555 = vmatpush1.xpose.msra.mxu0 0.0
        %2556 = vmatprep.subr.mxu0 0.0
        %2557 = vmatpush1.xpose.msra.mxu0 0.0
        %2558 = vmatprep.subr.mxu0 0.0
        %2559 = vmatpush1.xpose.msra.mxu0 0.0
        %2560 = vmatprep.subr.mxu0 0.0
        %2561 = vmatpush1.xpose.msra.mxu0 0.0
        %2562 = vmatprep.subr.mxu0 0.0
        %2563 = vmatpush1.xpose.msra.mxu0 0.0
        %2564 = vmatprep.subr.mxu0 0.0
        %2565 = vmatpush1.xpose.msra.mxu0 0.0
        %2566 = vmatprep.subr.mxu0 0.0
        %2567 = vmatpush1.xpose.msra.mxu0 0.0
        %2568 = vmatprep.subr.mxu0 0.0
        %2569 = vmatpush1.xpose.msra.mxu0 0.0
        %2570 = vmatprep.subr.mxu0 0.0
        %2571 = vmatpush1.xpose.msra.mxu0 0.0
        %2572 = vmatprep.subr.mxu0 0.0
        %2573 = vmatpush1.xpose.msra.mxu0 0.0
        %2574 = vmatprep.subr.mxu0 0.0
        %2575 = vmatpush1.xpose.msra.mxu0 0.0
        %2576 = vmatprep.subr.mxu0 0.0
        %2577 = vmatpush1.xpose.msra.mxu0 0.0
        %2578 = vmatprep.subr.mxu0 0.0
        %2579 = vmatpush1.xpose.msra.mxu0 0.0
        %2580 = vmatprep.subr.mxu0 0.0
        %2581 = vmatpush1.xpose.msra.mxu0 0.0
        %2582 = vmatprep.subr.mxu0 0.0
        %2583 = vmatpush1.xpose.msra.mxu0 0.0
        %v2584 = vand.u32 %v2377, 4294901760
        %v2585 = vsub.f32 %v2377, %v2584
        %2586 = vmatprep.subr.mxu0 %v2585
        %v2587 = vand.u32 %v2376, 4294901760
        %v2588 = vsub.f32 %v2376, %v2587
        %2589 = vmatpush1.xpose.msra.mxu0 %v2588
        %2590 = vmatprep.subr.mxu0 0.0
        %2591 = vmatpush2.xpose.msra.mxu0 0.0
        %2592 = vmatprep.subr.mxu0 0.0
        %2593 = vmatpush2.xpose.msra.mxu0 0.0
        %2594 = vmatprep.subr.mxu0 0.0
        %2595 = vmatpush2.xpose.msra.mxu0 0.0
        %2596 = vmatprep.subr.mxu0 0.0
        %2597 = vmatpush2.xpose.msra.mxu0 0.0
        %2598 = vmatprep.subr.mxu0 0.0
        %2599 = vmatpush2.xpose.msra.mxu0 0.0
        %2600 = vmatprep.subr.mxu0 0.0
        %2601 = vmatpush2.xpose.msra.mxu0 0.0
        %2602 = vmatprep.subr.mxu0 0.0
        %2603 = vmatpush2.xpose.msra.mxu0 0.0
        %2604 = vmatprep.subr.mxu0 0.0
        %2605 = vmatpush2.xpose.msra.mxu0 0.0
        %2606 = vmatprep.subr.mxu0 0.0
        %2607 = vmatpush2.xpose.msra.mxu0 0.0
        %2608 = vmatprep.subr.mxu0 0.0
        %2609 = vmatpush2.xpose.msra.mxu0 0.0
        %2610 = vmatprep.subr.mxu0 0.0
        %2611 = vmatpush2.xpose.msra.mxu0 0.0
        %2612 = vmatprep.subr.mxu0 0.0
        %2613 = vmatpush2.xpose.msra.mxu0 0.0
        %2614 = vmatprep.subr.mxu0 0.0
        %2615 = vmatpush2.xpose.msra.mxu0 0.0
        %2616 = vmatprep.subr.mxu0 0.0
        %2617 = vmatpush2.xpose.msra.mxu0 0.0
        %2618 = vmatprep.subr.mxu0 0.0
        %2619 = vmatpush2.xpose.msra.mxu0 0.0
        %2620 = vmatprep.subr.mxu0 0.0
        %2621 = vmatpush2.xpose.msra.mxu0 0.0
        %v2622 = vand.u32 %v2354, 4294901760
        %v2623 = vsub.f32 %v2354, %v2622
        %2624 = vmatprep.mubr.f32.mxu0 %v2623
        %v2625 = vand.u32 %v2353, 4294901760
        %v2626 = vsub.f32 %v2353, %v2625
        %2627 = vmatmul.mubr.f32.gmra.mxu0 %v2626
        %v2628 = vpop.f32.mrf.mxu0
        %v2629 = vadd.f32 %v2551, %v2628
        %v2630 = vpop.f32.mrf.mxu0
        %2631 = vdwg.mxu0
        %2632 = vmatprep.subr.mxu0 0.0
        %2633 = vmatpush1.xpose.msra.mxu0 0.0
        %2634 = vmatprep.subr.mxu0 0.0
        %2635 = vmatpush1.xpose.msra.mxu0 0.0
        %2636 = vmatprep.subr.mxu0 0.0
        %2637 = vmatpush1.xpose.msra.mxu0 0.0
        %2638 = vmatprep.subr.mxu0 0.0
        %2639 = vmatpush1.xpose.msra.mxu0 0.0
        %2640 = vmatprep.subr.mxu0 0.0
        %2641 = vmatpush1.xpose.msra.mxu0 0.0
        %2642 = vmatprep.subr.mxu0 0.0
        %2643 = vmatpush1.xpose.msra.mxu0 0.0
        %2644 = vmatprep.subr.mxu0 0.0
        %2645 = vmatpush1.xpose.msra.mxu0 0.0
        %2646 = vmatprep.subr.mxu0 0.0
        %2647 = vmatpush1.xpose.msra.mxu0 0.0
        %2648 = vmatprep.subr.mxu0 0.0
        %2649 = vmatpush1.xpose.msra.mxu0 0.0
        %2650 = vmatprep.subr.mxu0 0.0
        %2651 = vmatpush1.xpose.msra.mxu0 0.0
        %2652 = vmatprep.subr.mxu0 0.0
        %2653 = vmatpush1.xpose.msra.mxu0 0.0
        %2654 = vmatprep.subr.mxu0 0.0
        %2655 = vmatpush1.xpose.msra.mxu0 0.0
        %2656 = vmatprep.subr.mxu0 0.0
        %2657 = vmatpush1.xpose.msra.mxu0 0.0
        %2658 = vmatprep.subr.mxu0 0.0
        %2659 = vmatpush1.xpose.msra.mxu0 0.0
        %2660 = vmatprep.subr.mxu0 0.0
        %2661 = vmatpush1.xpose.msra.mxu0 0.0
        %v2662 = vand.u32 %v2377, 4294901760
        %2663 = vmatprep.subr.mxu0 %v2662
        %v2664 = vand.u32 %v2376, 4294901760
        %2665 = vmatpush1.xpose.msra.mxu0 %v2664
        %2666 = vmatprep.subr.mxu0 0.0
        %2667 = vmatpush2.xpose.msra.mxu0 0.0
        %2668 = vmatprep.subr.mxu0 0.0
        %2669 = vmatpush2.xpose.msra.mxu0 0.0
        %2670 = vmatprep.subr.mxu0 0.0
        %2671 = vmatpush2.xpose.msra.mxu0 0.0
        %2672 = vmatprep.subr.mxu0 0.0
        %2673 = vmatpush2.xpose.msra.mxu0 0.0
        %2674 = vmatprep.subr.mxu0 0.0
        %2675 = vmatpush2.xpose.msra.mxu0 0.0
        %2676 = vmatprep.subr.mxu0 0.0
        %2677 = vmatpush2.xpose.msra.mxu0 0.0
        %2678 = vmatprep.subr.mxu0 0.0
        %2679 = vmatpush2.xpose.msra.mxu0 0.0
        %2680 = vmatprep.subr.mxu0 0.0
        %2681 = vmatpush2.xpose.msra.mxu0 0.0
        %2682 = vmatprep.subr.mxu0 0.0
        %2683 = vmatpush2.xpose.msra.mxu0 0.0
        %2684 = vmatprep.subr.mxu0 0.0
        %2685 = vmatpush2.xpose.msra.mxu0 0.0
        %2686 = vmatprep.subr.mxu0 0.0
        %2687 = vmatpush2.xpose.msra.mxu0 0.0
        %2688 = vmatprep.subr.mxu0 0.0
        %2689 = vmatpush2.xpose.msra.mxu0 0.0
        %2690 = vmatprep.subr.mxu0 0.0
        %2691 = vmatpush2.xpose.msra.mxu0 0.0
        %2692 = vmatprep.subr.mxu0 0.0
        %2693 = vmatpush2.xpose.msra.mxu0 0.0
        %2694 = vmatprep.subr.mxu0 0.0
        %2695 = vmatpush2.xpose.msra.mxu0 0.0
        %2696 = vmatprep.subr.mxu0 0.0
        %2697 = vmatpush2.xpose.msra.mxu0 0.0
        %v2698 = vand.u32 %v2354, 4294901760
        %v2699 = vsub.f32 %v2354, %v2698
        %v2700 = vand.u32 %v2699, 4294901760
        %2701 = vmatprep.mubr.f32.mxu0 %v2700
        %v2702 = vand.u32 %v2353, 4294901760
        %v2703 = vsub.f32 %v2353, %v2702
        %v2704 = vand.u32 %v2703, 4294901760
        %2705 = vmatmul.mubr.f32.gmra.mxu0 %v2704
        %v2706 = vpop.f32.mrf.mxu0
        %v2707 = vadd.f32 %v2629, %v2706
        %v2708 = vpop.f32.mrf.mxu0
        %2709 = vdwg.mxu0
        %2710 = vmatprep.subr.mxu0 0.0
        %2711 = vmatpush1.xpose.msra.mxu0 0.0
        %2712 = vmatprep.subr.mxu0 0.0
        %2713 = vmatpush1.xpose.msra.mxu0 0.0
        %2714 = vmatprep.subr.mxu0 0.0
        %2715 = vmatpush1.xpose.msra.mxu0 0.0
        %2716 = vmatprep.subr.mxu0 0.0
        %2717 = vmatpush1.xpose.msra.mxu0 0.0
        %2718 = vmatprep.subr.mxu0 0.0
        %2719 = vmatpush1.xpose.msra.mxu0 0.0
        %2720 = vmatprep.subr.mxu0 0.0
        %2721 = vmatpush1.xpose.msra.mxu0 0.0
        %2722 = vmatprep.subr.mxu0 0.0
        %2723 = vmatpush1.xpose.msra.mxu0 0.0
        %2724 = vmatprep.subr.mxu0 0.0
        %2725 = vmatpush1.xpose.msra.mxu0 0.0
        %2726 = vmatprep.subr.mxu0 0.0
        %2727 = vmatpush1.xpose.msra.mxu0 0.0
        %2728 = vmatprep.subr.mxu0 0.0
        %2729 = vmatpush1.xpose.msra.mxu0 0.0
        %2730 = vmatprep.subr.mxu0 0.0
        %2731 = vmatpush1.xpose.msra.mxu0 0.0
        %2732 = vmatprep.subr.mxu0 0.0
        %2733 = vmatpush1.xpose.msra.mxu0 0.0
        %2734 = vmatprep.subr.mxu0 0.0
        %2735 = vmatpush1.xpose.msra.mxu0 0.0
        %2736 = vmatprep.subr.mxu0 0.0
        %2737 = vmatpush1.xpose.msra.mxu0 0.0
        %2738 = vmatprep.subr.mxu0 0.0
        %2739 = vmatpush1.xpose.msra.mxu0 0.0
        %v2740 = vand.u32 %v2377, 4294901760
        %v2741 = vsub.f32 %v2377, %v2740
        %v2742 = vand.u32 %v2741, 4294901760
        %2743 = vmatprep.subr.mxu0 %v2742
        %v2744 = vand.u32 %v2376, 4294901760
        %v2745 = vsub.f32 %v2376, %v2744
        %v2746 = vand.u32 %v2745, 4294901760
        %2747 = vmatpush1.xpose.msra.mxu0 %v2746
        %2748 = vmatprep.subr.mxu0 0.0
        %2749 = vmatpush2.xpose.msra.mxu0 0.0
        %2750 = vmatprep.subr.mxu0 0.0
        %2751 = vmatpush2.xpose.msra.mxu0 0.0
        %2752 = vmatprep.subr.mxu0 0.0
        %2753 = vmatpush2.xpose.msra.mxu0 0.0
        %2754 = vmatprep.subr.mxu0 0.0
        %2755 = vmatpush2.xpose.msra.mxu0 0.0
        %2756 = vmatprep.subr.mxu0 0.0
        %2757 = vmatpush2.xpose.msra.mxu0 0.0
        %2758 = vmatprep.subr.mxu0 0.0
        %2759 = vmatpush2.xpose.msra.mxu0 0.0
        %2760 = vmatprep.subr.mxu0 0.0
        %2761 = vmatpush2.xpose.msra.mxu0 0.0
        %2762 = vmatprep.subr.mxu0 0.0
        %2763 = vmatpush2.xpose.msra.mxu0 0.0
        %2764 = vmatprep.subr.mxu0 0.0
        %2765 = vmatpush2.xpose.msra.mxu0 0.0
        %2766 = vmatprep.subr.mxu0 0.0
        %2767 = vmatpush2.xpose.msra.mxu0 0.0
        %2768 = vmatprep.subr.mxu0 0.0
        %2769 = vmatpush2.xpose.msra.mxu0 0.0
        %2770 = vmatprep.subr.mxu0 0.0
        %2771 = vmatpush2.xpose.msra.mxu0 0.0
        %2772 = vmatprep.subr.mxu0 0.0
        %2773 = vmatpush2.xpose.msra.mxu0 0.0
        %2774 = vmatprep.subr.mxu0 0.0
        %2775 = vmatpush2.xpose.msra.mxu0 0.0
        %2776 = vmatprep.subr.mxu0 0.0
        %2777 = vmatpush2.xpose.msra.mxu0 0.0
        %2778 = vmatprep.subr.mxu0 0.0
        %2779 = vmatpush2.xpose.msra.mxu0 0.0
        %v2780 = vand.u32 %v2354, 4294901760
        %2781 = vmatprep.mubr.f32.mxu0 %v2780
        %v2782 = vand.u32 %v2353, 4294901760
        %2783 = vmatmul.mubr.f32.gmra.mxu0 %v2782
        %v2784 = vpop.f32.mrf.mxu0
        %v2785 = vadd.f32 %v2707, %v2784
        %v2786 = vpop.f32.mrf.mxu0
        %2787 = vdwg.mxu0
        %2788 = vmatprep.subr.mxu0 0.0
        %2789 = vmatpush1.xpose.msra.mxu0 0.0
        %2790 = vmatprep.subr.mxu0 0.0
        %2791 = vmatpush1.xpose.msra.mxu0 0.0
        %2792 = vmatprep.subr.mxu0 0.0
        %2793 = vmatpush1.xpose.msra.mxu0 0.0
        %2794 = vmatprep.subr.mxu0 0.0
        %2795 = vmatpush1.xpose.msra.mxu0 0.0
        %2796 = vmatprep.subr.mxu0 0.0
        %2797 = vmatpush1.xpose.msra.mxu0 0.0
        %2798 = vmatprep.subr.mxu0 0.0
        %2799 = vmatpush1.xpose.msra.mxu0 0.0
        %2800 = vmatprep.subr.mxu0 0.0
        %2801 = vmatpush1.xpose.msra.mxu0 0.0
        %2802 = vmatprep.subr.mxu0 0.0
        %2803 = vmatpush1.xpose.msra.mxu0 0.0
        %2804 = vmatprep.subr.mxu0 0.0
        %2805 = vmatpush1.xpose.msra.mxu0 0.0
        %2806 = vmatprep.subr.mxu0 0.0
        %2807 = vmatpush1.xpose.msra.mxu0 0.0
        %2808 = vmatprep.subr.mxu0 0.0
        %2809 = vmatpush1.xpose.msra.mxu0 0.0
        %2810 = vmatprep.subr.mxu0 0.0
        %2811 = vmatpush1.xpose.msra.mxu0 0.0
        %2812 = vmatprep.subr.mxu0 0.0
        %2813 = vmatpush1.xpose.msra.mxu0 0.0
        %2814 = vmatprep.subr.mxu0 0.0
        %2815 = vmatpush1.xpose.msra.mxu0 0.0
        %2816 = vmatprep.subr.mxu0 0.0
        %2817 = vmatpush1.xpose.msra.mxu0 0.0
        %v2818 = vand.u32 %v2377, 4294901760
        %2819 = vmatprep.subr.mxu0 %v2818
        %v2820 = vand.u32 %v2376, 4294901760
        %2821 = vmatpush1.xpose.msra.mxu0 %v2820
        %2822 = vmatprep.subr.mxu0 0.0
        %2823 = vmatpush2.xpose.msra.mxu0 0.0
        %2824 = vmatprep.subr.mxu0 0.0
        %2825 = vmatpush2.xpose.msra.mxu0 0.0
        %2826 = vmatprep.subr.mxu0 0.0
        %2827 = vmatpush2.xpose.msra.mxu0 0.0
        %2828 = vmatprep.subr.mxu0 0.0
        %2829 = vmatpush2.xpose.msra.mxu0 0.0
        %2830 = vmatprep.subr.mxu0 0.0
        %2831 = vmatpush2.xpose.msra.mxu0 0.0
        %2832 = vmatprep.subr.mxu0 0.0
        %2833 = vmatpush2.xpose.msra.mxu0 0.0
        %2834 = vmatprep.subr.mxu0 0.0
        %2835 = vmatpush2.xpose.msra.mxu0 0.0
        %2836 = vmatprep.subr.mxu0 0.0
        %2837 = vmatpush2.xpose.msra.mxu0 0.0
        %2838 = vmatprep.subr.mxu0 0.0
        %2839 = vmatpush2.xpose.msra.mxu0 0.0
        %2840 = vmatprep.subr.mxu0 0.0
        %2841 = vmatpush2.xpose.msra.mxu0 0.0
        %2842 = vmatprep.subr.mxu0 0.0
        %2843 = vmatpush2.xpose.msra.mxu0 0.0
        %2844 = vmatprep.subr.mxu0 0.0
        %2845 = vmatpush2.xpose.msra.mxu0 0.0
        %2846 = vmatprep.subr.mxu0 0.0
        %2847 = vmatpush2.xpose.msra.mxu0 0.0
        %2848 = vmatprep.subr.mxu0 0.0
        %2849 = vmatpush2.xpose.msra.mxu0 0.0
        %2850 = vmatprep.subr.mxu0 0.0
        %2851 = vmatpush2.xpose.msra.mxu0 0.0
        %2852 = vmatprep.subr.mxu0 0.0
        %2853 = vmatpush2.xpose.msra.mxu0 0.0
        %v2854 = vand.u32 %v2354, 4294901760
        %2855 = vmatprep.mubr.f32.mxu0 %v2854
        %v2856 = vand.u32 %v2353, 4294901760
        %2857 = vmatmul.mubr.f32.gmra.mxu0 %v2856
        %v2858 = vpop.f32.mrf.mxu0
        %v2859 = vadd.f32 %v2785, %v2858
        %v2860 = vpop.f32.mrf.mxu0
        %2861 = vdwg.mxu0
        %2862 = vmatprep.subr.mxu0 0.0
        %2863 = vmatpush1.xpose.msra.mxu0 0.0
        %2864 = vmatprep.subr.mxu0 0.0
        %2865 = vmatpush1.xpose.msra.mxu0 0.0
        %2866 = vmatprep.subr.mxu0 0.0
        %2867 = vmatpush1.xpose.msra.mxu0 0.0
        %2868 = vmatprep.subr.mxu0 0.0
        %2869 = vmatpush1.xpose.msra.mxu0 0.0
        %2870 = vmatprep.subr.mxu0 0.0
        %2871 = vmatpush1.xpose.msra.mxu0 0.0
        %2872 = vmatprep.subr.mxu0 0.0
        %2873 = vmatpush1.xpose.msra.mxu0 0.0
        %2874 = vmatprep.subr.mxu0 0.0
        %2875 = vmatpush1.xpose.msra.mxu0 0.0
        %2876 = vmatprep.subr.mxu0 0.0
        %2877 = vmatpush1.xpose.msra.mxu0 0.0
        %2878 = vmatprep.subr.mxu0 0.0
        %2879 = vmatpush1.xpose.msra.mxu0 0.0
        %2880 = vmatprep.subr.mxu0 0.0
        %2881 = vmatpush1.xpose.msra.mxu0 0.0
        %2882 = vmatprep.subr.mxu0 0.0
        %2883 = vmatpush1.xpose.msra.mxu0 0.0
        %2884 = vmatprep.subr.mxu0 0.0
        %2885 = vmatpush1.xpose.msra.mxu0 0.0
        %2886 = vmatprep.subr.mxu0 0.0
        %2887 = vmatpush1.xpose.msra.mxu0 0.0
        %2888 = vmatprep.subr.mxu0 0.0
        %2889 = vmatpush1.xpose.msra.mxu0 0.0
        %2890 = vmatprep.subr.mxu0 0.0
        %2891 = vmatpush1.xpose.msra.mxu0 0.0
        %2892 = vmatprep.subr.mxu0 0.0
        %v2893 = vand.u32 %v2388, 4294901760
        %2894 = vmatpush1.xpose.msra.mxu0 %v2893
        %2895 = vmatprep.subr.mxu0 0.0
        %2896 = vmatpush2.xpose.msra.mxu0 0.0
        %2897 = vmatprep.subr.mxu0 0.0
        %2898 = vmatpush2.xpose.msra.mxu0 0.0
        %2899 = vmatprep.subr.mxu0 0.0
        %2900 = vmatpush2.xpose.msra.mxu0 0.0
        %2901 = vmatprep.subr.mxu0 0.0
        %2902 = vmatpush2.xpose.msra.mxu0 0.0
        %2903 = vmatprep.subr.mxu0 0.0
        %2904 = vmatpush2.xpose.msra.mxu0 0.0
        %2905 = vmatprep.subr.mxu0 0.0
        %2906 = vmatpush2.xpose.msra.mxu0 0.0
        %2907 = vmatprep.subr.mxu0 0.0
        %2908 = vmatpush2.xpose.msra.mxu0 0.0
        %2909 = vmatprep.subr.mxu0 0.0
        %2910 = vmatpush2.xpose.msra.mxu0 0.0
        %2911 = vmatprep.subr.mxu0 0.0
        %2912 = vmatpush2.xpose.msra.mxu0 0.0
        %2913 = vmatprep.subr.mxu0 0.0
        %2914 = vmatpush2.xpose.msra.mxu0 0.0
        %2915 = vmatprep.subr.mxu0 0.0
        %2916 = vmatpush2.xpose.msra.mxu0 0.0
        %2917 = vmatprep.subr.mxu0 0.0
        %2918 = vmatpush2.xpose.msra.mxu0 0.0
        %2919 = vmatprep.subr.mxu0 0.0
        %2920 = vmatpush2.xpose.msra.mxu0 0.0
        %2921 = vmatprep.subr.mxu0 0.0
        %2922 = vmatpush2.xpose.msra.mxu0 0.0
        %2923 = vmatprep.subr.mxu0 0.0
        %2924 = vmatpush2.xpose.msra.mxu0 0.0
        %2925 = vmatprep.subr.mxu0 0.0
        %2926 = vmatpush2.xpose.msra.mxu0 0.0
        %2927 = vmatprep.mubr.f32.mxu0 0.0
        %v2928 = vand.u32 %v2385, 4294901760
        %v2929 = vsub.f32 %v2385, %v2928
        %v2930 = vand.u32 %v2929, 4294901760
        %v2931 = vsub.f32 %v2929, %v2930
        %v2932 = vand.u32 %v2931, 4294901760
        %2933 = vmatmul.mubr.f32.gmra.mxu0 %v2932
        %v2934 = vpop.f32.mrf.mxu0
        %v2935 = vadd.f32 %v2859, %v2934
        %v2936 = vpop.f32.mrf.mxu0
        %2937 = vdwg.mxu0
        %2938 = vmatprep.subr.mxu0 0.0
        %2939 = vmatpush1.xpose.msra.mxu0 0.0
        %2940 = vmatprep.subr.mxu0 0.0
        %2941 = vmatpush1.xpose.msra.mxu0 0.0
        %2942 = vmatprep.subr.mxu0 0.0
        %2943 = vmatpush1.xpose.msra.mxu0 0.0
        %2944 = vmatprep.subr.mxu0 0.0
        %2945 = vmatpush1.xpose.msra.mxu0 0.0
        %2946 = vmatprep.subr.mxu0 0.0
        %2947 = vmatpush1.xpose.msra.mxu0 0.0
        %2948 = vmatprep.subr.mxu0 0.0
        %2949 = vmatpush1.xpose.msra.mxu0 0.0
        %2950 = vmatprep.subr.mxu0 0.0
        %2951 = vmatpush1.xpose.msra.mxu0 0.0
        %2952 = vmatprep.subr.mxu0 0.0
        %2953 = vmatpush1.xpose.msra.mxu0 0.0
        %2954 = vmatprep.subr.mxu0 0.0
        %2955 = vmatpush1.xpose.msra.mxu0 0.0
        %2956 = vmatprep.subr.mxu0 0.0
        %2957 = vmatpush1.xpose.msra.mxu0 0.0
        %2958 = vmatprep.subr.mxu0 0.0
        %2959 = vmatpush1.xpose.msra.mxu0 0.0
        %2960 = vmatprep.subr.mxu0 0.0
        %2961 = vmatpush1.xpose.msra.mxu0 0.0
        %2962 = vmatprep.subr.mxu0 0.0
        %2963 = vmatpush1.xpose.msra.mxu0 0.0
        %2964 = vmatprep.subr.mxu0 0.0
        %2965 = vmatpush1.xpose.msra.mxu0 0.0
        %2966 = vmatprep.subr.mxu0 0.0
        %2967 = vmatpush1.xpose.msra.mxu0 0.0
        %2968 = vmatprep.subr.mxu0 0.0
        %v2969 = vand.u32 %v2388, 4294901760
        %v2970 = vsub.f32 %v2388, %v2969
        %v2971 = vand.u32 %v2970, 4294901760
        %v2972 = vsub.f32 %v2970, %v2971
        %v2973 = vand.u32 %v2972, 4294901760
        %2974 = vmatpush1.xpose.msra.mxu0 %v2973
        %2975 = vmatprep.subr.mxu0 0.0
        %2976 = vmatpush2.xpose.msra.mxu0 0.0
        %2977 = vmatprep.subr.mxu0 0.0
        %2978 = vmatpush2.xpose.msra.mxu0 0.0
        %2979 = vmatprep.subr.mxu0 0.0
        %2980 = vmatpush2.xpose.msra.mxu0 0.0
        %2981 = vmatprep.subr.mxu0 0.0
        %2982 = vmatpush2.xpose.msra.mxu0 0.0
        %2983 = vmatprep.subr.mxu0 0.0
        %2984 = vmatpush2.xpose.msra.mxu0 0.0
        %2985 = vmatprep.subr.mxu0 0.0
        %2986 = vmatpush2.xpose.msra.mxu0 0.0
        %2987 = vmatprep.subr.mxu0 0.0
        %2988 = vmatpush2.xpose.msra.mxu0 0.0
        %2989 = vmatprep.subr.mxu0 0.0
        %2990 = vmatpush2.xpose.msra.mxu0 0.0
        %2991 = vmatprep.subr.mxu0 0.0
        %2992 = vmatpush2.xpose.msra.mxu0 0.0
        %2993 = vmatprep.subr.mxu0 0.0
        %2994 = vmatpush2.xpose.msra.mxu0 0.0
        %2995 = vmatprep.subr.mxu0 0.0
        %2996 = vmatpush2.xpose.msra.mxu0 0.0
        %2997 = vmatprep.subr.mxu0 0.0
        %2998 = vmatpush2.xpose.msra.mxu0 0.0
        %2999 = vmatprep.subr.mxu0 0.0
        %3000 = vmatpush2.xpose.msra.mxu0 0.0
        %3001 = vmatprep.subr.mxu0 0.0
        %3002 = vmatpush2.xpose.msra.mxu0 0.0
        %3003 = vmatprep.subr.mxu0 0.0
        %3004 = vmatpush2.xpose.msra.mxu0 0.0
        %3005 = vmatprep.subr.mxu0 0.0
        %3006 = vmatpush2.xpose.msra.mxu0 0.0
        %3007 = vmatprep.mubr.f32.mxu0 0.0
        %v3008 = vand.u32 %v2385, 4294901760
        %3009 = vmatmul.mubr.f32.gmra.mxu0 %v3008
        %v3010 = vpop.f32.mrf.mxu0
        %v3011 = vadd.f32 %v2935, %v3010
        %v3012 = vpop.f32.mrf.mxu0
        %3013 = vdwg.mxu0
        %3014 = vmatprep.subr.mxu0 0.0
        %3015 = vmatpush1.xpose.msra.mxu0 0.0
        %3016 = vmatprep.subr.mxu0 0.0
        %3017 = vmatpush1.xpose.msra.mxu0 0.0
        %3018 = vmatprep.subr.mxu0 0.0
        %3019 = vmatpush1.xpose.msra.mxu0 0.0
        %3020 = vmatprep.subr.mxu0 0.0
        %3021 = vmatpush1.xpose.msra.mxu0 0.0
        %3022 = vmatprep.subr.mxu0 0.0
        %3023 = vmatpush1.xpose.msra.mxu0 0.0
        %3024 = vmatprep.subr.mxu0 0.0
        %3025 = vmatpush1.xpose.msra.mxu0 0.0
        %3026 = vmatprep.subr.mxu0 0.0
        %3027 = vmatpush1.xpose.msra.mxu0 0.0
        %3028 = vmatprep.subr.mxu0 0.0
        %3029 = vmatpush1.xpose.msra.mxu0 0.0
        %3030 = vmatprep.subr.mxu0 0.0
        %3031 = vmatpush1.xpose.msra.mxu0 0.0
        %3032 = vmatprep.subr.mxu0 0.0
        %3033 = vmatpush1.xpose.msra.mxu0 0.0
        %3034 = vmatprep.subr.mxu0 0.0
        %3035 = vmatpush1.xpose.msra.mxu0 0.0
        %3036 = vmatprep.subr.mxu0 0.0
        %3037 = vmatpush1.xpose.msra.mxu0 0.0
        %3038 = vmatprep.subr.mxu0 0.0
        %3039 = vmatpush1.xpose.msra.mxu0 0.0
        %3040 = vmatprep.subr.mxu0 0.0
        %3041 = vmatpush1.xpose.msra.mxu0 0.0
        %3042 = vmatprep.subr.mxu0 0.0
        %3043 = vmatpush1.xpose.msra.mxu0 0.0
        %3044 = vmatprep.subr.mxu0 0.0
        %v3045 = vand.u32 %v2388, 4294901760
        %v3046 = vsub.f32 %v2388, %v3045
        %3047 = vmatpush1.xpose.msra.mxu0 %v3046
        %3048 = vmatprep.subr.mxu0 0.0
        %3049 = vmatpush2.xpose.msra.mxu0 0.0
        %3050 = vmatprep.subr.mxu0 0.0
        %3051 = vmatpush2.xpose.msra.mxu0 0.0
        %3052 = vmatprep.subr.mxu0 0.0
        %3053 = vmatpush2.xpose.msra.mxu0 0.0
        %3054 = vmatprep.subr.mxu0 0.0
        %3055 = vmatpush2.xpose.msra.mxu0 0.0
        %3056 = vmatprep.subr.mxu0 0.0
        %3057 = vmatpush2.xpose.msra.mxu0 0.0
        %3058 = vmatprep.subr.mxu0 0.0
        %3059 = vmatpush2.xpose.msra.mxu0 0.0
        %3060 = vmatprep.subr.mxu0 0.0
        %3061 = vmatpush2.xpose.msra.mxu0 0.0
        %3062 = vmatprep.subr.mxu0 0.0
        %3063 = vmatpush2.xpose.msra.mxu0 0.0
        %3064 = vmatprep.subr.mxu0 0.0
        %3065 = vmatpush2.xpose.msra.mxu0 0.0
        %3066 = vmatprep.subr.mxu0 0.0
        %3067 = vmatpush2.xpose.msra.mxu0 0.0
        %3068 = vmatprep.subr.mxu0 0.0
        %3069 = vmatpush2.xpose.msra.mxu0 0.0
        %3070 = vmatprep.subr.mxu0 0.0
        %3071 = vmatpush2.xpose.msra.mxu0 0.0
        %3072 = vmatprep.subr.mxu0 0.0
        %3073 = vmatpush2.xpose.msra.mxu0 0.0
        %3074 = vmatprep.subr.mxu0 0.0
        %3075 = vmatpush2.xpose.msra.mxu0 0.0
        %3076 = vmatprep.subr.mxu0 0.0
        %3077 = vmatpush2.xpose.msra.mxu0 0.0
        %3078 = vmatprep.subr.mxu0 0.0
        %3079 = vmatpush2.xpose.msra.mxu0 0.0
        %3080 = vmatprep.mubr.f32.mxu0 0.0
        %v3081 = vand.u32 %v2385, 4294901760
        %v3082 = vsub.f32 %v2385, %v3081
        %3083 = vmatmul.mubr.f32.gmra.mxu0 %v3082
        %v3084 = vpop.f32.mrf.mxu0
        %v3085 = vadd.f32 %v3011, %v3084
        %v3086 = vpop.f32.mrf.mxu0
        %3087 = vdwg.mxu0
        %3088 = vmatprep.subr.mxu0 0.0
        %3089 = vmatpush1.xpose.msra.mxu0 0.0
        %3090 = vmatprep.subr.mxu0 0.0
        %3091 = vmatpush1.xpose.msra.mxu0 0.0
        %3092 = vmatprep.subr.mxu0 0.0
        %3093 = vmatpush1.xpose.msra.mxu0 0.0
        %3094 = vmatprep.subr.mxu0 0.0
        %3095 = vmatpush1.xpose.msra.mxu0 0.0
        %3096 = vmatprep.subr.mxu0 0.0
        %3097 = vmatpush1.xpose.msra.mxu0 0.0
        %3098 = vmatprep.subr.mxu0 0.0
        %3099 = vmatpush1.xpose.msra.mxu0 0.0
        %3100 = vmatprep.subr.mxu0 0.0
        %3101 = vmatpush1.xpose.msra.mxu0 0.0
        %3102 = vmatprep.subr.mxu0 0.0
        %3103 = vmatpush1.xpose.msra.mxu0 0.0
        %3104 = vmatprep.subr.mxu0 0.0
        %3105 = vmatpush1.xpose.msra.mxu0 0.0
        %3106 = vmatprep.subr.mxu0 0.0
        %3107 = vmatpush1.xpose.msra.mxu0 0.0
        %3108 = vmatprep.subr.mxu0 0.0
        %3109 = vmatpush1.xpose.msra.mxu0 0.0
        %3110 = vmatprep.subr.mxu0 0.0
        %3111 = vmatpush1.xpose.msra.mxu0 0.0
        %3112 = vmatprep.subr.mxu0 0.0
        %3113 = vmatpush1.xpose.msra.mxu0 0.0
        %3114 = vmatprep.subr.mxu0 0.0
        %3115 = vmatpush1.xpose.msra.mxu0 0.0
        %3116 = vmatprep.subr.mxu0 0.0
        %3117 = vmatpush1.xpose.msra.mxu0 0.0
        %3118 = vmatprep.subr.mxu0 0.0
        %v3119 = vand.u32 %v2388, 4294901760
        %3120 = vmatpush1.xpose.msra.mxu0 %v3119
        %3121 = vmatprep.subr.mxu0 0.0
        %3122 = vmatpush2.xpose.msra.mxu0 0.0
        %3123 = vmatprep.subr.mxu0 0.0
        %3124 = vmatpush2.xpose.msra.mxu0 0.0
        %3125 = vmatprep.subr.mxu0 0.0
        %3126 = vmatpush2.xpose.msra.mxu0 0.0
        %3127 = vmatprep.subr.mxu0 0.0
        %3128 = vmatpush2.xpose.msra.mxu0 0.0
        %3129 = vmatprep.subr.mxu0 0.0
        %3130 = vmatpush2.xpose.msra.mxu0 0.0
        %3131 = vmatprep.subr.mxu0 0.0
        %3132 = vmatpush2.xpose.msra.mxu0 0.0
        %3133 = vmatprep.subr.mxu0 0.0
        %3134 = vmatpush2.xpose.msra.mxu0 0.0
        %3135 = vmatprep.subr.mxu0 0.0
        %3136 = vmatpush2.xpose.msra.mxu0 0.0
        %3137 = vmatprep.subr.mxu0 0.0
        %3138 = vmatpush2.xpose.msra.mxu0 0.0
        %3139 = vmatprep.subr.mxu0 0.0
        %3140 = vmatpush2.xpose.msra.mxu0 0.0
        %3141 = vmatprep.subr.mxu0 0.0
        %3142 = vmatpush2.xpose.msra.mxu0 0.0
        %3143 = vmatprep.subr.mxu0 0.0
        %3144 = vmatpush2.xpose.msra.mxu0 0.0
        %3145 = vmatprep.subr.mxu0 0.0
        %3146 = vmatpush2.xpose.msra.mxu0 0.0
        %3147 = vmatprep.subr.mxu0 0.0
        %3148 = vmatpush2.xpose.msra.mxu0 0.0
        %3149 = vmatprep.subr.mxu0 0.0
        %3150 = vmatpush2.xpose.msra.mxu0 0.0
        %3151 = vmatprep.subr.mxu0 0.0
        %3152 = vmatpush2.xpose.msra.mxu0 0.0
        %3153 = vmatprep.mubr.f32.mxu0 0.0
        %v3154 = vand.u32 %v2385, 4294901760
        %v3155 = vsub.f32 %v2385, %v3154
        %v3156 = vand.u32 %v3155, 4294901760
        %3157 = vmatmul.mubr.f32.gmra.mxu0 %v3156
        %v3158 = vpop.f32.mrf.mxu0
        %v3159 = vadd.f32 %v3085, %v3158
        %v3160 = vpop.f32.mrf.mxu0
        %3161 = vdwg.mxu0
        %3162 = vmatprep.subr.mxu0 0.0
        %3163 = vmatpush1.xpose.msra.mxu0 0.0
        %3164 = vmatprep.subr.mxu0 0.0
        %3165 = vmatpush1.xpose.msra.mxu0 0.0
        %3166 = vmatprep.subr.mxu0 0.0
        %3167 = vmatpush1.xpose.msra.mxu0 0.0
        %3168 = vmatprep.subr.mxu0 0.0
        %3169 = vmatpush1.xpose.msra.mxu0 0.0
        %3170 = vmatprep.subr.mxu0 0.0
        %3171 = vmatpush1.xpose.msra.mxu0 0.0
        %3172 = vmatprep.subr.mxu0 0.0
        %3173 = vmatpush1.xpose.msra.mxu0 0.0
        %3174 = vmatprep.subr.mxu0 0.0
        %3175 = vmatpush1.xpose.msra.mxu0 0.0
        %3176 = vmatprep.subr.mxu0 0.0
        %3177 = vmatpush1.xpose.msra.mxu0 0.0
        %3178 = vmatprep.subr.mxu0 0.0
        %3179 = vmatpush1.xpose.msra.mxu0 0.0
        %3180 = vmatprep.subr.mxu0 0.0
        %3181 = vmatpush1.xpose.msra.mxu0 0.0
        %3182 = vmatprep.subr.mxu0 0.0
        %3183 = vmatpush1.xpose.msra.mxu0 0.0
        %3184 = vmatprep.subr.mxu0 0.0
        %3185 = vmatpush1.xpose.msra.mxu0 0.0
        %3186 = vmatprep.subr.mxu0 0.0
        %3187 = vmatpush1.xpose.msra.mxu0 0.0
        %3188 = vmatprep.subr.mxu0 0.0
        %3189 = vmatpush1.xpose.msra.mxu0 0.0
        %3190 = vmatprep.subr.mxu0 0.0
        %3191 = vmatpush1.xpose.msra.mxu0 0.0
        %3192 = vmatprep.subr.mxu0 0.0
        %v3193 = vand.u32 %v2388, 4294901760
        %v3194 = vsub.f32 %v2388, %v3193
        %v3195 = vand.u32 %v3194, 4294901760
        %3196 = vmatpush1.xpose.msra.mxu0 %v3195
        %3197 = vmatprep.subr.mxu0 0.0
        %3198 = vmatpush2.xpose.msra.mxu0 0.0
        %3199 = vmatprep.subr.mxu0 0.0
        %3200 = vmatpush2.xpose.msra.mxu0 0.0
        %3201 = vmatprep.subr.mxu0 0.0
        %3202 = vmatpush2.xpose.msra.mxu0 0.0
        %3203 = vmatprep.subr.mxu0 0.0
        %3204 = vmatpush2.xpose.msra.mxu0 0.0
        %3205 = vmatprep.subr.mxu0 0.0
        %3206 = vmatpush2.xpose.msra.mxu0 0.0
        %3207 = vmatprep.subr.mxu0 0.0
        %3208 = vmatpush2.xpose.msra.mxu0 0.0
        %3209 = vmatprep.subr.mxu0 0.0
        %3210 = vmatpush2.xpose.msra.mxu0 0.0
        %3211 = vmatprep.subr.mxu0 0.0
        %3212 = vmatpush2.xpose.msra.mxu0 0.0
        %3213 = vmatprep.subr.mxu0 0.0
        %3214 = vmatpush2.xpose.msra.mxu0 0.0
        %3215 = vmatprep.subr.mxu0 0.0
        %3216 = vmatpush2.xpose.msra.mxu0 0.0
        %3217 = vmatprep.subr.mxu0 0.0
        %3218 = vmatpush2.xpose.msra.mxu0 0.0
        %3219 = vmatprep.subr.mxu0 0.0
        %3220 = vmatpush2.xpose.msra.mxu0 0.0
        %3221 = vmatprep.subr.mxu0 0.0
        %3222 = vmatpush2.xpose.msra.mxu0 0.0
        %3223 = vmatprep.subr.mxu0 0.0
        %3224 = vmatpush2.xpose.msra.mxu0 0.0
        %3225 = vmatprep.subr.mxu0 0.0
        %3226 = vmatpush2.xpose.msra.mxu0 0.0
        %3227 = vmatprep.subr.mxu0 0.0
        %3228 = vmatpush2.xpose.msra.mxu0 0.0
        %3229 = vmatprep.mubr.f32.mxu0 0.0
        %v3230 = vand.u32 %v2385, 4294901760
        %3231 = vmatmul.mubr.f32.gmra.mxu0 %v3230
        %v3232 = vpop.f32.mrf.mxu0
        %v3233 = vadd.f32 %v3159, %v3232
        %v3234 = vpop.f32.mrf.mxu0
        %3235 = vdwg.mxu0
        %3236 = vmatprep.subr.mxu0 0.0
        %3237 = vmatpush1.xpose.msra.mxu0 0.0
        %3238 = vmatprep.subr.mxu0 0.0
        %3239 = vmatpush1.xpose.msra.mxu0 0.0
        %3240 = vmatprep.subr.mxu0 0.0
        %3241 = vmatpush1.xpose.msra.mxu0 0.0
        %3242 = vmatprep.subr.mxu0 0.0
        %3243 = vmatpush1.xpose.msra.mxu0 0.0
        %3244 = vmatprep.subr.mxu0 0.0
        %3245 = vmatpush1.xpose.msra.mxu0 0.0
        %3246 = vmatprep.subr.mxu0 0.0
        %3247 = vmatpush1.xpose.msra.mxu0 0.0
        %3248 = vmatprep.subr.mxu0 0.0
        %3249 = vmatpush1.xpose.msra.mxu0 0.0
        %3250 = vmatprep.subr.mxu0 0.0
        %3251 = vmatpush1.xpose.msra.mxu0 0.0
        %3252 = vmatprep.subr.mxu0 0.0
        %3253 = vmatpush1.xpose.msra.mxu0 0.0
        %3254 = vmatprep.subr.mxu0 0.0
        %3255 = vmatpush1.xpose.msra.mxu0 0.0
        %3256 = vmatprep.subr.mxu0 0.0
        %3257 = vmatpush1.xpose.msra.mxu0 0.0
        %3258 = vmatprep.subr.mxu0 0.0
        %3259 = vmatpush1.xpose.msra.mxu0 0.0
        %3260 = vmatprep.subr.mxu0 0.0
        %3261 = vmatpush1.xpose.msra.mxu0 0.0
        %3262 = vmatprep.subr.mxu0 0.0
        %3263 = vmatpush1.xpose.msra.mxu0 0.0
        %3264 = vmatprep.subr.mxu0 0.0
        %3265 = vmatpush1.xpose.msra.mxu0 0.0
        %3266 = vmatprep.subr.mxu0 0.0
        %v3267 = vand.u32 %v2388, 4294901760
        %3268 = vmatpush1.xpose.msra.mxu0 %v3267
        %3269 = vmatprep.subr.mxu0 0.0
        %3270 = vmatpush2.xpose.msra.mxu0 0.0
        %3271 = vmatprep.subr.mxu0 0.0
        %3272 = vmatpush2.xpose.msra.mxu0 0.0
        %3273 = vmatprep.subr.mxu0 0.0
        %3274 = vmatpush2.xpose.msra.mxu0 0.0
        %3275 = vmatprep.subr.mxu0 0.0
        %3276 = vmatpush2.xpose.msra.mxu0 0.0
        %3277 = vmatprep.subr.mxu0 0.0
        %3278 = vmatpush2.xpose.msra.mxu0 0.0
        %3279 = vmatprep.subr.mxu0 0.0
        %3280 = vmatpush2.xpose.msra.mxu0 0.0
        %3281 = vmatprep.subr.mxu0 0.0
        %3282 = vmatpush2.xpose.msra.mxu0 0.0
        %3283 = vmatprep.subr.mxu0 0.0
        %3284 = vmatpush2.xpose.msra.mxu0 0.0
        %3285 = vmatprep.subr.mxu0 0.0
        %3286 = vmatpush2.xpose.msra.mxu0 0.0
        %3287 = vmatprep.subr.mxu0 0.0
        %3288 = vmatpush2.xpose.msra.mxu0 0.0
        %3289 = vmatprep.subr.mxu0 0.0
        %3290 = vmatpush2.xpose.msra.mxu0 0.0
        %3291 = vmatprep.subr.mxu0 0.0
        %3292 = vmatpush2.xpose.msra.mxu0 0.0
        %3293 = vmatprep.subr.mxu0 0.0
        %3294 = vmatpush2.xpose.msra.mxu0 0.0
        %3295 = vmatprep.subr.mxu0 0.0
        %3296 = vmatpush2.xpose.msra.mxu0 0.0
        %3297 = vmatprep.subr.mxu0 0.0
        %3298 = vmatpush2.xpose.msra.mxu0 0.0
        %3299 = vmatprep.subr.mxu0 0.0
        %3300 = vmatpush2.xpose.msra.mxu0 0.0
        %3301 = vmatprep.mubr.f32.mxu0 0.0
        %v3302 = vand.u32 %v2385, 4294901760
        %3303 = vmatmul.mubr.f32.gmra.mxu0 %v3302
        %v3304 = vpop.f32.mrf.mxu0
        %v3305 = vadd.f32 %v3233, %v3304
        %v3306 = vpop.f32.mrf.mxu0
        %3307 = vdwg.mxu0
        %vm3308 = vcmask 64512
        %3309 = vst.msk [vmem:[%s221] sm:$0xff] %vm3308, %v3305
        %3311 = vrot.lane.b32.xlu0 %v2376, 109
        %v3312 = vpop.permute.xlu0 %3311
        %3314 = vst.msk [vmem:[%s228] sm:$0xff] %vm600, %v3312
        %3315 = vrot.lane.b32.xlu0 %v2376, 107
        %v3316 = vpop.permute.xlu0 %3315
        %vm3318 = vcmask 261248
        %3319 = vst.msk [vmem:[%s228] sm:$0xff] %vm3318, %v3316
        %3320 = vrot.lane.b32.xlu0 %v2376, 105
        %v3321 = vpop.permute.xlu0 %3320
        %vm3323 = vcmask 392448
        %3324 = vst.msk [vmem:[%s228] sm:$0xff] %vm3323, %v3321
        %3325 = vrot.lane.b32.xlu0 %v2376, 103
        %v3326 = vpop.permute.xlu0 %3325
        %vm3328 = vcmask 523648
        %3329 = vst.msk [vmem:[%s228] sm:$0xff] %vm3328, %v3326
        %3330 = vrot.lane.b32.xlu0 %v2376, 101
        %v3331 = vpop.permute.xlu0 %3330
        %vm3333 = vcmask 654848
        %3334 = vst.msk [vmem:[%s228] sm:$0xff] %vm3333, %v3331
        %3335 = vrot.lane.b32.xlu0 %v2376, 99
        %v3336 = vpop.permute.xlu0 %3335
        %vm3338 = vcmask 786048
        %3339 = vst.msk [vmem:[%s228] sm:$0xff] %vm3338, %v3336
        %3341 = vrot.lane.b32.xlu0 %v2376, 97
        %v3342 = vpop.permute.xlu0 %3341
        %3343 = vrot.lane.b32.xlu0 %v2377, 97
        %v3344 = vpop.permute.xlu0 %3343
        %vm3345 = vcmask 793600
        %v3346 = vsel %vm3345, %v3342, %v3344
        %vm3348 = vcmask 917248
        %3349 = vst.msk [vmem:[%s228] sm:$0xff] %vm3348, %v3346
        %3350 = vrot.lane.b32.xlu0 %v2377, 95
        %v3351 = vpop.permute.xlu0 %3350
        %vm3353 = vcmask 1048448
        %3354 = vst.msk [vmem:[%s228] sm:$0xff] %vm3353, %v3351
        %3355 = vrot.lane.b32.xlu0 %v2377, 93
        %v3356 = vpop.permute.xlu0 %3355
        %3358 = vst.msk [vmem:[%s228 + $0x8] sm:$0xff] %vm600, %v3356
        %3359 = vrot.lane.b32.xlu0 %v2377, 91
        %v3360 = vpop.permute.xlu0 %3359
        %3362 = vst.msk [vmem:[%s228 + $0x8] sm:$0xff] %vm3318, %v3360
        %3363 = vrot.lane.b32.xlu0 %v2377, 89
        %v3364 = vpop.permute.xlu0 %3363
        %3366 = vst.msk [vmem:[%s228 + $0x8] sm:$0xff] %vm3323, %v3364
        %3367 = vrot.lane.b32.xlu0 %v2377, 87
        %v3368 = vpop.permute.xlu0 %3367
        %3370 = vst.msk [vmem:[%s228 + $0x8] sm:$0xff] %vm3328, %v3368
        %3371 = vrot.lane.b32.xlu0 %v2377, 85
        %v3372 = vpop.permute.xlu0 %3371
        %3374 = vst.msk [vmem:[%s228 + $0x8] sm:$0xff] %vm3333, %v3372
        %3375 = vrot.lane.b32.xlu0 %v2377, 83
        %v3376 = vpop.permute.xlu0 %3375
        %3377 = vrot.lane.b32.xlu0 %v2378, 83
        %v3378 = vpop.permute.xlu0 %3377
        %vm3379 = vcmask 678912
        %v3380 = vsel %vm3379, %v3376, %v3378
        %3382 = vst.msk [vmem:[%s228 + $0x8] sm:$0xff] %vm3338, %v3380
        %3383 = vrot.lane.b32.xlu0 %v2378, 81
        %v3384 = vpop.permute.xlu0 %3383
        %3386 = vst.msk [vmem:[%s228 + $0x8] sm:$0xff] %vm3348, %v3384
        %3387 = vrot.lane.b32.xlu0 %v2378, 79
        %v3388 = vpop.permute.xlu0 %3387
        %3390 = vst.msk [vmem:[%s228 + $0x8] sm:$0xff] %vm3353, %v3388
        %s3391 = sand.u32 %s120, 1
        %s3392 = scalar_lea.sflag [#allocation5], %s3391
        %s3393 = sand.u32 %s120, 1
        %s3394 = smul.addr %s3393, 8
        %s3395 = scalar_lea.vmem [#allocation4], %s3394
        %s3396 = sand.u32 %s146, 1
        %s3397 = scalar_lea.sflag [#allocation7], %s3396
        %s3398 = sand.u32 %s146, 1
        %s3399 = smul.addr %s3398, 16
        %s3400 = scalar_lea.vmem [#allocation6], %s3399
        // Predicated region
        $region37: #{_extraction_forward.1} parent=35 // pred_check
          %p3401 = pneg %p130
        $region38: #{_extraction_forward.1} parent=35 // pred_check_branch
          %3403 = sbr.rel (%p3401) target = $region40
        $region39: #{_extraction_forward.1} parent=35 // pred_region
          %s3405 = ssub.s32 128, 128
          %3406 = vsyncadd %s3392, %s3405
          %s3407 = smul.addr %s23, 128
          %s3408 = scalar_lea.hbm %s4, %s3407
          %s3410 = sshll.u32 %s3395, 4
          %s3411 = int_to_ptr.vmem [resolvable:$true] %s3410
          %3413 = dma.vmem_to_hbm [thread:$0]  %s3411, 128, %s3408, %s3392
        $region40: #{_extraction_forward.1} parent=35 // pred_fallthru
          _
        // Predicated region
        $region41: #{_extraction_forward.1} parent=35 // pred_check
          %p3414 = pneg %p156
        $region42: #{_extraction_forward.1} parent=35 // pred_check_branch
          %3416 = sbr.rel (%p3414) target = $region44
        $region43: #{_extraction_forward.1} parent=35 // pred_region
          %s3418 = ssub.s32 256, 256
          %3419 = vsyncadd %s3397, %s3418
          %s3420 = smul.addr %s23, 2
          %s3421 = smul.addr %s3420, 128
          %s3422 = scalar_lea.hbm %s5, %s3421
          %s3424 = sshll.u32 %s3400, 4
          %s3425 = int_to_ptr.vmem [resolvable:$true] %s3424
          %3427 = dma.vmem_to_hbm [thread:$0]  %s3425, 256, %s3422, %s3397
        $region44: #{_extraction_forward.1} parent=35 // pred_fallthru
          _
      $region36: #{_extraction_forward.1} parent=5 // pred_fallthru
        _
      %p3428 = scmp.le.s32.totalorder 2, %s18
      // Predicated region
      $region45: #{_extraction_forward.1} parent=5 // pred_check
        %p3429 = pneg %p3428
      $region46: #{_extraction_forward.1} parent=5 // pred_check_branch
        %3431 = sbr.rel (%p3429) target = $region48
      $region47: #{_extraction_forward.1} parent=5 // pred_region
        %s3432 = ssub.s32 %s18, 2
        // Predicated region
        $region49: #{_extraction_forward.1} parent=47 // pred_check
          %p3433 = pneg %p136
        $region50: #{_extraction_forward.1} parent=47 // pred_check_branch
          %3435 = sbr.rel (%p3433) target = $region52
        $region51: #{_extraction_forward.1} parent=47 // pred_region
          %s3436 = sand.u32 %s121, 1
          %s3437 = scalar_lea.sflag [#allocation5], %s3436
          %s3438 = sand.u32 %s121, 1
          %s3439 = smul.addr %s3438, 8
          %s3440 = scalar_lea.vmem [#allocation4], %s3439
          %3441 = dma.done %s3437, 128
        $region52: #{_extraction_forward.1} parent=47 // pred_fallthru
          _
        // Predicated region
        $region53: #{_extraction_forward.1} parent=47 // pred_check
          %p3442 = pneg %p162
        $region54: #{_extraction_forward.1} parent=47 // pred_check_branch
          %3444 = sbr.rel (%p3442) target = $region56
        $region55: #{_extraction_forward.1} parent=47 // pred_region
          %s3445 = sand.u32 %s147, 1
          %s3446 = scalar_lea.sflag [#allocation7], %s3445
          %s3447 = sand.u32 %s147, 1
          %s3448 = smul.addr %s3447, 16
          %s3449 = scalar_lea.vmem [#allocation6], %s3448
          %3450 = dma.done %s3446, 256
        $region56: #{_extraction_forward.1} parent=47 // pred_fallthru
          _
      $region48: #{_extraction_forward.1} parent=5 // pred_fallthru
        _
    $region6: #{_extraction_forward.1} parent=1 // loop_footer
      %s22 = sadd.s32 1, %s18
    $region7: #{_extraction_forward.1} parent=1 // loop_footer_branch
      %17 = sbr.rel target = $region3
    $region8: #{_extraction_forward.1} parent=1 // loop_exit
      _
    %3451 = vsyncpa [#allocation5], 1
    %s3452 = scalar_lea.sflag [#allocation5], 1
    %3453 = vsyncpa %s3452, 1
    %3454 = vsyncpa [#allocation7], 1
    %s3455 = scalar_lea.sflag [#allocation7], 1
    %3456 = vsyncpa %s3455, 1

</llo_original>
